<compile_context>
chip_gen: v6e
topology: v6e:2x2x1
jax: 0.10.0
libtpu: 0.0.40
codegen_flags: <defaults>
</compile_context>

<pallas_src>
import math

import jax
import jax.numpy as jnp
from jax.experimental import pallas as pl
from jax.experimental.pallas import tpu as pltpu

# ---- small synthetic RoBERTa config ----
VOCAB = 64
MAX_POS = 16
HIDDEN = 32
N_HEADS = 2
HEAD_DIM = HIDDEN // N_HEADS
INTERMEDIATE = 64
N_LAYERS = 2
NUM_CLASSES = 3
C_PAD = 128          # lane-dense padded logits width
PAD_IDX = 1
LN_EPS = 1e-5

# Everything fits trivially in VMEM at these shapes; no grid tiling needed.
_VMEM = pl.BlockSpec(memory_space=pltpu.MemorySpace.VMEM)


def fused_roberta_kernel_call(x_emb, mask_f, p):
    """Single pallas_call: embeddings-LN -> N transformer layers -> head.

    x_emb:  (B*S, HIDDEN) summed word+pos+type embeddings (pre-LN)
    mask_f: (B, S) attention mask as float32
    returns (B, C_PAD) lane-dense padded logits
    """
    B, S = mask_f.shape
    BS = B * S
    scale = 1.0 / math.sqrt(HEAD_DIM)

    def kernel(x_ref, mask_ref, eg_ref, eb_ref,
               wqkv_ref, bqkv_ref, wo_ref, bo_ref, g1_ref, bln1_ref,
               wi_ref, bi_ref, wf_ref, bf_ref, g2_ref, bln2_ref,
               w1_ref, bh1_ref, w2_ref, bh2_ref, o_ref):

        def layernorm(v, g, b):
            mu = jnp.mean(v, axis=-1, keepdims=True)
            var = jnp.mean(jnp.square(v - mu), axis=-1, keepdims=True)
            return (v - mu) * jax.lax.rsqrt(var + LN_EPS) * g + b

        # Embedding LayerNorm.
        x = layernorm(x_ref[...], eg_ref[...], eb_ref[...])        # (BS, H) f32

        # Additive key mask, broadcast in-kernel over heads/queries.
        bias3 = ((1.0 - mask_ref[...]) * -1e9)[:, None, :]         # (B, 1, S)

        # Statically unrolled transformer layers (weights stacked on axis 0).
        for li in range(N_LAYERS):
            residual = x

            # Fused QKV projection: one (BS,H) x (H,3H) matmul.
            qkv = jnp.dot(x, wqkv_ref[li],
                          preferred_element_type=jnp.float32) + bqkv_ref[li]

            wo_l = wo_ref[li]
            attn = None
            # Per-head attention; heads sliced from the fused QKV lanes.
            for h in range(N_HEADS):
                qs = h * HEAD_DIM
                ks = HIDDEN + h * HEAD_DIM
                vs = 2 * HIDDEN + h * HEAD_DIM
                qh = qkv[:, qs:qs + HEAD_DIM].reshape(B, S, HEAD_DIM)
                kh = qkv[:, ks:ks + HEAD_DIM].reshape(B, S, HEAD_DIM)
                vh = qkv[:, vs:vs + HEAD_DIM].reshape(B, S, HEAD_DIM)

                s = jnp.einsum("bqd,bkd->bqk", qh, kh,
                               preferred_element_type=jnp.float32) * scale
                s = s + bias3
                m = jnp.max(s, axis=-1, keepdims=True)
                pr = jnp.exp(s - m)
                denom = jnp.sum(pr, axis=-1, keepdims=True)
                pr = pr * pl.reciprocal(denom, approx=True)

                ctx = jnp.einsum("bqk,bkd->bqd", pr, vh,
                                 preferred_element_type=jnp.float32)
                ctx2 = ctx.reshape(BS, HEAD_DIM)
                # Output projection accumulated per-head (avoids in-kernel concat).
                part = jnp.dot(ctx2, wo_l[h * HEAD_DIM:(h + 1) * HEAD_DIM, :],
                               preferred_element_type=jnp.float32)
                attn = part if attn is None else attn + part

            attn = attn + bo_ref[li]
            # Residual add folded into the LayerNorm epilogue.
            x = layernorm(attn + residual, g1_ref[li], bln1_ref[li])

            # FFN.
            hmid = jnp.dot(x, wi_ref[li],
                           preferred_element_type=jnp.float32) + bi_ref[li]
            # TODO(synk): HF RoBERTa uses exact erf-GELU; tanh approximation used here.
            hmid = jax.nn.gelu(hmid, approximate=True)
            ffn = jnp.dot(hmid, wf_ref[li],
                          preferred_element_type=jnp.float32) + bf_ref[li]
            x = layernorm(ffn + x, g2_ref[li], bln2_ref[li])

        # Select CLS rows (row b*S per batch) with a one-hot matmul -- keeps the
        # selection on the MXU and avoids risky in-kernel sublane gathers.
        col_ids = jax.lax.broadcasted_iota(jnp.int32, (B, BS), 1)
        cls_ids = jax.lax.broadcasted_iota(jnp.int32, (B, BS), 0) * S
        sel = (col_ids == cls_ids).astype(jnp.float32)              # (B, BS)
        cls = jnp.dot(sel, x, preferred_element_type=jnp.float32)   # (B, H)

        # Classifier head: linear -> ReLU -> linear (output lanes padded to 128).
        h1 = jnp.dot(cls, w1_ref[...],
                     preferred_element_type=jnp.float32) + bh1_ref[...]
        h1 = jnp.maximum(h1, 0.0)
        logits = jnp.dot(h1, w2_ref[...],
                         preferred_element_type=jnp.float32) + bh2_ref[...]
        o_ref[...] = logits.astype(o_ref.dtype)                     # (B, C_PAD)

    return pl.pallas_call(
        kernel,
        out_shape=jax.ShapeDtypeStruct((B, C_PAD), jnp.float32),
        in_specs=[_VMEM] * 20,
        out_specs=_VMEM,
    )(x_emb, mask_f, p["emb_ln_g"], p["emb_ln_b"],
      p["wqkv"], p["bqkv"], p["wo"], p["bo"], p["ln1_g"], p["ln1_b"],
      p["wi"], p["bi"], p["wf"], p["bf"], p["ln2_g"], p["ln2_b"],
      p["w1"], p["b1"], p["w2"], p["b2"])


# ---------------- parameters (deterministic synthetic init) ----------------
def init_params(key):
    def dense(k, shape):
        return (jax.random.normal(k, shape, jnp.float32) * 0.02).astype(jnp.float32)

    keys = iter(jax.random.split(key, 64))
    p = {
        "word_emb": dense(next(keys), (VOCAB, HIDDEN)),
        "pos_emb": dense(next(keys), (MAX_POS, HIDDEN)),
        "type_emb": dense(next(keys), (1, HIDDEN)),
        "emb_ln_g": jnp.ones((1, HIDDEN), jnp.float32),
        "emb_ln_b": jnp.zeros((1, HIDDEN), jnp.float32),
    }

    wqkv, bqkv, wo, bo, ln1g, ln1b = [], [], [], [], [], []
    wi, bi, wf, bf, ln2g, ln2b = [], [], [], [], [], []
    for _ in range(N_LAYERS):
        wq = dense(next(keys), (HIDDEN, HIDDEN))
        wk = dense(next(keys), (HIDDEN, HIDDEN))
        wv = dense(next(keys), (HIDDEN, HIDDEN))
        wqkv.append(jnp.concatenate([wq, wk, wv], axis=1))          # (H, 3H)
        bqkv.append(jnp.zeros((1, 3 * HIDDEN), jnp.float32))
        wo.append(dense(next(keys), (HIDDEN, HIDDEN)))
        bo.append(jnp.zeros((1, HIDDEN), jnp.float32))
        ln1g.append(jnp.ones((1, HIDDEN), jnp.float32))
        ln1b.append(jnp.zeros((1, HIDDEN), jnp.float32))
        wi.append(dense(next(keys), (HIDDEN, INTERMEDIATE)))
        bi.append(jnp.zeros((1, INTERMEDIATE), jnp.float32))
        wf.append(dense(next(keys), (INTERMEDIATE, HIDDEN)))
        bf.append(jnp.zeros((1, HIDDEN), jnp.float32))
        ln2g.append(jnp.ones((1, HIDDEN), jnp.float32))
        ln2b.append(jnp.zeros((1, HIDDEN), jnp.float32))

    # Stack all layer weights along a leading axis (single kernel, static loop).
    p.update({
        "wqkv": jnp.stack(wqkv), "bqkv": jnp.stack(bqkv),
        "wo": jnp.stack(wo), "bo": jnp.stack(bo),
        "ln1_g": jnp.stack(ln1g), "ln1_b": jnp.stack(ln1b),
        "wi": jnp.stack(wi), "bi": jnp.stack(bi),
        "wf": jnp.stack(wf), "bf": jnp.stack(bf),
        "ln2_g": jnp.stack(ln2g), "ln2_b": jnp.stack(ln2b),
    })

    # Classifier head: Linear(hidden, 512) -> ReLU -> Linear(512, num_classes),
    # with the final output lanes zero-padded to C_PAD for lane-dense stores.
    w1 = dense(next(keys), (HIDDEN, 512))
    w2 = dense(next(keys), (512, NUM_CLASSES))
    p["w1"] = w1
    p["b1"] = jnp.zeros((1, 512), jnp.float32)
    p["w2"] = jnp.pad(w2, ((0, 0), (0, C_PAD - NUM_CLASSES)))
    p["b2"] = jnp.zeros((1, C_PAD), jnp.float32)
    return p


# ---------------- forward pass ----------------
def roberta_classifier_forward(params, input_ids, attention_mask):
    B, S = input_ids.shape
    mask_f = attention_mask.astype(jnp.float32)

    # RoBERTa-style position ids: cumsum over non-pad tokens, offset by padding_idx.
    not_pad = (input_ids != PAD_IDX).astype(jnp.int32)
    position_ids = jnp.cumsum(not_pad, axis=1) * not_pad + PAD_IDX

    # Embedding gathers are plain-JAX glue; everything after runs in one kernel.
    x_emb = (params["word_emb"][input_ids]
             + params["pos_emb"][position_ids]
             + params["type_emb"][0][None, None, :]).reshape(B * S, HIDDEN)

    logits_padded = fused_roberta_kernel_call(x_emb, mask_f, params)  # (B, C_PAD)
    return logits_padded[:, :NUM_CLASSES]


if __name__ == "__main__":
    key = jax.random.PRNGKey(0)
    pkey, ikey = jax.random.split(key)
    params = init_params(pkey)

    B, S = 2, 8
    input_ids = jax.random.randint(ikey, (B, S), 2, VOCAB)
    input_ids = input_ids.at[:, 0].set(0)          # <s> / CLS token id
    attention_mask = jnp.ones((B, S), dtype=jnp.int32)

    forward = jax.jit(roberta_classifier_forward)
    logits = forward(params, input_ids, attention_mask)
    logits = jax.block_until_ready(logits)
    assert logits.shape == (B, NUM_CLASSES) and logits.dtype == jnp.float32
    assert bool(jnp.all(jnp.isfinite(logits)))
    print("KERNEL_OK")
</pallas_src>

<mosaic_0001>
module attributes {stable_mosaic.version = 11 : i64} {
  func.func @kernel(%arg0: memref<16x32xf32, #tpu.memory_space<vmem>>, %arg1: memref<2x8xf32, #tpu.memory_space<vmem>>, %arg2: memref<1x32xf32, #tpu.memory_space<vmem>>, %arg3: memref<1x32xf32, #tpu.memory_space<vmem>>, %arg4: memref<2x32x96xf32, #tpu.memory_space<vmem>>, %arg5: memref<2x1x96xf32, #tpu.memory_space<vmem>>, %arg6: memref<2x32x32xf32, #tpu.memory_space<vmem>>, %arg7: memref<2x1x32xf32, #tpu.memory_space<vmem>>, %arg8: memref<2x1x32xf32, #tpu.memory_space<vmem>>, %arg9: memref<2x1x32xf32, #tpu.memory_space<vmem>>, %arg10: memref<2x32x64xf32, #tpu.memory_space<vmem>>, %arg11: memref<2x1x64xf32, #tpu.memory_space<vmem>>, %arg12: memref<2x64x32xf32, #tpu.memory_space<vmem>>, %arg13: memref<2x1x32xf32, #tpu.memory_space<vmem>>, %arg14: memref<2x1x32xf32, #tpu.memory_space<vmem>>, %arg15: memref<2x1x32xf32, #tpu.memory_space<vmem>>, %arg16: memref<32x512xf32, #tpu.memory_space<vmem>>, %arg17: memref<1x512xf32, #tpu.memory_space<vmem>>, %arg18: memref<512x128xf32, #tpu.memory_space<vmem>>, %arg19: memref<1x128xf32, #tpu.memory_space<vmem>>, %arg20: memref<2x128xf32, #tpu.memory_space<vmem>>) attributes {dimension_semantics = [], scalar_prefetch = 0 : i64, scratch_operands = 0 : i64, tpu.core_type = #tpu.core_type<tc>} {
    %c0 = arith.constant 0 : index
    %c0_0 = arith.constant 0 : index
    %0 = vector.load %arg0[%c0, %c0_0] : memref<16x32xf32, #tpu.memory_space<vmem>>, vector<16x32xf32>
    %c0_1 = arith.constant 0 : index
    %c0_2 = arith.constant 0 : index
    %1 = vector.load %arg2[%c0_1, %c0_2] : memref<1x32xf32, #tpu.memory_space<vmem>>, vector<1x32xf32>
    %c0_3 = arith.constant 0 : index
    %c0_4 = arith.constant 0 : index
    %2 = vector.load %arg3[%c0_3, %c0_4] : memref<1x32xf32, #tpu.memory_space<vmem>>, vector<1x32xf32>
    %cst = arith.constant dense<0.000000e+00> : vector<16xf32>
    %3 = vector.multi_reduction <add>, %0, %cst [1] : vector<16x32xf32> to vector<16xf32>
    %4 = vector.shape_cast %3 : vector<16xf32> to vector<16x1xf32>
    %cst_5 = arith.constant 3.200000e+01 : f32
    %5 = vector.broadcast %cst_5 : f32 to vector<16x1xf32>
    %6 = arith.divf %4, %5 : vector<16x1xf32>
    %7 = vector.broadcast %6 : vector<16x1xf32> to vector<16x32xf32>
    %8 = arith.subf %0, %7 : vector<16x32xf32>
    %9 = arith.mulf %8, %8 : vector<16x32xf32>
    %cst_6 = arith.constant dense<0.000000e+00> : vector<16xf32>
    %10 = vector.multi_reduction <add>, %9, %cst_6 [1] : vector<16x32xf32> to vector<16xf32>
    %11 = vector.shape_cast %10 : vector<16xf32> to vector<16x1xf32>
    %cst_7 = arith.constant 3.200000e+01 : f32
    %12 = vector.broadcast %cst_7 : f32 to vector<16x1xf32>
    %13 = arith.divf %11, %12 : vector<16x1xf32>
    %14 = vector.broadcast %6 : vector<16x1xf32> to vector<16x32xf32>
    %15 = arith.subf %0, %14 : vector<16x32xf32>
    %cst_8 = arith.constant 9.99999974E-6 : f32
    %16 = vector.broadcast %cst_8 : f32 to vector<16x1xf32>
    %17 = arith.addf %13, %16 : vector<16x1xf32>
    %18 = math.rsqrt %17 : vector<16x1xf32>
    %19 = vector.broadcast %18 : vector<16x1xf32> to vector<16x32xf32>
    %20 = arith.mulf %15, %19 : vector<16x32xf32>
    %21 = vector.broadcast %1 : vector<1x32xf32> to vector<16x32xf32>
    %22 = arith.mulf %20, %21 : vector<16x32xf32>
    %23 = vector.broadcast %2 : vector<1x32xf32> to vector<16x32xf32>
    %24 = arith.addf %22, %23 : vector<16x32xf32>
    %c0_9 = arith.constant 0 : index
    %c0_10 = arith.constant 0 : index
    %25 = vector.load %arg1[%c0_9, %c0_10] : memref<2x8xf32, #tpu.memory_space<vmem>>, vector<2x8xf32>
    %cst_11 = arith.constant 1.000000e+00 : f32
    %26 = vector.broadcast %cst_11 : f32 to vector<2x8xf32>
    %27 = arith.subf %26, %25 : vector<2x8xf32>
    %cst_12 = arith.constant -1.000000e+09 : f32
    %28 = vector.broadcast %cst_12 : f32 to vector<2x8xf32>
    %29 = arith.mulf %27, %28 : vector<2x8xf32>
    %30 = vector.shape_cast %29 : vector<2x8xf32> to vector<2x1x8xf32>
    %c0_13 = arith.constant 0 : index
    %c0_14 = arith.constant 0 : index
    %c0_15 = arith.constant 0 : index
    %31 = vector.load %arg4[%c0_13, %c0_14, %c0_15] : memref<2x32x96xf32, #tpu.memory_space<vmem>>, vector<1x32x96xf32>
    %32 = vector.shape_cast %31 : vector<1x32x96xf32> to vector<32x96xf32>
    %cst_16 = arith.constant dense<0.000000e+00> : vector<16x96xf32>
    %33 = tpu.matmul %24, %32, %cst_16 {dimension_numbers = #tpu.dot_dimension_numbers<[1], [0], [0], [1], [0, 0, 1, 1], [], []>} : vector<16x32xf32>, vector<32x96xf32>, vector<16x96xf32> -> vector<16x96xf32>
    %c0_17 = arith.constant 0 : index
    %c0_18 = arith.constant 0 : index
    %c0_19 = arith.constant 0 : index
    %34 = vector.load %arg5[%c0_17, %c0_18, %c0_19] : memref<2x1x96xf32, #tpu.memory_space<vmem>>, vector<1x1x96xf32>
    %35 = vector.shape_cast %34 : vector<1x1x96xf32> to vector<1x96xf32>
    %36 = vector.broadcast %35 : vector<1x96xf32> to vector<16x96xf32>
    %37 = arith.addf %33, %36 : vector<16x96xf32>
    %c0_20 = arith.constant 0 : index
    %c0_21 = arith.constant 0 : index
    %c0_22 = arith.constant 0 : index
    %38 = vector.load %arg6[%c0_20, %c0_21, %c0_22] : memref<2x32x32xf32, #tpu.memory_space<vmem>>, vector<1x32x32xf32>
    %39 = vector.shape_cast %38 : vector<1x32x32xf32> to vector<32x32xf32>
    %40 = vector.extract_strided_slice %37 {offsets = [0, 0], sizes = [16, 16], strides = [1, 1]} : vector<16x96xf32> to vector<16x16xf32>
    %41 = vector.shape_cast %40 : vector<16x16xf32> to vector<2x8x16xf32>
    %42 = vector.extract_strided_slice %37 {offsets = [0, 32], sizes = [16, 16], strides = [1, 1]} : vector<16x96xf32> to vector<16x16xf32>
    %43 = vector.shape_cast %42 : vector<16x16xf32> to vector<2x8x16xf32>
    %44 = vector.extract_strided_slice %37 {offsets = [0, 64], sizes = [16, 16], strides = [1, 1]} : vector<16x96xf32> to vector<16x16xf32>
    %45 = vector.shape_cast %44 : vector<16x16xf32> to vector<2x8x16xf32>
    "tpu.trace_start"() <{level = 10 : i32, message = "bqd,bkd->bqk"}> : () -> ()
    %cst_23 = arith.constant dense<0.000000e+00> : vector<2x8x8xf32>
    %46 = tpu.matmul %41, %43, %cst_23 {dimension_numbers = #tpu.dot_dimension_numbers<[2], [2], [1], [1], [0, 0, 0, 1, 1, 1], [0], [0]>} : vector<2x8x16xf32>, vector<2x8x16xf32>, vector<2x8x8xf32> -> vector<2x8x8xf32>
    "tpu.trace_stop"() : () -> ()
    %cst_24 = arith.constant 2.500000e-01 : f32
    %47 = vector.broadcast %cst_24 : f32 to vector<2x8x8xf32>
    %48 = arith.mulf %46, %47 : vector<2x8x8xf32>
    %49 = vector.broadcast %30 : vector<2x1x8xf32> to vector<2x8x8xf32>
    %50 = arith.addf %48, %49 : vector<2x8x8xf32>
    %cst_25 = arith.constant dense<0xFF800000> : vector<2x8xf32>
    %51 = vector.multi_reduction <maximumf>, %50, %cst_25 [2] : vector<2x8x8xf32> to vector<2x8xf32>
    %52 = vector.shape_cast %51 : vector<2x8xf32> to vector<2x8x1xf32>
    %53 = vector.broadcast %52 : vector<2x8x1xf32> to vector<2x8x8xf32>
    %54 = arith.subf %50, %53 : vector<2x8x8xf32>
    %55 = math.exp %54 : vector<2x8x8xf32>
    %cst_26 = arith.constant dense<0.000000e+00> : vector<2x8xf32>
    %56 = vector.multi_reduction <add>, %55, %cst_26 [2] : vector<2x8x8xf32> to vector<2x8xf32>
    %57 = vector.shape_cast %56 : vector<2x8xf32> to vector<2x8x1xf32>
    %58 = tpu.reciprocal %57 {approx = true} : vector<2x8x1xf32> -> vector<2x8x1xf32>
    %59 = vector.broadcast %58 : vector<2x8x1xf32> to vector<2x8x8xf32>
    %60 = arith.mulf %55, %59 : vector<2x8x8xf32>
    "tpu.trace_start"() <{level = 10 : i32, message = "bqk,bkd->bqd"}> : () -> ()
    %cst_27 = arith.constant dense<0.000000e+00> : vector<2x8x16xf32>
    %61 = tpu.matmul %60, %45, %cst_27 {dimension_numbers = #tpu.dot_dimension_numbers<[2], [1], [1], [2], [0, 0, 0, 1, 1, 2], [0], [0]>} : vector<2x8x8xf32>, vector<2x8x16xf32>, vector<2x8x16xf32> -> vector<2x8x16xf32>
    "tpu.trace_stop"() : () -> ()
    %62 = vector.shape_cast %61 : vector<2x8x16xf32> to vector<16x16xf32>
    %63 = vector.extract_strided_slice %39 {offsets = [0, 0], sizes = [16, 32], strides = [1, 1]} : vector<32x32xf32> to vector<16x32xf32>
    %cst_28 = arith.constant dense<0.000000e+00> : vector<16x32xf32>
    %64 = tpu.matmul %62, %63, %cst_28 {dimension_numbers = #tpu.dot_dimension_numbers<[1], [0], [0], [1], [0, 0, 1, 1], [], []>} : vector<16x16xf32>, vector<16x32xf32>, vector<16x32xf32> -> vector<16x32xf32>
    %65 = vector.extract_strided_slice %37 {offsets = [0, 16], sizes = [16, 16], strides = [1, 1]} : vector<16x96xf32> to vector<16x16xf32>
    %66 = vector.shape_cast %65 : vector<16x16xf32> to vector<2x8x16xf32>
    %67 = vector.extract_strided_slice %37 {offsets = [0, 48], sizes = [16, 16], strides = [1, 1]} : vector<16x96xf32> to vector<16x16xf32>
    %68 = vector.shape_cast %67 : vector<16x16xf32> to vector<2x8x16xf32>
    %69 = vector.extract_strided_slice %37 {offsets = [0, 80], sizes = [16, 16], strides = [1, 1]} : vector<16x96xf32> to vector<16x16xf32>
    %70 = vector.shape_cast %69 : vector<16x16xf32> to vector<2x8x16xf32>
    "tpu.trace_start"() <{level = 10 : i32, message = "bqd,bkd->bqk"}> : () -> ()
    %cst_29 = arith.constant dense<0.000000e+00> : vector<2x8x8xf32>
    %71 = tpu.matmul %66, %68, %cst_29 {dimension_numbers = #tpu.dot_dimension_numbers<[2], [2], [1], [1], [0, 0, 0, 1, 1, 1], [0], [0]>} : vector<2x8x16xf32>, vector<2x8x16xf32>, vector<2x8x8xf32> -> vector<2x8x8xf32>
    "tpu.trace_stop"() : () -> ()
    %cst_30 = arith.constant 2.500000e-01 : f32
    %72 = vector.broadcast %cst_30 : f32 to vector<2x8x8xf32>
    %73 = arith.mulf %71, %72 : vector<2x8x8xf32>
    %74 = vector.broadcast %30 : vector<2x1x8xf32> to vector<2x8x8xf32>
    %75 = arith.addf %73, %74 : vector<2x8x8xf32>
    %cst_31 = arith.constant dense<0xFF800000> : vector<2x8xf32>
    %76 = vector.multi_reduction <maximumf>, %75, %cst_31 [2] : vector<2x8x8xf32> to vector<2x8xf32>
    %77 = vector.shape_cast %76 : vector<2x8xf32> to vector<2x8x1xf32>
    %78 = vector.broadcast %77 : vector<2x8x1xf32> to vector<2x8x8xf32>
    %79 = arith.subf %75, %78 : vector<2x8x8xf32>
    %80 = math.exp %79 : vector<2x8x8xf32>
    %cst_32 = arith.constant dense<0.000000e+00> : vector<2x8xf32>
    %81 = vector.multi_reduction <add>, %80, %cst_32 [2] : vector<2x8x8xf32> to vector<2x8xf32>
    %82 = vector.shape_cast %81 : vector<2x8xf32> to vector<2x8x1xf32>
    %83 = tpu.reciprocal %82 {approx = true} : vector<2x8x1xf32> -> vector<2x8x1xf32>
    %84 = vector.broadcast %83 : vector<2x8x1xf32> to vector<2x8x8xf32>
    %85 = arith.mulf %80, %84 : vector<2x8x8xf32>
    "tpu.trace_start"() <{level = 10 : i32, message = "bqk,bkd->bqd"}> : () -> ()
    %cst_33 = arith.constant dense<0.000000e+00> : vector<2x8x16xf32>
    %86 = tpu.matmul %85, %70, %cst_33 {dimension_numbers = #tpu.dot_dimension_numbers<[2], [1], [1], [2], [0, 0, 0, 1, 1, 2], [0], [0]>} : vector<2x8x8xf32>, vector<2x8x16xf32>, vector<2x8x16xf32> -> vector<2x8x16xf32>
    "tpu.trace_stop"() : () -> ()
    %87 = vector.shape_cast %86 : vector<2x8x16xf32> to vector<16x16xf32>
    %88 = vector.extract_strided_slice %39 {offsets = [16, 0], sizes = [16, 32], strides = [1, 1]} : vector<32x32xf32> to vector<16x32xf32>
    %cst_34 = arith.constant dense<0.000000e+00> : vector<16x32xf32>
    %89 = tpu.matmul %87, %88, %cst_34 {dimension_numbers = #tpu.dot_dimension_numbers<[1], [0], [0], [1], [0, 0, 1, 1], [], []>} : vector<16x16xf32>, vector<16x32xf32>, vector<16x32xf32> -> vector<16x32xf32>
    %90 = arith.addf %64, %89 : vector<16x32xf32>
    %c0_35 = arith.constant 0 : index
    %c0_36 = arith.constant 0 : index
    %c0_37 = arith.constant 0 : index
    %91 = vector.load %arg7[%c0_35, %c0_36, %c0_37] : memref<2x1x32xf32, #tpu.memory_space<vmem>>, vector<1x1x32xf32>
    %92 = vector.shape_cast %91 : vector<1x1x32xf32> to vector<1x32xf32>
    %93 = vector.broadcast %92 : vector<1x32xf32> to vector<16x32xf32>
    %94 = arith.addf %90, %93 : vector<16x32xf32>
    %95 = arith.addf %94, %24 : vector<16x32xf32>
    %c0_38 = arith.constant 0 : index
    %c0_39 = arith.constant 0 : index
    %c0_40 = arith.constant 0 : index
    %96 = vector.load %arg8[%c0_38, %c0_39, %c0_40] : memref<2x1x32xf32, #tpu.memory_space<vmem>>, vector<1x1x32xf32>
    %97 = vector.shape_cast %96 : vector<1x1x32xf32> to vector<1x32xf32>
    %c0_41 = arith.constant 0 : index
    %c0_42 = arith.constant 0 : index
    %c0_43 = arith.constant 0 : index
    %98 = vector.load %arg9[%c0_41, %c0_42, %c0_43] : memref<2x1x32xf32, #tpu.memory_space<vmem>>, vector<1x1x32xf32>
    %99 = vector.shape_cast %98 : vector<1x1x32xf32> to vector<1x32xf32>
    %cst_44 = arith.constant dense<0.000000e+00> : vector<16xf32>
    %100 = vector.multi_reduction <add>, %95, %cst_44 [1] : vector<16x32xf32> to vector<16xf32>
    %101 = vector.shape_cast %100 : vector<16xf32> to vector<16x1xf32>
    %cst_45 = arith.constant 3.200000e+01 : f32
    %102 = vector.broadcast %cst_45 : f32 to vector<16x1xf32>
    %103 = arith.divf %101, %102 : vector<16x1xf32>
    %104 = vector.broadcast %103 : vector<16x1xf32> to vector<16x32xf32>
    %105 = arith.subf %95, %104 : vector<16x32xf32>
    %106 = arith.mulf %105, %105 : vector<16x32xf32>
    %cst_46 = arith.constant dense<0.000000e+00> : vector<16xf32>
    %107 = vector.multi_reduction <add>, %106, %cst_46 [1] : vector<16x32xf32> to vector<16xf32>
    %108 = vector.shape_cast %107 : vector<16xf32> to vector<16x1xf32>
    %cst_47 = arith.constant 3.200000e+01 : f32
    %109 = vector.broadcast %cst_47 : f32 to vector<16x1xf32>
    %110 = arith.divf %108, %109 : vector<16x1xf32>
    %111 = vector.broadcast %103 : vector<16x1xf32> to vector<16x32xf32>
    %112 = arith.subf %95, %111 : vector<16x32xf32>
    %cst_48 = arith.constant 9.99999974E-6 : f32
    %113 = vector.broadcast %cst_48 : f32 to vector<16x1xf32>
    %114 = arith.addf %110, %113 : vector<16x1xf32>
    %115 = math.rsqrt %114 : vector<16x1xf32>
    %116 = vector.broadcast %115 : vector<16x1xf32> to vector<16x32xf32>
    %117 = arith.mulf %112, %116 : vector<16x32xf32>
    %118 = vector.broadcast %97 : vector<1x32xf32> to vector<16x32xf32>
    %119 = arith.mulf %117, %118 : vector<16x32xf32>
    %120 = vector.broadcast %99 : vector<1x32xf32> to vector<16x32xf32>
    %121 = arith.addf %119, %120 : vector<16x32xf32>
    %c0_49 = arith.constant 0 : index
    %c0_50 = arith.constant 0 : index
    %c0_51 = arith.constant 0 : index
    %122 = vector.load %arg10[%c0_49, %c0_50, %c0_51] : memref<2x32x64xf32, #tpu.memory_space<vmem>>, vector<1x32x64xf32>
    %123 = vector.shape_cast %122 : vector<1x32x64xf32> to vector<32x64xf32>
    %cst_52 = arith.constant dense<0.000000e+00> : vector<16x64xf32>
    %124 = tpu.matmul %121, %123, %cst_52 {dimension_numbers = #tpu.dot_dimension_numbers<[1], [0], [0], [1], [0, 0, 1, 1], [], []>} : vector<16x32xf32>, vector<32x64xf32>, vector<16x64xf32> -> vector<16x64xf32>
    %c0_53 = arith.constant 0 : index
    %c0_54 = arith.constant 0 : index
    %c0_55 = arith.constant 0 : index
    %125 = vector.load %arg11[%c0_53, %c0_54, %c0_55] : memref<2x1x64xf32, #tpu.memory_space<vmem>>, vector<1x1x64xf32>
    %126 = vector.shape_cast %125 : vector<1x1x64xf32> to vector<1x64xf32>
    %127 = vector.broadcast %126 : vector<1x64xf32> to vector<16x64xf32>
    %128 = arith.addf %124, %127 : vector<16x64xf32>
    %129 = arith.mulf %128, %128 : vector<16x64xf32>
    %130 = arith.mulf %128, %129 : vector<16x64xf32>
    %cst_56 = arith.constant 4.471500e-02 : f32
    %131 = vector.broadcast %cst_56 : f32 to vector<16x64xf32>
    %132 = arith.mulf %131, %130 : vector<16x64xf32>
    %133 = arith.addf %128, %132 : vector<16x64xf32>
    %cst_57 = arith.constant 0.797884583 : f32
    %134 = vector.broadcast %cst_57 : f32 to vector<16x64xf32>
    %135 = arith.mulf %134, %133 : vector<16x64xf32>
    %136 = math.tanh %135 : vector<16x64xf32>
    %cst_58 = arith.constant 1.000000e+00 : f32
    %137 = vector.broadcast %cst_58 : f32 to vector<16x64xf32>
    %138 = arith.addf %137, %136 : vector<16x64xf32>
    %cst_59 = arith.constant 5.000000e-01 : f32
    %139 = vector.broadcast %cst_59 : f32 to vector<16x64xf32>
    %140 = arith.mulf %139, %138 : vector<16x64xf32>
    %141 = arith.mulf %128, %140 : vector<16x64xf32>
    %c0_60 = arith.constant 0 : index
    %c0_61 = arith.constant 0 : index
    %c0_62 = arith.constant 0 : index
    %142 = vector.load %arg12[%c0_60, %c0_61, %c0_62] : memref<2x64x32xf32, #tpu.memory_space<vmem>>, vector<1x64x32xf32>
    %143 = vector.shape_cast %142 : vector<1x64x32xf32> to vector<64x32xf32>
    %cst_63 = arith.constant dense<0.000000e+00> : vector<16x32xf32>
    %144 = tpu.matmul %141, %143, %cst_63 {dimension_numbers = #tpu.dot_dimension_numbers<[1], [0], [0], [1], [0, 0, 1, 1], [], []>} : vector<16x64xf32>, vector<64x32xf32>, vector<16x32xf32> -> vector<16x32xf32>
    %c0_64 = arith.constant 0 : index
    %c0_65 = arith.constant 0 : index
    %c0_66 = arith.constant 0 : index
    %145 = vector.load %arg13[%c0_64, %c0_65, %c0_66] : memref<2x1x32xf32, #tpu.memory_space<vmem>>, vector<1x1x32xf32>
    %146 = vector.shape_cast %145 : vector<1x1x32xf32> to vector<1x32xf32>
    %147 = vector.broadcast %146 : vector<1x32xf32> to vector<16x32xf32>
    %148 = arith.addf %144, %147 : vector<16x32xf32>
    %149 = arith.addf %148, %121 : vector<16x32xf32>
    %c0_67 = arith.constant 0 : index
    %c0_68 = arith.constant 0 : index
    %c0_69 = arith.constant 0 : index
    %150 = vector.load %arg14[%c0_67, %c0_68, %c0_69] : memref<2x1x32xf32, #tpu.memory_space<vmem>>, vector<1x1x32xf32>
    %151 = vector.shape_cast %150 : vector<1x1x32xf32> to vector<1x32xf32>
    %c0_70 = arith.constant 0 : index
    %c0_71 = arith.constant 0 : index
    %c0_72 = arith.constant 0 : index
    %152 = vector.load %arg15[%c0_70, %c0_71, %c0_72] : memref<2x1x32xf32, #tpu.memory_space<vmem>>, vector<1x1x32xf32>
    %153 = vector.shape_cast %152 : vector<1x1x32xf32> to vector<1x32xf32>
    %cst_73 = arith.constant dense<0.000000e+00> : vector<16xf32>
    %154 = vector.multi_reduction <add>, %149, %cst_73 [1] : vector<16x32xf32> to vector<16xf32>
    %155 = vector.shape_cast %154 : vector<16xf32> to vector<16x1xf32>
    %cst_74 = arith.constant 3.200000e+01 : f32
    %156 = vector.broadcast %cst_74 : f32 to vector<16x1xf32>
    %157 = arith.divf %155, %156 : vector<16x1xf32>
    %158 = vector.broadcast %157 : vector<16x1xf32> to vector<16x32xf32>
    %159 = arith.subf %149, %158 : vector<16x32xf32>
    %160 = arith.mulf %159, %159 : vector<16x32xf32>
    %cst_75 = arith.constant dense<0.000000e+00> : vector<16xf32>
    %161 = vector.multi_reduction <add>, %160, %cst_75 [1] : vector<16x32xf32> to vector<16xf32>
    %162 = vector.shape_cast %161 : vector<16xf32> to vector<16x1xf32>
    %cst_76 = arith.constant 3.200000e+01 : f32
    %163 = vector.broadcast %cst_76 : f32 to vector<16x1xf32>
    %164 = arith.divf %162, %163 : vector<16x1xf32>
    %165 = vector.broadcast %157 : vector<16x1xf32> to vector<16x32xf32>
    %166 = arith.subf %149, %165 : vector<16x32xf32>
    %cst_77 = arith.constant 9.99999974E-6 : f32
    %167 = vector.broadcast %cst_77 : f32 to vector<16x1xf32>
    %168 = arith.addf %164, %167 : vector<16x1xf32>
    %169 = math.rsqrt %168 : vector<16x1xf32>
    %170 = vector.broadcast %169 : vector<16x1xf32> to vector<16x32xf32>
    %171 = arith.mulf %166, %170 : vector<16x32xf32>
    %172 = vector.broadcast %151 : vector<1x32xf32> to vector<16x32xf32>
    %173 = arith.mulf %171, %172 : vector<16x32xf32>
    %174 = vector.broadcast %153 : vector<1x32xf32> to vector<16x32xf32>
    %175 = arith.addf %173, %174 : vector<16x32xf32>
    %c1 = arith.constant 1 : index
    %c0_78 = arith.constant 0 : index
    %c0_79 = arith.constant 0 : index
    %176 = vector.load %arg4[%c1, %c0_78, %c0_79] : memref<2x32x96xf32, #tpu.memory_space<vmem>>, vector<1x32x96xf32>
    %177 = vector.shape_cast %176 : vector<1x32x96xf32> to vector<32x96xf32>
    %cst_80 = arith.constant dense<0.000000e+00> : vector<16x96xf32>
    %178 = tpu.matmul %175, %177, %cst_80 {dimension_numbers = #tpu.dot_dimension_numbers<[1], [0], [0], [1], [0, 0, 1, 1], [], []>} : vector<16x32xf32>, vector<32x96xf32>, vector<16x96xf32> -> vector<16x96xf32>
    %c1_81 = arith.constant 1 : index
    %c0_82 = arith.constant 0 : index
    %c0_83 = arith.constant 0 : index
    %179 = vector.load %arg5[%c1_81, %c0_82, %c0_83] : memref<2x1x96xf32, #tpu.memory_space<vmem>>, vector<1x1x96xf32>
    %180 = vector.shape_cast %179 : vector<1x1x96xf32> to vector<1x96xf32>
    %181 = vector.broadcast %180 : vector<1x96xf32> to vector<16x96xf32>
    %182 = arith.addf %178, %181 : vector<16x96xf32>
    %c1_84 = arith.constant 1 : index
    %c0_85 = arith.constant 0 : index
    %c0_86 = arith.constant 0 : index
    %183 = vector.load %arg6[%c1_84, %c0_85, %c0_86] : memref<2x32x32xf32, #tpu.memory_space<vmem>>, vector<1x32x32xf32>
    %184 = vector.shape_cast %183 : vector<1x32x32xf32> to vector<32x32xf32>
    %185 = vector.extract_strided_slice %182 {offsets = [0, 0], sizes = [16, 16], strides = [1, 1]} : vector<16x96xf32> to vector<16x16xf32>
    %186 = vector.shape_cast %185 : vector<16x16xf32> to vector<2x8x16xf32>
    %187 = vector.extract_strided_slice %182 {offsets = [0, 32], sizes = [16, 16], strides = [1, 1]} : vector<16x96xf32> to vector<16x16xf32>
    %188 = vector.shape_cast %187 : vector<16x16xf32> to vector<2x8x16xf32>
    %189 = vector.extract_strided_slice %182 {offsets = [0, 64], sizes = [16, 16], strides = [1, 1]} : vector<16x96xf32> to vector<16x16xf32>
    %190 = vector.shape_cast %189 : vector<16x16xf32> to vector<2x8x16xf32>
    "tpu.trace_start"() <{level = 10 : i32, message = "bqd,bkd->bqk"}> : () -> ()
    %cst_87 = arith.constant dense<0.000000e+00> : vector<2x8x8xf32>
    %191 = tpu.matmul %186, %188, %cst_87 {dimension_numbers = #tpu.dot_dimension_numbers<[2], [2], [1], [1], [0, 0, 0, 1, 1, 1], [0], [0]>} : vector<2x8x16xf32>, vector<2x8x16xf32>, vector<2x8x8xf32> -> vector<2x8x8xf32>
    "tpu.trace_stop"() : () -> ()
    %cst_88 = arith.constant 2.500000e-01 : f32
    %192 = vector.broadcast %cst_88 : f32 to vector<2x8x8xf32>
    %193 = arith.mulf %191, %192 : vector<2x8x8xf32>
    %194 = vector.broadcast %30 : vector<2x1x8xf32> to vector<2x8x8xf32>
    %195 = arith.addf %193, %194 : vector<2x8x8xf32>
    %cst_89 = arith.constant dense<0xFF800000> : vector<2x8xf32>
    %196 = vector.multi_reduction <maximumf>, %195, %cst_89 [2] : vector<2x8x8xf32> to vector<2x8xf32>
    %197 = vector.shape_cast %196 : vector<2x8xf32> to vector<2x8x1xf32>
    %198 = vector.broadcast %197 : vector<2x8x1xf32> to vector<2x8x8xf32>
    %199 = arith.subf %195, %198 : vector<2x8x8xf32>
    %200 = math.exp %199 : vector<2x8x8xf32>
    %cst_90 = arith.constant dense<0.000000e+00> : vector<2x8xf32>
    %201 = vector.multi_reduction <add>, %200, %cst_90 [2] : vector<2x8x8xf32> to vector<2x8xf32>
    %202 = vector.shape_cast %201 : vector<2x8xf32> to vector<2x8x1xf32>
    %203 = tpu.reciprocal %202 {approx = true} : vector<2x8x1xf32> -> vector<2x8x1xf32>
    %204 = vector.broadcast %203 : vector<2x8x1xf32> to vector<2x8x8xf32>
    %205 = arith.mulf %200, %204 : vector<2x8x8xf32>
    "tpu.trace_start"() <{level = 10 : i32, message = "bqk,bkd->bqd"}> : () -> ()
    %cst_91 = arith.constant dense<0.000000e+00> : vector<2x8x16xf32>
    %206 = tpu.matmul %205, %190, %cst_91 {dimension_numbers = #tpu.dot_dimension_numbers<[2], [1], [1], [2], [0, 0, 0, 1, 1, 2], [0], [0]>} : vector<2x8x8xf32>, vector<2x8x16xf32>, vector<2x8x16xf32> -> vector<2x8x16xf32>
    "tpu.trace_stop"() : () -> ()
    %207 = vector.shape_cast %206 : vector<2x8x16xf32> to vector<16x16xf32>
    %208 = vector.extract_strided_slice %184 {offsets = [0, 0], sizes = [16, 32], strides = [1, 1]} : vector<32x32xf32> to vector<16x32xf32>
    %cst_92 = arith.constant dense<0.000000e+00> : vector<16x32xf32>
    %209 = tpu.matmul %207, %208, %cst_92 {dimension_numbers = #tpu.dot_dimension_numbers<[1], [0], [0], [1], [0, 0, 1, 1], [], []>} : vector<16x16xf32>, vector<16x32xf32>, vector<16x32xf32> -> vector<16x32xf32>
    %210 = vector.extract_strided_slice %182 {offsets = [0, 16], sizes = [16, 16], strides = [1, 1]} : vector<16x96xf32> to vector<16x16xf32>
    %211 = vector.shape_cast %210 : vector<16x16xf32> to vector<2x8x16xf32>
    %212 = vector.extract_strided_slice %182 {offsets = [0, 48], sizes = [16, 16], strides = [1, 1]} : vector<16x96xf32> to vector<16x16xf32>
    %213 = vector.shape_cast %212 : vector<16x16xf32> to vector<2x8x16xf32>
    %214 = vector.extract_strided_slice %182 {offsets = [0, 80], sizes = [16, 16], strides = [1, 1]} : vector<16x96xf32> to vector<16x16xf32>
    %215 = vector.shape_cast %214 : vector<16x16xf32> to vector<2x8x16xf32>
    "tpu.trace_start"() <{level = 10 : i32, message = "bqd,bkd->bqk"}> : () -> ()
    %cst_93 = arith.constant dense<0.000000e+00> : vector<2x8x8xf32>
    %216 = tpu.matmul %211, %213, %cst_93 {dimension_numbers = #tpu.dot_dimension_numbers<[2], [2], [1], [1], [0, 0, 0, 1, 1, 1], [0], [0]>} : vector<2x8x16xf32>, vector<2x8x16xf32>, vector<2x8x8xf32> -> vector<2x8x8xf32>
    "tpu.trace_stop"() : () -> ()
    %cst_94 = arith.constant 2.500000e-01 : f32
    %217 = vector.broadcast %cst_94 : f32 to vector<2x8x8xf32>
    %218 = arith.mulf %216, %217 : vector<2x8x8xf32>
    %219 = vector.broadcast %30 : vector<2x1x8xf32> to vector<2x8x8xf32>
    %220 = arith.addf %218, %219 : vector<2x8x8xf32>
    %cst_95 = arith.constant dense<0xFF800000> : vector<2x8xf32>
    %221 = vector.multi_reduction <maximumf>, %220, %cst_95 [2] : vector<2x8x8xf32> to vector<2x8xf32>
    %222 = vector.shape_cast %221 : vector<2x8xf32> to vector<2x8x1xf32>
    %223 = vector.broadcast %222 : vector<2x8x1xf32> to vector<2x8x8xf32>
    %224 = arith.subf %220, %223 : vector<2x8x8xf32>
    %225 = math.exp %224 : vector<2x8x8xf32>
    %cst_96 = arith.constant dense<0.000000e+00> : vector<2x8xf32>
    %226 = vector.multi_reduction <add>, %225, %cst_96 [2] : vector<2x8x8xf32> to vector<2x8xf32>
    %227 = vector.shape_cast %226 : vector<2x8xf32> to vector<2x8x1xf32>
    %228 = tpu.reciprocal %227 {approx = true} : vector<2x8x1xf32> -> vector<2x8x1xf32>
    %229 = vector.broadcast %228 : vector<2x8x1xf32> to vector<2x8x8xf32>
    %230 = arith.mulf %225, %229 : vector<2x8x8xf32>
    "tpu.trace_start"() <{level = 10 : i32, message = "bqk,bkd->bqd"}> : () -> ()
    %cst_97 = arith.constant dense<0.000000e+00> : vector<2x8x16xf32>
    %231 = tpu.matmul %230, %215, %cst_97 {dimension_numbers = #tpu.dot_dimension_numbers<[2], [1], [1], [2], [0, 0, 0, 1, 1, 2], [0], [0]>} : vector<2x8x8xf32>, vector<2x8x16xf32>, vector<2x8x16xf32> -> vector<2x8x16xf32>
    "tpu.trace_stop"() : () -> ()
    %232 = vector.shape_cast %231 : vector<2x8x16xf32> to vector<16x16xf32>
    %233 = vector.extract_strided_slice %184 {offsets = [16, 0], sizes = [16, 32], strides = [1, 1]} : vector<32x32xf32> to vector<16x32xf32>
    %cst_98 = arith.constant dense<0.000000e+00> : vector<16x32xf32>
    %234 = tpu.matmul %232, %233, %cst_98 {dimension_numbers = #tpu.dot_dimension_numbers<[1], [0], [0], [1], [0, 0, 1, 1], [], []>} : vector<16x16xf32>, vector<16x32xf32>, vector<16x32xf32> -> vector<16x32xf32>
    %235 = arith.addf %209, %234 : vector<16x32xf32>
    %c1_99 = arith.constant 1 : index
    %c0_100 = arith.constant 0 : index
    %c0_101 = arith.constant 0 : index
    %236 = vector.load %arg7[%c1_99, %c0_100, %c0_101] : memref<2x1x32xf32, #tpu.memory_space<vmem>>, vector<1x1x32xf32>
    %237 = vector.shape_cast %236 : vector<1x1x32xf32> to vector<1x32xf32>
    %238 = vector.broadcast %237 : vector<1x32xf32> to vector<16x32xf32>
    %239 = arith.addf %235, %238 : vector<16x32xf32>
    %240 = arith.addf %239, %175 : vector<16x32xf32>
    %c1_102 = arith.constant 1 : index
    %c0_103 = arith.constant 0 : index
    %c0_104 = arith.constant 0 : index
    %241 = vector.load %arg8[%c1_102, %c0_103, %c0_104] : memref<2x1x32xf32, #tpu.memory_space<vmem>>, vector<1x1x32xf32>
    %242 = vector.shape_cast %241 : vector<1x1x32xf32> to vector<1x32xf32>
    %c1_105 = arith.constant 1 : index
    %c0_106 = arith.constant 0 : index
    %c0_107 = arith.constant 0 : index
    %243 = vector.load %arg9[%c1_105, %c0_106, %c0_107] : memref<2x1x32xf32, #tpu.memory_space<vmem>>, vector<1x1x32xf32>
    %244 = vector.shape_cast %243 : vector<1x1x32xf32> to vector<1x32xf32>
    %cst_108 = arith.constant dense<0.000000e+00> : vector<16xf32>
    %245 = vector.multi_reduction <add>, %240, %cst_108 [1] : vector<16x32xf32> to vector<16xf32>
    %246 = vector.shape_cast %245 : vector<16xf32> to vector<16x1xf32>
    %cst_109 = arith.constant 3.200000e+01 : f32
    %247 = vector.broadcast %cst_109 : f32 to vector<16x1xf32>
    %248 = arith.divf %246, %247 : vector<16x1xf32>
    %249 = vector.broadcast %248 : vector<16x1xf32> to vector<16x32xf32>
    %250 = arith.subf %240, %249 : vector<16x32xf32>
    %251 = arith.mulf %250, %250 : vector<16x32xf32>
    %cst_110 = arith.constant dense<0.000000e+00> : vector<16xf32>
    %252 = vector.multi_reduction <add>, %251, %cst_110 [1] : vector<16x32xf32> to vector<16xf32>
    %253 = vector.shape_cast %252 : vector<16xf32> to vector<16x1xf32>
    %cst_111 = arith.constant 3.200000e+01 : f32
    %254 = vector.broadcast %cst_111 : f32 to vector<16x1xf32>
    %255 = arith.divf %253, %254 : vector<16x1xf32>
    %256 = vector.broadcast %248 : vector<16x1xf32> to vector<16x32xf32>
    %257 = arith.subf %240, %256 : vector<16x32xf32>
    %cst_112 = arith.constant 9.99999974E-6 : f32
    %258 = vector.broadcast %cst_112 : f32 to vector<16x1xf32>
    %259 = arith.addf %255, %258 : vector<16x1xf32>
    %260 = math.rsqrt %259 : vector<16x1xf32>
    %261 = vector.broadcast %260 : vector<16x1xf32> to vector<16x32xf32>
    %262 = arith.mulf %257, %261 : vector<16x32xf32>
    %263 = vector.broadcast %242 : vector<1x32xf32> to vector<16x32xf32>
    %264 = arith.mulf %262, %263 : vector<16x32xf32>
    %265 = vector.broadcast %244 : vector<1x32xf32> to vector<16x32xf32>
    %266 = arith.addf %264, %265 : vector<16x32xf32>
    %c1_113 = arith.constant 1 : index
    %c0_114 = arith.constant 0 : index
    %c0_115 = arith.constant 0 : index
    %267 = vector.load %arg10[%c1_113, %c0_114, %c0_115] : memref<2x32x64xf32, #tpu.memory_space<vmem>>, vector<1x32x64xf32>
    %268 = vector.shape_cast %267 : vector<1x32x64xf32> to vector<32x64xf32>
    %cst_116 = arith.constant dense<0.000000e+00> : vector<16x64xf32>
    %269 = tpu.matmul %266, %268, %cst_116 {dimension_numbers = #tpu.dot_dimension_numbers<[1], [0], [0], [1], [0, 0, 1, 1], [], []>} : vector<16x32xf32>, vector<32x64xf32>, vector<16x64xf32> -> vector<16x64xf32>
    %c1_117 = arith.constant 1 : index
    %c0_118 = arith.constant 0 : index
    %c0_119 = arith.constant 0 : index
    %270 = vector.load %arg11[%c1_117, %c0_118, %c0_119] : memref<2x1x64xf32, #tpu.memory_space<vmem>>, vector<1x1x64xf32>
    %271 = vector.shape_cast %270 : vector<1x1x64xf32> to vector<1x64xf32>
    %272 = vector.broadcast %271 : vector<1x64xf32> to vector<16x64xf32>
    %273 = arith.addf %269, %272 : vector<16x64xf32>
    %274 = arith.mulf %273, %273 : vector<16x64xf32>
    %275 = arith.mulf %273, %274 : vector<16x64xf32>
    %cst_120 = arith.constant 4.471500e-02 : f32
    %276 = vector.broadcast %cst_120 : f32 to vector<16x64xf32>
    %277 = arith.mulf %276, %275 : vector<16x64xf32>
    %278 = arith.addf %273, %277 : vector<16x64xf32>
    %cst_121 = arith.constant 0.797884583 : f32
    %279 = vector.broadcast %cst_121 : f32 to vector<16x64xf32>
    %280 = arith.mulf %279, %278 : vector<16x64xf32>
    %281 = math.tanh %280 : vector<16x64xf32>
    %cst_122 = arith.constant 1.000000e+00 : f32
    %282 = vector.broadcast %cst_122 : f32 to vector<16x64xf32>
    %283 = arith.addf %282, %281 : vector<16x64xf32>
    %cst_123 = arith.constant 5.000000e-01 : f32
    %284 = vector.broadcast %cst_123 : f32 to vector<16x64xf32>
    %285 = arith.mulf %284, %283 : vector<16x64xf32>
    %286 = arith.mulf %273, %285 : vector<16x64xf32>
    %c1_124 = arith.constant 1 : index
    %c0_125 = arith.constant 0 : index
    %c0_126 = arith.constant 0 : index
    %287 = vector.load %arg12[%c1_124, %c0_125, %c0_126] : memref<2x64x32xf32, #tpu.memory_space<vmem>>, vector<1x64x32xf32>
    %288 = vector.shape_cast %287 : vector<1x64x32xf32> to vector<64x32xf32>
    %cst_127 = arith.constant dense<0.000000e+00> : vector<16x32xf32>
    %289 = tpu.matmul %286, %288, %cst_127 {dimension_numbers = #tpu.dot_dimension_numbers<[1], [0], [0], [1], [0, 0, 1, 1], [], []>} : vector<16x64xf32>, vector<64x32xf32>, vector<16x32xf32> -> vector<16x32xf32>
    %c1_128 = arith.constant 1 : index
    %c0_129 = arith.constant 0 : index
    %c0_130 = arith.constant 0 : index
    %290 = vector.load %arg13[%c1_128, %c0_129, %c0_130] : memref<2x1x32xf32, #tpu.memory_space<vmem>>, vector<1x1x32xf32>
    %291 = vector.shape_cast %290 : vector<1x1x32xf32> to vector<1x32xf32>
    %292 = vector.broadcast %291 : vector<1x32xf32> to vector<16x32xf32>
    %293 = arith.addf %289, %292 : vector<16x32xf32>
    %294 = arith.addf %293, %266 : vector<16x32xf32>
    %c1_131 = arith.constant 1 : index
    %c0_132 = arith.constant 0 : index
    %c0_133 = arith.constant 0 : index
    %295 = vector.load %arg14[%c1_131, %c0_132, %c0_133] : memref<2x1x32xf32, #tpu.memory_space<vmem>>, vector<1x1x32xf32>
    %296 = vector.shape_cast %295 : vector<1x1x32xf32> to vector<1x32xf32>
    %c1_134 = arith.constant 1 : index
    %c0_135 = arith.constant 0 : index
    %c0_136 = arith.constant 0 : index
    %297 = vector.load %arg15[%c1_134, %c0_135, %c0_136] : memref<2x1x32xf32, #tpu.memory_space<vmem>>, vector<1x1x32xf32>
    %298 = vector.shape_cast %297 : vector<1x1x32xf32> to vector<1x32xf32>
    %cst_137 = arith.constant dense<0.000000e+00> : vector<16xf32>
    %299 = vector.multi_reduction <add>, %294, %cst_137 [1] : vector<16x32xf32> to vector<16xf32>
    %300 = vector.shape_cast %299 : vector<16xf32> to vector<16x1xf32>
    %cst_138 = arith.constant 3.200000e+01 : f32
    %301 = vector.broadcast %cst_138 : f32 to vector<16x1xf32>
    %302 = arith.divf %300, %301 : vector<16x1xf32>
    %303 = vector.broadcast %302 : vector<16x1xf32> to vector<16x32xf32>
    %304 = arith.subf %294, %303 : vector<16x32xf32>
    %305 = arith.mulf %304, %304 : vector<16x32xf32>
    %cst_139 = arith.constant dense<0.000000e+00> : vector<16xf32>
    %306 = vector.multi_reduction <add>, %305, %cst_139 [1] : vector<16x32xf32> to vector<16xf32>
    %307 = vector.shape_cast %306 : vector<16xf32> to vector<16x1xf32>
    %cst_140 = arith.constant 3.200000e+01 : f32
    %308 = vector.broadcast %cst_140 : f32 to vector<16x1xf32>
    %309 = arith.divf %307, %308 : vector<16x1xf32>
    %310 = vector.broadcast %302 : vector<16x1xf32> to vector<16x32xf32>
    %311 = arith.subf %294, %310 : vector<16x32xf32>
    %cst_141 = arith.constant 9.99999974E-6 : f32
    %312 = vector.broadcast %cst_141 : f32 to vector<16x1xf32>
    %313 = arith.addf %309, %312 : vector<16x1xf32>
    %314 = math.rsqrt %313 : vector<16x1xf32>
    %315 = vector.broadcast %314 : vector<16x1xf32> to vector<16x32xf32>
    %316 = arith.mulf %311, %315 : vector<16x32xf32>
    %317 = vector.broadcast %296 : vector<1x32xf32> to vector<16x32xf32>
    %318 = arith.mulf %316, %317 : vector<16x32xf32>
    %319 = vector.broadcast %298 : vector<1x32xf32> to vector<16x32xf32>
    %320 = arith.addf %318, %319 : vector<16x32xf32>
    %321 = tpu.iota {dimensions = array<i32: 1>} : vector<2x16xi32>
    %322 = tpu.iota {dimensions = array<i32: 0>} : vector<2x16xi32>
    %c8_i32 = arith.constant 8 : i32
    %323 = vector.broadcast %c8_i32 : i32 to vector<2x16xi32>
    %324 = arith.muli %322, %323 : vector<2x16xi32>
    %325 = arith.cmpi eq, %321, %324 : vector<2x16xi32>
    %326 = arith.extui %325 : vector<2x16xi1> to vector<2x16xi32>
    %327 = arith.sitofp %326 : vector<2x16xi32> to vector<2x16xf32>
    %cst_142 = arith.constant dense<0.000000e+00> : vector<2x32xf32>
    %328 = tpu.matmul %327, %320, %cst_142 {dimension_numbers = #tpu.dot_dimension_numbers<[1], [0], [0], [1], [0, 0, 1, 1], [], []>} : vector<2x16xf32>, vector<16x32xf32>, vector<2x32xf32> -> vector<2x32xf32>
    %c0_143 = arith.constant 0 : index
    %c0_144 = arith.constant 0 : index
    %329 = vector.load %arg16[%c0_143, %c0_144] : memref<32x512xf32, #tpu.memory_space<vmem>>, vector<32x512xf32>
    %cst_145 = arith.constant dense<0.000000e+00> : vector<2x512xf32>
    %330 = tpu.matmul %328, %329, %cst_145 {dimension_numbers = #tpu.dot_dimension_numbers<[1], [0], [0], [1], [0, 0, 1, 1], [], []>} : vector<2x32xf32>, vector<32x512xf32>, vector<2x512xf32> -> vector<2x512xf32>
    %c0_146 = arith.constant 0 : index
    %c0_147 = arith.constant 0 : index
    %331 = vector.load %arg17[%c0_146, %c0_147] : memref<1x512xf32, #tpu.memory_space<vmem>>, vector<1x512xf32>
    %332 = vector.broadcast %331 : vector<1x512xf32> to vector<2x512xf32>
    %333 = arith.addf %330, %332 : vector<2x512xf32>
    %cst_148 = arith.constant 0.000000e+00 : f32
    %334 = vector.broadcast %cst_148 : f32 to vector<2x512xf32>
    %335 = arith.maximumf %333, %334 : vector<2x512xf32>
    %c0_149 = arith.constant 0 : index
    %c0_150 = arith.constant 0 : index
    %336 = vector.load %arg18[%c0_149, %c0_150] : memref<512x128xf32, #tpu.memory_space<vmem>>, vector<512x128xf32>
    %cst_151 = arith.constant dense<0.000000e+00> : vector<2x128xf32>
    %337 = tpu.matmul %335, %336, %cst_151 {dimension_numbers = #tpu.dot_dimension_numbers<[1], [0], [0], [1], [0, 0, 1, 1], [], []>} : vector<2x512xf32>, vector<512x128xf32>, vector<2x128xf32> -> vector<2x128xf32>
    %c0_152 = arith.constant 0 : index
    %c0_153 = arith.constant 0 : index
    %338 = vector.load %arg19[%c0_152, %c0_153] : memref<1x128xf32, #tpu.memory_space<vmem>>, vector<1x128xf32>
    %339 = vector.broadcast %338 : vector<1x128xf32> to vector<2x128xf32>
    %340 = arith.addf %337, %339 : vector<2x128xf32>
    %c0_154 = arith.constant 0 : index
    %c0_155 = arith.constant 0 : index
    %341 = vector.load %arg20[%c0_154, %c0_155] : memref<2x128xf32, #tpu.memory_space<vmem>>, vector<2x128xf32>
    tpu.vector_store %arg20[%c0_154, %c0_155], %340 {strides = array<i32>} : memref<2x128xf32, #tpu.memory_space<vmem>>, vector<2x128xf32>,
    return
  }
}

</mosaic_0001>

<llo_original>
// kernel: roberta_classifier_forward.1
$region0: #{roberta_classifier_forward.1}
  #allocation0 [shape = 'u32[]', space=smem, size = 0x4, offset = 0x4, fixed_abs, tag = 'smem constant byte address 0x4 - core index']
  #allocation1 [shape = 'u32[144,128]{1,0:T(1,128)}', space=vmem, size = 0x12000, scoped, tag = 'internal scratch']
  %s0 = inlined_call_operand.vmem [shape: f32[16,32], index: 0, kind: input, shape index: {}]
  %s1 = inlined_call_operand.vmem [shape: f32[2,8], index: 1, kind: input, shape index: {}]
  %s2 = inlined_call_operand.hbm [shape: f32[1,32], index: 2, kind: input, shape index: {}]
  %s3 = inlined_call_operand.hbm [shape: f32[1,32], index: 3, kind: input, shape index: {}]
  %s4 = inlined_call_operand.vmem [shape: f32[2,32,96], index: 4, kind: input, shape index: {}]
  %s5 = inlined_call_operand.vmem [shape: f32[2,1,96], index: 5, kind: input, shape index: {}]
  %s6 = inlined_call_operand.hbm [shape: f32[2,32,32], index: 6, kind: input, shape index: {}]
  %s7 = inlined_call_operand.hbm [shape: f32[2,1,32], index: 7, kind: input, shape index: {}]
  %s8 = inlined_call_operand.hbm [shape: f32[2,1,32], index: 8, kind: input, shape index: {}]
  %s9 = inlined_call_operand.hbm [shape: f32[2,1,32], index: 9, kind: input, shape index: {}]
  %s10 = inlined_call_operand.hbm [shape: f32[2,32,64], index: 10, kind: input, shape index: {}]
  %s11 = inlined_call_operand.hbm [shape: f32[2,1,64], index: 11, kind: input, shape index: {}]
  %s12 = inlined_call_operand.vmem [shape: f32[2,64,32], index: 12, kind: input, shape index: {}]
  %s13 = inlined_call_operand.hbm [shape: f32[2,1,32], index: 13, kind: input, shape index: {}]
  %s14 = inlined_call_operand.hbm [shape: f32[2,1,32], index: 14, kind: input, shape index: {}]
  %s15 = inlined_call_operand.hbm [shape: f32[2,1,32], index: 15, kind: input, shape index: {}]
  %s16 = inlined_call_operand.vmem [shape: f32[32,512], index: 16, kind: input, shape index: {}]
  %s17 = inlined_call_operand.hbm [shape: f32[1,512], index: 17, kind: input, shape index: {}]
  %s18 = inlined_call_operand.vmem [shape: f32[512,128], index: 18, kind: input, shape index: {}]
  %s19 = inlined_call_operand.hbm [shape: f32[1,128], index: 19, kind: input, shape index: {}]
  %s20 = inlined_call_operand.hbm [shape: f32[2,128], index: 20, kind: output, shape index: {}]
  %s21 = sld [smem:[#allocation0]]
  $region142: #{roberta_classifier_forward.1} parent=0
    _
  %s23 = ssub.s32 1, %s21
  %s24 = scalar_select 0, %s23, %s21
  $region1: #{roberta_classifier_forward.1} parent=0
    #allocation2 [shape = 'u8[512]{0}', space=vmem, size = 0x400, scoped, tag = 'input window, operand 2, single buffered']
    #allocation3 [shape = 's32[1]{0}', space=sflag, size = 0x4, scoped, tag = 'scoped memory for roberta_classifier_forward.1']
    #allocation4 [shape = 's32[1]{0}', space=sflag, size = 0x4, scoped, tag = 'scoped memory for roberta_classifier_forward.1']
    #allocation5 [shape = 'u8[512]{0}', space=vmem, size = 0x400, scoped, tag = 'input window, operand 3, single buffered']
    #allocation6 [shape = 's32[1]{0}', space=sflag, size = 0x4, scoped, tag = 'scoped memory for roberta_classifier_forward.1']
    #allocation7 [shape = 'u8[32768]{0}', space=vmem, size = 0x8000, scoped, tag = 'input window, operand 6, single buffered']
    #allocation8 [shape = 'u8[1024]{0}', space=vmem, size = 0x400, scoped, tag = 'input window, operand 7, single buffered']
    #allocation9 [shape = 's32[1]{0}', space=sflag, size = 0x4, scoped, tag = 'scoped memory for roberta_classifier_forward.1']
    #allocation10 [shape = 'u8[1024]{0}', space=vmem, size = 0x400, scoped, tag = 'input window, operand 8, single buffered']
    #allocation11 [shape = 'u8[1024]{0}', space=vmem, size = 0x400, scoped, tag = 'input window, operand 9, single buffered']
    #allocation12 [shape = 's32[1]{0}', space=sflag, size = 0x4, scoped, tag = 'scoped memory for roberta_classifier_forward.1']
    #allocation13 [shape = 'u8[32768]{0}', space=vmem, size = 0x8000, scoped, tag = 'input window, operand 10, single buffered']
    #allocation14 [shape = 'u8[1024]{0}', space=vmem, size = 0x400, scoped, tag = 'input window, operand 11, single buffered']
    #allocation15 [shape = 's32[1]{0}', space=sflag, size = 0x4, scoped, tag = 'scoped memory for roberta_classifier_forward.1']
    #allocation16 [shape = 'u8[1024]{0}', space=vmem, size = 0x400, scoped, tag = 'input window, operand 13, single buffered']
    #allocation17 [shape = 'u8[1024]{0}', space=vmem, size = 0x400, scoped, tag = 'input window, operand 14, single buffered']
    #allocation18 [shape = 's32[1]{0}', space=sflag, size = 0x4, scoped, tag = 'scoped memory for roberta_classifier_forward.1']
    #allocation19 [shape = 'u8[1024]{0}', space=vmem, size = 0x400, scoped, tag = 'input window, operand 15, single buffered']
    #allocation20 [shape = 'u8[2048]{0}', space=vmem, size = 0x800, scoped, tag = 'input window, operand 17, single buffered']
    #allocation21 [shape = 's32[1]{0}', space=sflag, size = 0x4, scoped, tag = 'scoped memory for roberta_classifier_forward.1']
    #allocation22 [shape = 'u8[512]{0}', space=vmem, size = 0x400, scoped, tag = 'input window, operand 19, single buffered']
    #allocation23 [shape = 'u8[1024]{0}', space=vmem, size = 0x400, scoped, tag = 'output window, operand 0, single buffered']
    %25 = vsyncpa [#allocation3], 0
    %26 = vsyncpa [#allocation6], 0
    %27 = vsyncpa [#allocation9], 0
    %28 = vsyncpa [#allocation12], 0
    %29 = vsyncpa [#allocation15], 0
    %30 = vsyncpa [#allocation18], 0
    %31 = vsyncpa [#allocation21], 0
    %32 = vsyncpa [#allocation4], 0
    // Predicated region
    $region2: #{roberta_classifier_forward.1} parent=1 // pred_check
      _
    $region3: #{roberta_classifier_forward.1} parent=1 // pred_check_branch
      %34 = sbr.rel (0) target = $region5
    $region4: #{roberta_classifier_forward.1} parent=1 // pred_region
      _
    $region5: #{roberta_classifier_forward.1} parent=1 // pred_fallthru
      _
    // Predicated region
    $region6: #{roberta_classifier_forward.1} parent=1 // pred_check
      _
    $region7: #{roberta_classifier_forward.1} parent=1 // pred_check_branch
      %36 = sbr.rel (0) target = $region9
    $region8: #{roberta_classifier_forward.1} parent=1 // pred_region
      _
    $region9: #{roberta_classifier_forward.1} parent=1 // pred_fallthru
      _
    // Predicated region
    $region10: #{roberta_classifier_forward.1} parent=1 // pred_check
      _
    $region11: #{roberta_classifier_forward.1} parent=1 // pred_check_branch
      %38 = sbr.rel (0) target = $region13
    $region12: #{roberta_classifier_forward.1} parent=1 // pred_region
      %s40 = ssub.s32 16, 16
      %41 = vsyncadd [#allocation3], %s40
      %s43 = sshll.u32 [#allocation2], 4
      %s44 = int_to_ptr.vmem [resolvable:$true] %s43
      %46 = dma.hbm_to_vmem [thread:$0]  %s2, 16, %s44, [#allocation3]
    $region13: #{roberta_classifier_forward.1} parent=1 // pred_fallthru
      _
    // Predicated region
    $region14: #{roberta_classifier_forward.1} parent=1 // pred_check
      _
    $region15: #{roberta_classifier_forward.1} parent=1 // pred_check_branch
      %48 = sbr.rel (0) target = $region17
    $region16: #{roberta_classifier_forward.1} parent=1 // pred_region
      %s50 = ssub.s32 16, 16
      %51 = vsyncadd [#allocation6], %s50
      %s53 = sshll.u32 [#allocation5], 4
      %s54 = int_to_ptr.vmem [resolvable:$true] %s53
      %56 = dma.hbm_to_vmem [thread:$0]  %s3, 16, %s54, [#allocation6]
    $region17: #{roberta_classifier_forward.1} parent=1 // pred_fallthru
      _
    // Predicated region
    $region18: #{roberta_classifier_forward.1} parent=1 // pred_check
      _
    $region19: #{roberta_classifier_forward.1} parent=1 // pred_check_branch
      %58 = sbr.rel (0) target = $region21
    $region20: #{roberta_classifier_forward.1} parent=1 // pred_region
      _
    $region21: #{roberta_classifier_forward.1} parent=1 // pred_fallthru
      _
    // Predicated region
    $region22: #{roberta_classifier_forward.1} parent=1 // pred_check
      _
    $region23: #{roberta_classifier_forward.1} parent=1 // pred_check_branch
      %60 = sbr.rel (0) target = $region25
    $region24: #{roberta_classifier_forward.1} parent=1 // pred_region
      _
    $region25: #{roberta_classifier_forward.1} parent=1 // pred_fallthru
      _
    // Predicated region
    $region26: #{roberta_classifier_forward.1} parent=1 // pred_check
      _
    $region27: #{roberta_classifier_forward.1} parent=1 // pred_check_branch
      %62 = sbr.rel (0) target = $region29
    $region28: #{roberta_classifier_forward.1} parent=1 // pred_region
      %s64 = ssub.s32 1024, 1024
      %65 = vsyncadd [#allocation6], %s64
      %s66 = sshll.u32 [#allocation7], 4
      %s67 = int_to_ptr.vmem [resolvable:$true] %s66
      %72 = dma.hbm_to_vmem [thread:$0]  %s6, 1024, %s67, [#allocation6], 128, 128, 8
    $region29: #{roberta_classifier_forward.1} parent=1 // pred_fallthru
      _
    // Predicated region
    $region30: #{roberta_classifier_forward.1} parent=1 // pred_check
      _
    $region31: #{roberta_classifier_forward.1} parent=1 // pred_check_branch
      %74 = sbr.rel (0) target = $region33
    $region32: #{roberta_classifier_forward.1} parent=1 // pred_region
      %s76 = ssub.s32 32, 32
      %77 = vsyncadd [#allocation9], %s76
      %s78 = sshll.u32 [#allocation8], 4
      %s79 = int_to_ptr.vmem [resolvable:$true] %s78
      %84 = dma.hbm_to_vmem [thread:$0]  %s7, 32, %s79, [#allocation9], 16, 16, 1
    $region33: #{roberta_classifier_forward.1} parent=1 // pred_fallthru
      _
    // Predicated region
    $region34: #{roberta_classifier_forward.1} parent=1 // pred_check
      _
    $region35: #{roberta_classifier_forward.1} parent=1 // pred_check_branch
      %86 = sbr.rel (0) target = $region37
    $region36: #{roberta_classifier_forward.1} parent=1 // pred_region
      %s88 = ssub.s32 32, 32
      %89 = vsyncadd [#allocation9], %s88
      %s90 = sshll.u32 [#allocation10], 4
      %s91 = int_to_ptr.vmem [resolvable:$true] %s90
      %96 = dma.hbm_to_vmem [thread:$0]  %s8, 32, %s91, [#allocation9], 16, 16, 1
    $region37: #{roberta_classifier_forward.1} parent=1 // pred_fallthru
      _
    // Predicated region
    $region38: #{roberta_classifier_forward.1} parent=1 // pred_check
      _
    $region39: #{roberta_classifier_forward.1} parent=1 // pred_check_branch
      %98 = sbr.rel (0) target = $region41
    $region40: #{roberta_classifier_forward.1} parent=1 // pred_region
      %s100 = ssub.s32 32, 32
      %101 = vsyncadd [#allocation12], %s100
      %s102 = sshll.u32 [#allocation11], 4
      %s103 = int_to_ptr.vmem [resolvable:$true] %s102
      %108 = dma.hbm_to_vmem [thread:$0]  %s9, 32, %s103, [#allocation12], 16, 16, 1
    $region41: #{roberta_classifier_forward.1} parent=1 // pred_fallthru
      _
    // Predicated region
    $region42: #{roberta_classifier_forward.1} parent=1 // pred_check
      _
    $region43: #{roberta_classifier_forward.1} parent=1 // pred_check_branch
      %110 = sbr.rel (0) target = $region45
    $region44: #{roberta_classifier_forward.1} parent=1 // pred_region
      %s112 = ssub.s32 1024, 1024
      %113 = vsyncadd [#allocation12], %s112
      %s114 = sshll.u32 [#allocation13], 4
      %s115 = int_to_ptr.vmem [resolvable:$true] %s114
      %120 = dma.hbm_to_vmem [thread:$0]  %s10, 1024, %s115, [#allocation12], 128, 128, 8
    $region45: #{roberta_classifier_forward.1} parent=1 // pred_fallthru
      _
    // Predicated region
    $region46: #{roberta_classifier_forward.1} parent=1 // pred_check
      _
    $region47: #{roberta_classifier_forward.1} parent=1 // pred_check_branch
      %122 = sbr.rel (0) target = $region49
    $region48: #{roberta_classifier_forward.1} parent=1 // pred_region
      %s124 = ssub.s32 32, 32
      %125 = vsyncadd [#allocation15], %s124
      %s126 = sshll.u32 [#allocation14], 4
      %s127 = int_to_ptr.vmem [resolvable:$true] %s126
      %132 = dma.hbm_to_vmem [thread:$0]  %s11, 32, %s127, [#allocation15], 16, 16, 1
    $region49: #{roberta_classifier_forward.1} parent=1 // pred_fallthru
      _
    // Predicated region
    $region50: #{roberta_classifier_forward.1} parent=1 // pred_check
      _
    $region51: #{roberta_classifier_forward.1} parent=1 // pred_check_branch
      %134 = sbr.rel (0) target = $region53
    $region52: #{roberta_classifier_forward.1} parent=1 // pred_region
      _
    $region53: #{roberta_classifier_forward.1} parent=1 // pred_fallthru
      _
    // Predicated region
    $region54: #{roberta_classifier_forward.1} parent=1 // pred_check
      _
    $region55: #{roberta_classifier_forward.1} parent=1 // pred_check_branch
      %136 = sbr.rel (0) target = $region57
    $region56: #{roberta_classifier_forward.1} parent=1 // pred_region
      %s138 = ssub.s32 32, 32
      %139 = vsyncadd [#allocation15], %s138
      %s140 = sshll.u32 [#allocation16], 4
      %s141 = int_to_ptr.vmem [resolvable:$true] %s140
      %146 = dma.hbm_to_vmem [thread:$0]  %s13, 32, %s141, [#allocation15], 16, 16, 1
    $region57: #{roberta_classifier_forward.1} parent=1 // pred_fallthru
      _
    // Predicated region
    $region58: #{roberta_classifier_forward.1} parent=1 // pred_check
      _
    $region59: #{roberta_classifier_forward.1} parent=1 // pred_check_branch
      %148 = sbr.rel (0) target = $region61
    $region60: #{roberta_classifier_forward.1} parent=1 // pred_region
      %s150 = ssub.s32 32, 32
      %151 = vsyncadd [#allocation18], %s150
      %s152 = sshll.u32 [#allocation17], 4
      %s153 = int_to_ptr.vmem [resolvable:$true] %s152
      %158 = dma.hbm_to_vmem [thread:$0]  %s14, 32, %s153, [#allocation18], 16, 16, 1
    $region61: #{roberta_classifier_forward.1} parent=1 // pred_fallthru
      _
    // Predicated region
    $region62: #{roberta_classifier_forward.1} parent=1 // pred_check
      _
    $region63: #{roberta_classifier_forward.1} parent=1 // pred_check_branch
      %160 = sbr.rel (0) target = $region65
    $region64: #{roberta_classifier_forward.1} parent=1 // pred_region
      %s162 = ssub.s32 32, 32
      %163 = vsyncadd [#allocation18], %s162
      %s164 = sshll.u32 [#allocation19], 4
      %s165 = int_to_ptr.vmem [resolvable:$true] %s164
      %170 = dma.hbm_to_vmem [thread:$0]  %s15, 32, %s165, [#allocation18], 16, 16, 1
    $region65: #{roberta_classifier_forward.1} parent=1 // pred_fallthru
      _
    // Predicated region
    $region66: #{roberta_classifier_forward.1} parent=1 // pred_check
      _
    $region67: #{roberta_classifier_forward.1} parent=1 // pred_check_branch
      %172 = sbr.rel (0) target = $region69
    $region68: #{roberta_classifier_forward.1} parent=1 // pred_region
      _
    $region69: #{roberta_classifier_forward.1} parent=1 // pred_fallthru
      _
    // Predicated region
    $region70: #{roberta_classifier_forward.1} parent=1 // pred_check
      _
    $region71: #{roberta_classifier_forward.1} parent=1 // pred_check_branch
      %174 = sbr.rel (0) target = $region73
    $region72: #{roberta_classifier_forward.1} parent=1 // pred_region
      %s176 = ssub.s32 64, 64
      %177 = vsyncadd [#allocation21], %s176
      %s179 = sshll.u32 [#allocation20], 4
      %s180 = int_to_ptr.vmem [resolvable:$true] %s179
      %182 = dma.hbm_to_vmem [thread:$0]  %s17, 64, %s180, [#allocation21]
    $region73: #{roberta_classifier_forward.1} parent=1 // pred_fallthru
      _
    // Predicated region
    $region74: #{roberta_classifier_forward.1} parent=1 // pred_check
      _
    $region75: #{roberta_classifier_forward.1} parent=1 // pred_check_branch
      %184 = sbr.rel (0) target = $region77
    $region76: #{roberta_classifier_forward.1} parent=1 // pred_region
      _
    $region77: #{roberta_classifier_forward.1} parent=1 // pred_fallthru
      _
    // Predicated region
    $region78: #{roberta_classifier_forward.1} parent=1 // pred_check
      _
    $region79: #{roberta_classifier_forward.1} parent=1 // pred_check_branch
      %186 = sbr.rel (0) target = $region81
    $region80: #{roberta_classifier_forward.1} parent=1 // pred_region
      %s188 = ssub.s32 16, 16
      %189 = vsyncadd [#allocation21], %s188
      %s191 = sshll.u32 [#allocation22], 4
      %s192 = int_to_ptr.vmem [resolvable:$true] %s191
      %194 = dma.hbm_to_vmem [thread:$0]  %s19, 16, %s192, [#allocation21]
    $region81: #{roberta_classifier_forward.1} parent=1 // pred_fallthru
      _
    // Predicated region
    $region82: #{roberta_classifier_forward.1} parent=1 // pred_check
      _
    $region83: #{roberta_classifier_forward.1} parent=1 // pred_check_branch
      %196 = sbr.rel (0) target = $region85
    $region84: #{roberta_classifier_forward.1} parent=1 // pred_region
      %197 = dma.done [#allocation3], 16
    $region85: #{roberta_classifier_forward.1} parent=1 // pred_fallthru
      _
    // Predicated region
    $region86: #{roberta_classifier_forward.1} parent=1 // pred_check
      _
    $region87: #{roberta_classifier_forward.1} parent=1 // pred_check_branch
      %199 = sbr.rel (0) target = $region89
    $region88: #{roberta_classifier_forward.1} parent=1 // pred_region
      %200 = dma.done [#allocation6], 16
    $region89: #{roberta_classifier_forward.1} parent=1 // pred_fallthru
      _
    // Predicated region
    $region90: #{roberta_classifier_forward.1} parent=1 // pred_check
      _
    $region91: #{roberta_classifier_forward.1} parent=1 // pred_check_branch
      %202 = sbr.rel (0) target = $region93
    $region92: #{roberta_classifier_forward.1} parent=1 // pred_region
      %203 = dma.done [#allocation6], 1024
    $region93: #{roberta_classifier_forward.1} parent=1 // pred_fallthru
      _
    // Predicated region
    $region94: #{roberta_classifier_forward.1} parent=1 // pred_check
      _
    $region95: #{roberta_classifier_forward.1} parent=1 // pred_check_branch
      %205 = sbr.rel (0) target = $region97
    $region96: #{roberta_classifier_forward.1} parent=1 // pred_region
      %206 = dma.done [#allocation9], 32
    $region97: #{roberta_classifier_forward.1} parent=1 // pred_fallthru
      _
    // Predicated region
    $region98: #{roberta_classifier_forward.1} parent=1 // pred_check
      _
    $region99: #{roberta_classifier_forward.1} parent=1 // pred_check_branch
      %208 = sbr.rel (0) target = $region101
    $region100: #{roberta_classifier_forward.1} parent=1 // pred_region
      %209 = dma.done [#allocation9], 32
    $region101: #{roberta_classifier_forward.1} parent=1 // pred_fallthru
      _
    // Predicated region
    $region102: #{roberta_classifier_forward.1} parent=1 // pred_check
      _
    $region103: #{roberta_classifier_forward.1} parent=1 // pred_check_branch
      %211 = sbr.rel (0) target = $region105
    $region104: #{roberta_classifier_forward.1} parent=1 // pred_region
      %212 = dma.done [#allocation12], 32
    $region105: #{roberta_classifier_forward.1} parent=1 // pred_fallthru
      _
    // Predicated region
    $region106: #{roberta_classifier_forward.1} parent=1 // pred_check
      _
    $region107: #{roberta_classifier_forward.1} parent=1 // pred_check_branch
      %214 = sbr.rel (0) target = $region109
    $region108: #{roberta_classifier_forward.1} parent=1 // pred_region
      %215 = dma.done [#allocation12], 1024
    $region109: #{roberta_classifier_forward.1} parent=1 // pred_fallthru
      _
    // Predicated region
    $region110: #{roberta_classifier_forward.1} parent=1 // pred_check
      _
    $region111: #{roberta_classifier_forward.1} parent=1 // pred_check_branch
      %217 = sbr.rel (0) target = $region113
    $region112: #{roberta_classifier_forward.1} parent=1 // pred_region
      %218 = dma.done [#allocation15], 32
    $region113: #{roberta_classifier_forward.1} parent=1 // pred_fallthru
      _
    // Predicated region
    $region114: #{roberta_classifier_forward.1} parent=1 // pred_check
      _
    $region115: #{roberta_classifier_forward.1} parent=1 // pred_check_branch
      %220 = sbr.rel (0) target = $region117
    $region116: #{roberta_classifier_forward.1} parent=1 // pred_region
      %221 = dma.done [#allocation15], 32
    $region117: #{roberta_classifier_forward.1} parent=1 // pred_fallthru
      _
    // Predicated region
    $region118: #{roberta_classifier_forward.1} parent=1 // pred_check
      _
    $region119: #{roberta_classifier_forward.1} parent=1 // pred_check_branch
      %223 = sbr.rel (0) target = $region121
    $region120: #{roberta_classifier_forward.1} parent=1 // pred_region
      %224 = dma.done [#allocation18], 32
    $region121: #{roberta_classifier_forward.1} parent=1 // pred_fallthru
      _
    // Predicated region
    $region122: #{roberta_classifier_forward.1} parent=1 // pred_check
      _
    $region123: #{roberta_classifier_forward.1} parent=1 // pred_check_branch
      %226 = sbr.rel (0) target = $region125
    $region124: #{roberta_classifier_forward.1} parent=1 // pred_region
      %227 = dma.done [#allocation18], 32
    $region125: #{roberta_classifier_forward.1} parent=1 // pred_fallthru
      _
    // Predicated region
    $region126: #{roberta_classifier_forward.1} parent=1 // pred_check
      _
    $region127: #{roberta_classifier_forward.1} parent=1 // pred_check_branch
      %229 = sbr.rel (0) target = $region129
    $region128: #{roberta_classifier_forward.1} parent=1 // pred_region
      %230 = dma.done [#allocation21], 64
    $region129: #{roberta_classifier_forward.1} parent=1 // pred_fallthru
      _
    // Predicated region
    $region130: #{roberta_classifier_forward.1} parent=1 // pred_check
      _
    $region131: #{roberta_classifier_forward.1} parent=1 // pred_check_branch
      %232 = sbr.rel (0) target = $region133
    $region132: #{roberta_classifier_forward.1} parent=1 // pred_region
      %233 = dma.done [#allocation21], 16
    $region133: #{roberta_classifier_forward.1} parent=1 // pred_fallthru
      _
    %v234 = vld [vmem:[%s0] sm:$0xff]
    %v235 = vld [vmem:[%s0 + $0x8] sm:$0xff]
    %v236 = vld [vmem:[#allocation2] sm:$0x1]
    %v237 = vld [vmem:[#allocation5] sm:$0x1]
    %vm238 = vcmask 261120
    %v239 = vsel %vm238, %v234, 0.0
    %240 = vadd.xlane.f32.xlu0 %v239
    %v241 = vpop.xlane.xlu0 %240
    %v242 = vsel %vm238, %v235, 0.0
    %243 = vadd.xlane.f32.xlu0 %v242
    %v244 = vpop.xlane.xlu0 %243
    %v245 = vrcp.pop 32.0
    %v246 = vmul.f32 %v241, %v245
    %v247 = vmul.f32 %v244, %v245
    %v248 = vsub.f32 %v234, %v246
    %v249 = vsub.f32 %v235, %v247
    %v250 = vmul.f32 %v248, %v248
    %v251 = vmul.f32 %v249, %v249
    %v252 = vsel %vm238, %v250, 0.0
    %253 = vadd.xlane.f32.xlu0 %v252
    %v254 = vpop.xlane.xlu0 %253
    %v255 = vsel %vm238, %v251, 0.0
    %256 = vadd.xlane.f32.xlu0 %v255
    %v257 = vpop.xlane.xlu0 %256
    %v258 = vmul.f32 %v254, %v245
    %v259 = vmul.f32 %v257, %v245
    %v260 = vadd.f32 %v258, 1e-05
    %v261 = vadd.f32 %v259, 1e-05
    %v262 = vrsqrt.pop %v260
    %v263 = vrsqrt.pop %v261
    %v264 = vmul.f32 %v248, %v262
    %v265 = vmul.f32 %v249, %v263
    %v267 = vlaneseq
    %v268 = vshrl.u32 %v267, 7
    %v269 = vsub.s32 0, %v268
    %v270 = vrot.slane %v236, %v269
    %v272 = vmul.f32 %v264, %v270
    %v273 = vmul.f32 %v265, %v270
    %v275 = vlaneseq
    %v276 = vshrl.u32 %v275, 7
    %v277 = vsub.s32 0, %v276
    %v278 = vrot.slane %v237, %v277
    %v280 = vadd.f32 %v272, %v278
    %v281 = vadd.f32 %v273, %v278
    %v282 = vld [vmem:[%s1] sm:$0x3]
    %v283 = vsub.f32 1.0, %v282
    %v284 = vmul.f32 %v283, -1e+09
    %v287 = vunpack.c.l.s4 1966171168
    %v288 = vunpack.c.0.s8 %v287
    %v289 = vlaneseq
    %v290 = vshrl.u32 %v289, 7
    %v291 = vsub.s32 %v288, %v290
    %v292 = vrot.slane %v284, %v291
    %v293 = vcombine.high %v292, %v292
    %v295 = vunpack.c.l.s4 1966171168
    %v296 = vunpack.c.0.s8 %v295
    %v297 = vlaneseq
    %v298 = vshrl.u32 %v297, 7
    %v299 = vsub.s32 %v296, %v298
    %v300 = vrot.slane %v292, %v299
    %v302 = vunpack.c.l.s4 1966171168
    %v303 = vunpack.c.0.s8 %v302
    %v304 = vlaneseq
    %v305 = vshrl.u32 %v304, 7
    %v306 = vsub.s32 %v303, %v305
    %v307 = vrot.slane %v293, %v306
    %v308 = vld [vmem:[%s4] sm:$0xff]
    %v309 = vld [vmem:[%s4 + $0x8] sm:$0xff]
    %v310 = vld [vmem:[%s4 + $0x10] sm:$0xff]
    %v311 = vld [vmem:[%s4 + $0x18] sm:$0xff]
    %v312 = vld [vmem:[%s5] sm:$0x1]
    %v314 = vlaneseq
    %v315 = vshrl.u32 %v314, 7
    %v316 = vsub.s32 0, %v315
    %v317 = vrot.slane %v312, %v316
    %v320 = vsel %vm238, %v280, 0
    %v323 = vsel %vm238, %v281, 0
    %325 = vmatprep.subr.mxu0 0.0
    %326 = vmatpush1.msra.mxu0 0.0
    %327 = vmatprep.subr.mxu0 0.0
    %328 = vmatpush1.msra.mxu0 0.0
    %329 = vmatprep.subr.mxu0 0.0
    %330 = vmatpush1.msra.mxu0 0.0
    %331 = vmatprep.subr.mxu0 0.0
    %332 = vmatpush1.msra.mxu0 0.0
    %333 = vmatprep.subr.mxu0 0.0
    %334 = vmatpush1.msra.mxu0 0.0
    %335 = vmatprep.subr.mxu0 0.0
    %336 = vmatpush1.msra.mxu0 0.0
    %337 = vmatprep.subr.mxu0 0.0
    %338 = vmatpush1.msra.mxu0 0.0
    %339 = vmatprep.subr.mxu0 0.0
    %340 = vmatpush1.msra.mxu0 0.0
    %341 = vmatprep.subr.mxu0 0.0
    %342 = vmatpush1.msra.mxu0 0.0
    %343 = vmatprep.subr.mxu0 0.0
    %344 = vmatpush1.msra.mxu0 0.0
    %345 = vmatprep.subr.mxu0 0.0
    %346 = vmatpush1.msra.mxu0 0.0
    %347 = vmatprep.subr.mxu0 0.0
    %348 = vmatpush1.msra.mxu0 0.0
    %349 = vmatprep.subr.mxu0 0.0
    %350 = vmatpush1.msra.mxu0 %v311
    %351 = vmatprep.subr.mxu0 0.0
    %352 = vmatpush1.msra.mxu0 %v310
    %353 = vmatprep.subr.mxu0 0.0
    %354 = vmatpush1.msra.mxu0 %v309
    %355 = vmatprep.subr.mxu0 0.0
    %356 = vmatpush1.msra.mxu0 %v308
    %357 = vmatprep.subr.mxu0 0.0
    %358 = vmatpush2.msra.mxu0 0.0
    %359 = vmatprep.subr.mxu0 0.0
    %360 = vmatpush2.msra.mxu0 0.0
    %361 = vmatprep.subr.mxu0 0.0
    %362 = vmatpush2.msra.mxu0 0.0
    %363 = vmatprep.subr.mxu0 0.0
    %364 = vmatpush2.msra.mxu0 0.0
    %365 = vmatprep.subr.mxu0 0.0
    %366 = vmatpush2.msra.mxu0 0.0
    %367 = vmatprep.subr.mxu0 0.0
    %368 = vmatpush2.msra.mxu0 0.0
    %369 = vmatprep.subr.mxu0 0.0
    %370 = vmatpush2.msra.mxu0 0.0
    %371 = vmatprep.subr.mxu0 0.0
    %372 = vmatpush2.msra.mxu0 0.0
    %373 = vmatprep.subr.mxu0 0.0
    %374 = vmatpush2.msra.mxu0 0.0
    %375 = vmatprep.subr.mxu0 0.0
    %376 = vmatpush2.msra.mxu0 0.0
    %377 = vmatprep.subr.mxu0 0.0
    %378 = vmatpush2.msra.mxu0 0.0
    %379 = vmatprep.subr.mxu0 0.0
    %380 = vmatpush2.msra.mxu0 0.0
    %381 = vmatprep.subr.mxu0 0.0
    %382 = vmatpush2.msra.mxu0 0.0
    %383 = vmatprep.subr.mxu0 0.0
    %384 = vmatpush2.msra.mxu0 0.0
    %385 = vmatprep.subr.mxu0 0.0
    %386 = vmatpush2.msra.mxu0 0.0
    %387 = vmatprep.subr.mxu0 0.0
    %388 = vmatpush2.msra.mxu0 0.0
    %389 = vmatprep.mubr.f32.mxu0 0.0
    %390 = vmatmul.mubr.f32.gmra.mxu0 %v320
    %v391 = vpop.f32.mrf.mxu0
    %v392 = vadd.f32 %v317, %v391
    %v393 = vpop.f32.mrf.mxu0
    %394 = vmatprep.mubr.f32.mxu0 0.0
    %395 = vmatmul.mubr.f32.gmra.mxu0 %v323
    %v396 = vpop.f32.mrf.mxu0
    %v397 = vadd.f32 %v317, %v396
    %v398 = vpop.f32.mrf.mxu0
    %399 = vdwg.mxu0
    %v400 = vld [vmem:[#allocation7] sm:$0xff]
    %v401 = vld [vmem:[#allocation7 + $0x8] sm:$0xff]
    %v402 = vld [vmem:[#allocation7 + $0x10] sm:$0xff]
    %v403 = vld [vmem:[#allocation7 + $0x18] sm:$0xff]
    %405 = vrot.lane.b32.xlu0 %v392, 96
    %v406 = vpop.permute.xlu0 %405
    %vm407 = vcmask 130048
    %v408 = vsel %vm407, %v392, 0
    %v410 = vsel %vm407, %v406, 0
    %412 = vmatprep.subr.mxu0 0.0
    %413 = vmatpush1.xpose.msra.mxu0 0.0
    %414 = vmatprep.subr.mxu0 0.0
    %415 = vmatpush1.xpose.msra.mxu0 0.0
    %416 = vmatprep.subr.mxu0 0.0
    %417 = vmatpush1.xpose.msra.mxu0 0.0
    %418 = vmatprep.subr.mxu0 0.0
    %419 = vmatpush1.xpose.msra.mxu0 0.0
    %420 = vmatprep.subr.mxu0 0.0
    %421 = vmatpush1.xpose.msra.mxu0 0.0
    %422 = vmatprep.subr.mxu0 0.0
    %423 = vmatpush1.xpose.msra.mxu0 0.0
    %424 = vmatprep.subr.mxu0 0.0
    %425 = vmatpush1.xpose.msra.mxu0 0.0
    %426 = vmatprep.subr.mxu0 0.0
    %427 = vmatpush1.xpose.msra.mxu0 0.0
    %428 = vmatprep.subr.mxu0 0.0
    %429 = vmatpush1.xpose.msra.mxu0 0.0
    %430 = vmatprep.subr.mxu0 0.0
    %431 = vmatpush1.xpose.msra.mxu0 0.0
    %432 = vmatprep.subr.mxu0 0.0
    %433 = vmatpush1.xpose.msra.mxu0 0.0
    %434 = vmatprep.subr.mxu0 0.0
    %435 = vmatpush1.xpose.msra.mxu0 0.0
    %436 = vmatprep.subr.mxu0 0.0
    %437 = vmatpush1.xpose.msra.mxu0 0.0
    %438 = vmatprep.subr.mxu0 0.0
    %439 = vmatpush1.xpose.msra.mxu0 0.0
    %440 = vmatprep.subr.mxu0 0.0
    %441 = vmatpush1.xpose.msra.mxu0 0.0
    %442 = vmatprep.subr.mxu0 0.0
    %443 = vmatpush1.xpose.msra.mxu0 %v410
    %444 = vmatprep.subr.mxu0 0.0
    %445 = vmatpush2.xpose.msra.mxu0 0.0
    %446 = vmatprep.subr.mxu0 0.0
    %447 = vmatpush2.xpose.msra.mxu0 0.0
    %448 = vmatprep.subr.mxu0 0.0
    %449 = vmatpush2.xpose.msra.mxu0 0.0
    %450 = vmatprep.subr.mxu0 0.0
    %451 = vmatpush2.xpose.msra.mxu0 0.0
    %452 = vmatprep.subr.mxu0 0.0
    %453 = vmatpush2.xpose.msra.mxu0 0.0
    %454 = vmatprep.subr.mxu0 0.0
    %455 = vmatpush2.xpose.msra.mxu0 0.0
    %456 = vmatprep.subr.mxu0 0.0
    %457 = vmatpush2.xpose.msra.mxu0 0.0
    %458 = vmatprep.subr.mxu0 0.0
    %459 = vmatpush2.xpose.msra.mxu0 0.0
    %460 = vmatprep.subr.mxu0 0.0
    %461 = vmatpush2.xpose.msra.mxu0 0.0
    %462 = vmatprep.subr.mxu0 0.0
    %463 = vmatpush2.xpose.msra.mxu0 0.0
    %464 = vmatprep.subr.mxu0 0.0
    %465 = vmatpush2.xpose.msra.mxu0 0.0
    %466 = vmatprep.subr.mxu0 0.0
    %467 = vmatpush2.xpose.msra.mxu0 0.0
    %468 = vmatprep.subr.mxu0 0.0
    %469 = vmatpush2.xpose.msra.mxu0 0.0
    %470 = vmatprep.subr.mxu0 0.0
    %471 = vmatpush2.xpose.msra.mxu0 0.0
    %472 = vmatprep.subr.mxu0 0.0
    %473 = vmatpush2.xpose.msra.mxu0 0.0
    %474 = vmatprep.subr.mxu0 0.0
    %475 = vmatpush2.xpose.msra.mxu0 0.0
    %476 = vmatprep.mubr.f32.mxu0 0.0
    %477 = vmatmul.mubr.f32.gmra.mxu0 %v408
    %v478 = vpop.f32.mrf.mxu0
    %v479 = vadd.f32 0.0, %v478
    %v480 = vpop.f32.mrf.mxu0
    %481 = vdwg.mxu0
    %483 = vrot.lane.b32.xlu0 %v397, 96
    %v484 = vpop.permute.xlu0 %483
    %v485 = vsel %vm407, %v397, 0
    %v487 = vsel %vm407, %v484, 0
    %489 = vmatprep.subr.mxu0 0.0
    %490 = vmatpush1.xpose.msra.mxu0 0.0
    %491 = vmatprep.subr.mxu0 0.0
    %492 = vmatpush1.xpose.msra.mxu0 0.0
    %493 = vmatprep.subr.mxu0 0.0
    %494 = vmatpush1.xpose.msra.mxu0 0.0
    %495 = vmatprep.subr.mxu0 0.0
    %496 = vmatpush1.xpose.msra.mxu0 0.0
    %497 = vmatprep.subr.mxu0 0.0
    %498 = vmatpush1.xpose.msra.mxu0 0.0
    %499 = vmatprep.subr.mxu0 0.0
    %500 = vmatpush1.xpose.msra.mxu0 0.0
    %501 = vmatprep.subr.mxu0 0.0
    %502 = vmatpush1.xpose.msra.mxu0 0.0
    %503 = vmatprep.subr.mxu0 0.0
    %504 = vmatpush1.xpose.msra.mxu0 0.0
    %505 = vmatprep.subr.mxu0 0.0
    %506 = vmatpush1.xpose.msra.mxu0 0.0
    %507 = vmatprep.subr.mxu0 0.0
    %508 = vmatpush1.xpose.msra.mxu0 0.0
    %509 = vmatprep.subr.mxu0 0.0
    %510 = vmatpush1.xpose.msra.mxu0 0.0
    %511 = vmatprep.subr.mxu0 0.0
    %512 = vmatpush1.xpose.msra.mxu0 0.0
    %513 = vmatprep.subr.mxu0 0.0
    %514 = vmatpush1.xpose.msra.mxu0 0.0
    %515 = vmatprep.subr.mxu0 0.0
    %516 = vmatpush1.xpose.msra.mxu0 0.0
    %517 = vmatprep.subr.mxu0 0.0
    %518 = vmatpush1.xpose.msra.mxu0 0.0
    %519 = vmatprep.subr.mxu0 0.0
    %520 = vmatpush1.xpose.msra.mxu0 %v487
    %521 = vmatprep.subr.mxu0 0.0
    %522 = vmatpush2.xpose.msra.mxu0 0.0
    %523 = vmatprep.subr.mxu0 0.0
    %524 = vmatpush2.xpose.msra.mxu0 0.0
    %525 = vmatprep.subr.mxu0 0.0
    %526 = vmatpush2.xpose.msra.mxu0 0.0
    %527 = vmatprep.subr.mxu0 0.0
    %528 = vmatpush2.xpose.msra.mxu0 0.0
    %529 = vmatprep.subr.mxu0 0.0
    %530 = vmatpush2.xpose.msra.mxu0 0.0
    %531 = vmatprep.subr.mxu0 0.0
    %532 = vmatpush2.xpose.msra.mxu0 0.0
    %533 = vmatprep.subr.mxu0 0.0
    %534 = vmatpush2.xpose.msra.mxu0 0.0
    %535 = vmatprep.subr.mxu0 0.0
    %536 = vmatpush2.xpose.msra.mxu0 0.0
    %537 = vmatprep.subr.mxu0 0.0
    %538 = vmatpush2.xpose.msra.mxu0 0.0
    %539 = vmatprep.subr.mxu0 0.0
    %540 = vmatpush2.xpose.msra.mxu0 0.0
    %541 = vmatprep.subr.mxu0 0.0
    %542 = vmatpush2.xpose.msra.mxu0 0.0
    %543 = vmatprep.subr.mxu0 0.0
    %544 = vmatpush2.xpose.msra.mxu0 0.0
    %545 = vmatprep.subr.mxu0 0.0
    %546 = vmatpush2.xpose.msra.mxu0 0.0
    %547 = vmatprep.subr.mxu0 0.0
    %548 = vmatpush2.xpose.msra.mxu0 0.0
    %549 = vmatprep.subr.mxu0 0.0
    %550 = vmatpush2.xpose.msra.mxu0 0.0
    %551 = vmatprep.subr.mxu0 0.0
    %552 = vmatpush2.xpose.msra.mxu0 0.0
    %553 = vmatprep.mubr.f32.mxu0 0.0
    %554 = vmatmul.mubr.f32.gmra.mxu0 %v485
    %v555 = vpop.f32.mrf.mxu0
    %v556 = vadd.f32 0.0, %v555
    %v557 = vpop.f32.mrf.mxu0
    %558 = vdwg.mxu0
    %v559 = vmul.f32 %v479, 0.25
    %v560 = vmul.f32 %v556, 0.25
    %v561 = vlaneseq
    %v562 = vshrl.u32 %v561, 7
    %v563 = vsub.s32 0, %v562
    %v564 = vrot.slane %v300, %v563
    %v565 = vlaneseq
    %v566 = vshrl.u32 %v565, 7
    %v567 = vsub.s32 0, %v566
    %v568 = vrot.slane %v307, %v567
    %v571 = vadd.f32 %v559, %v564
    %v572 = vadd.f32 %v560, %v568
    %vm573 = vcmask 64512
    %v574 = vsel %vm573, %v571, -inf
    %575 = vmax.xlane.f32.xlu0 %v574
    %v576 = vpop.xlane.xlu0 %575
    %v577 = vsel %vm573, %v572, -inf
    %578 = vmax.xlane.f32.xlu0 %v577
    %v579 = vpop.xlane.xlu0 %578
    %v580 = vsub.f32 %v571, %v576
    %v581 = vsub.f32 %v572, %v579
    %v582 = vmul.f32 %v580, 1.442695
    %v583 = vpow.pop %v582
    %v584 = vmul.f32 %v581, 1.442695
    %v585 = vpow.pop %v584
    %v586 = vsel %vm573, %v583, 0.0
    %587 = vadd.xlane.f32.xlu0 %v586
    %v588 = vpop.xlane.xlu0 %587
    %v589 = vsel %vm573, %v585, 0.0
    %590 = vadd.xlane.f32.xlu0 %v589
    %v591 = vpop.xlane.xlu0 %590
    %v592 = vrcp.pop %v588
    %v593 = vrcp.pop %v591
    %v594 = vmul.f32 %v583, %v592
    %v595 = vmul.f32 %v585, %v593
    %596 = vrot.lane.b32.xlu0 %v392, 64
    %v597 = vpop.permute.xlu0 %596
    %v600 = vsel %vm573, %v594, 0
    %602 = vmatprep.subr.mxu0 0.0
    %603 = vmatpush1.msra.mxu0 0.0
    %604 = vmatprep.subr.mxu0 0.0
    %605 = vmatpush1.msra.mxu0 0.0
    %606 = vmatprep.subr.mxu0 0.0
    %607 = vmatpush1.msra.mxu0 0.0
    %608 = vmatprep.subr.mxu0 0.0
    %609 = vmatpush1.msra.mxu0 0.0
    %610 = vmatprep.subr.mxu0 0.0
    %611 = vmatpush1.msra.mxu0 0.0
    %612 = vmatprep.subr.mxu0 0.0
    %613 = vmatpush1.msra.mxu0 0.0
    %614 = vmatprep.subr.mxu0 0.0
    %615 = vmatpush1.msra.mxu0 0.0
    %616 = vmatprep.subr.mxu0 0.0
    %617 = vmatpush1.msra.mxu0 0.0
    %618 = vmatprep.subr.mxu0 0.0
    %619 = vmatpush1.msra.mxu0 0.0
    %620 = vmatprep.subr.mxu0 0.0
    %621 = vmatpush1.msra.mxu0 0.0
    %622 = vmatprep.subr.mxu0 0.0
    %623 = vmatpush1.msra.mxu0 0.0
    %624 = vmatprep.subr.mxu0 0.0
    %625 = vmatpush1.msra.mxu0 0.0
    %626 = vmatprep.subr.mxu0 0.0
    %627 = vmatpush1.msra.mxu0 0.0
    %628 = vmatprep.subr.mxu0 0.0
    %629 = vmatpush1.msra.mxu0 0.0
    %630 = vmatprep.subr.mxu0 0.0
    %631 = vmatpush1.msra.mxu0 0.0
    %632 = vmatprep.subr.mxu0 0.0
    %633 = vmatpush1.msra.mxu0 %v597
    %634 = vmatprep.subr.mxu0 0.0
    %635 = vmatpush2.msra.mxu0 0.0
    %636 = vmatprep.subr.mxu0 0.0
    %637 = vmatpush2.msra.mxu0 0.0
    %638 = vmatprep.subr.mxu0 0.0
    %639 = vmatpush2.msra.mxu0 0.0
    %640 = vmatprep.subr.mxu0 0.0
    %641 = vmatpush2.msra.mxu0 0.0
    %642 = vmatprep.subr.mxu0 0.0
    %643 = vmatpush2.msra.mxu0 0.0
    %644 = vmatprep.subr.mxu0 0.0
    %645 = vmatpush2.msra.mxu0 0.0
    %646 = vmatprep.subr.mxu0 0.0
    %647 = vmatpush2.msra.mxu0 0.0
    %648 = vmatprep.subr.mxu0 0.0
    %649 = vmatpush2.msra.mxu0 0.0
    %650 = vmatprep.subr.mxu0 0.0
    %651 = vmatpush2.msra.mxu0 0.0
    %652 = vmatprep.subr.mxu0 0.0
    %653 = vmatpush2.msra.mxu0 0.0
    %654 = vmatprep.subr.mxu0 0.0
    %655 = vmatpush2.msra.mxu0 0.0
    %656 = vmatprep.subr.mxu0 0.0
    %657 = vmatpush2.msra.mxu0 0.0
    %658 = vmatprep.subr.mxu0 0.0
    %659 = vmatpush2.msra.mxu0 0.0
    %660 = vmatprep.subr.mxu0 0.0
    %661 = vmatpush2.msra.mxu0 0.0
    %662 = vmatprep.subr.mxu0 0.0
    %663 = vmatpush2.msra.mxu0 0.0
    %664 = vmatprep.subr.mxu0 0.0
    %665 = vmatpush2.msra.mxu0 0.0
    %666 = vmatprep.mubr.f32.mxu0 0.0
    %667 = vmatmul.mubr.f32.gmra.mxu0 %v600
    %v668 = vpop.f32.mrf.mxu0
    %v669 = vadd.f32 0.0, %v668
    %v670 = vpop.f32.mrf.mxu0
    %671 = vdwg.mxu0
    %672 = vrot.lane.b32.xlu0 %v397, 64
    %v673 = vpop.permute.xlu0 %672
    %v676 = vsel %vm573, %v595, 0
    %678 = vmatprep.subr.mxu0 0.0
    %679 = vmatpush1.msra.mxu0 0.0
    %680 = vmatprep.subr.mxu0 0.0
    %681 = vmatpush1.msra.mxu0 0.0
    %682 = vmatprep.subr.mxu0 0.0
    %683 = vmatpush1.msra.mxu0 0.0
    %684 = vmatprep.subr.mxu0 0.0
    %685 = vmatpush1.msra.mxu0 0.0
    %686 = vmatprep.subr.mxu0 0.0
    %687 = vmatpush1.msra.mxu0 0.0
    %688 = vmatprep.subr.mxu0 0.0
    %689 = vmatpush1.msra.mxu0 0.0
    %690 = vmatprep.subr.mxu0 0.0
    %691 = vmatpush1.msra.mxu0 0.0
    %692 = vmatprep.subr.mxu0 0.0
    %693 = vmatpush1.msra.mxu0 0.0
    %694 = vmatprep.subr.mxu0 0.0
    %695 = vmatpush1.msra.mxu0 0.0
    %696 = vmatprep.subr.mxu0 0.0
    %697 = vmatpush1.msra.mxu0 0.0
    %698 = vmatprep.subr.mxu0 0.0
    %699 = vmatpush1.msra.mxu0 0.0
    %700 = vmatprep.subr.mxu0 0.0
    %701 = vmatpush1.msra.mxu0 0.0
    %702 = vmatprep.subr.mxu0 0.0
    %703 = vmatpush1.msra.mxu0 0.0
    %704 = vmatprep.subr.mxu0 0.0
    %705 = vmatpush1.msra.mxu0 0.0
    %706 = vmatprep.subr.mxu0 0.0
    %707 = vmatpush1.msra.mxu0 0.0
    %708 = vmatprep.subr.mxu0 0.0
    %709 = vmatpush1.msra.mxu0 %v673
    %710 = vmatprep.subr.mxu0 0.0
    %711 = vmatpush2.msra.mxu0 0.0
    %712 = vmatprep.subr.mxu0 0.0
    %713 = vmatpush2.msra.mxu0 0.0
    %714 = vmatprep.subr.mxu0 0.0
    %715 = vmatpush2.msra.mxu0 0.0
    %716 = vmatprep.subr.mxu0 0.0
    %717 = vmatpush2.msra.mxu0 0.0
    %718 = vmatprep.subr.mxu0 0.0
    %719 = vmatpush2.msra.mxu0 0.0
    %720 = vmatprep.subr.mxu0 0.0
    %721 = vmatpush2.msra.mxu0 0.0
    %722 = vmatprep.subr.mxu0 0.0
    %723 = vmatpush2.msra.mxu0 0.0
    %724 = vmatprep.subr.mxu0 0.0
    %725 = vmatpush2.msra.mxu0 0.0
    %726 = vmatprep.subr.mxu0 0.0
    %727 = vmatpush2.msra.mxu0 0.0
    %728 = vmatprep.subr.mxu0 0.0
    %729 = vmatpush2.msra.mxu0 0.0
    %730 = vmatprep.subr.mxu0 0.0
    %731 = vmatpush2.msra.mxu0 0.0
    %732 = vmatprep.subr.mxu0 0.0
    %733 = vmatpush2.msra.mxu0 0.0
    %734 = vmatprep.subr.mxu0 0.0
    %735 = vmatpush2.msra.mxu0 0.0
    %736 = vmatprep.subr.mxu0 0.0
    %737 = vmatpush2.msra.mxu0 0.0
    %738 = vmatprep.subr.mxu0 0.0
    %739 = vmatpush2.msra.mxu0 0.0
    %740 = vmatprep.subr.mxu0 0.0
    %741 = vmatpush2.msra.mxu0 0.0
    %742 = vmatprep.mubr.f32.mxu0 0.0
    %743 = vmatmul.mubr.f32.gmra.mxu0 %v676
    %v744 = vpop.f32.mrf.mxu0
    %v745 = vadd.f32 0.0, %v744
    %v746 = vpop.f32.mrf.mxu0
    %747 = vdwg.mxu0
    %748 = vrot.lane.b32.xlu0 %v392, 112
    %v749 = vpop.permute.xlu0 %748
    %750 = vrot.lane.b32.xlu0 %v392, 80
    %v751 = vpop.permute.xlu0 %750
    %v752 = vsel %vm407, %v749, 0
    %v754 = vsel %vm407, %v751, 0
    %756 = vmatprep.subr.mxu0 0.0
    %757 = vmatpush1.xpose.msra.mxu0 0.0
    %758 = vmatprep.subr.mxu0 0.0
    %759 = vmatpush1.xpose.msra.mxu0 0.0
    %760 = vmatprep.subr.mxu0 0.0
    %761 = vmatpush1.xpose.msra.mxu0 0.0
    %762 = vmatprep.subr.mxu0 0.0
    %763 = vmatpush1.xpose.msra.mxu0 0.0
    %764 = vmatprep.subr.mxu0 0.0
    %765 = vmatpush1.xpose.msra.mxu0 0.0
    %766 = vmatprep.subr.mxu0 0.0
    %767 = vmatpush1.xpose.msra.mxu0 0.0
    %768 = vmatprep.subr.mxu0 0.0
    %769 = vmatpush1.xpose.msra.mxu0 0.0
    %770 = vmatprep.subr.mxu0 0.0
    %771 = vmatpush1.xpose.msra.mxu0 0.0
    %772 = vmatprep.subr.mxu0 0.0
    %773 = vmatpush1.xpose.msra.mxu0 0.0
    %774 = vmatprep.subr.mxu0 0.0
    %775 = vmatpush1.xpose.msra.mxu0 0.0
    %776 = vmatprep.subr.mxu0 0.0
    %777 = vmatpush1.xpose.msra.mxu0 0.0
    %778 = vmatprep.subr.mxu0 0.0
    %779 = vmatpush1.xpose.msra.mxu0 0.0
    %780 = vmatprep.subr.mxu0 0.0
    %781 = vmatpush1.xpose.msra.mxu0 0.0
    %782 = vmatprep.subr.mxu0 0.0
    %783 = vmatpush1.xpose.msra.mxu0 0.0
    %784 = vmatprep.subr.mxu0 0.0
    %785 = vmatpush1.xpose.msra.mxu0 0.0
    %786 = vmatprep.subr.mxu0 0.0
    %787 = vmatpush1.xpose.msra.mxu0 %v754
    %788 = vmatprep.subr.mxu0 0.0
    %789 = vmatpush2.xpose.msra.mxu0 0.0
    %790 = vmatprep.subr.mxu0 0.0
    %791 = vmatpush2.xpose.msra.mxu0 0.0
    %792 = vmatprep.subr.mxu0 0.0
    %793 = vmatpush2.xpose.msra.mxu0 0.0
    %794 = vmatprep.subr.mxu0 0.0
    %795 = vmatpush2.xpose.msra.mxu0 0.0
    %796 = vmatprep.subr.mxu0 0.0
    %797 = vmatpush2.xpose.msra.mxu0 0.0
    %798 = vmatprep.subr.mxu0 0.0
    %799 = vmatpush2.xpose.msra.mxu0 0.0
    %800 = vmatprep.subr.mxu0 0.0
    %801 = vmatpush2.xpose.msra.mxu0 0.0
    %802 = vmatprep.subr.mxu0 0.0
    %803 = vmatpush2.xpose.msra.mxu0 0.0
    %804 = vmatprep.subr.mxu0 0.0
    %805 = vmatpush2.xpose.msra.mxu0 0.0
    %806 = vmatprep.subr.mxu0 0.0
    %807 = vmatpush2.xpose.msra.mxu0 0.0
    %808 = vmatprep.subr.mxu0 0.0
    %809 = vmatpush2.xpose.msra.mxu0 0.0
    %810 = vmatprep.subr.mxu0 0.0
    %811 = vmatpush2.xpose.msra.mxu0 0.0
    %812 = vmatprep.subr.mxu0 0.0
    %813 = vmatpush2.xpose.msra.mxu0 0.0
    %814 = vmatprep.subr.mxu0 0.0
    %815 = vmatpush2.xpose.msra.mxu0 0.0
    %816 = vmatprep.subr.mxu0 0.0
    %817 = vmatpush2.xpose.msra.mxu0 0.0
    %818 = vmatprep.subr.mxu0 0.0
    %819 = vmatpush2.xpose.msra.mxu0 0.0
    %820 = vmatprep.mubr.f32.mxu0 0.0
    %821 = vmatmul.mubr.f32.gmra.mxu0 %v752
    %v822 = vpop.f32.mrf.mxu0
    %v823 = vadd.f32 0.0, %v822
    %v824 = vpop.f32.mrf.mxu0
    %825 = vdwg.mxu0
    %826 = vrot.lane.b32.xlu0 %v397, 112
    %v827 = vpop.permute.xlu0 %826
    %828 = vrot.lane.b32.xlu0 %v397, 80
    %v829 = vpop.permute.xlu0 %828
    %v830 = vsel %vm407, %v827, 0
    %v832 = vsel %vm407, %v829, 0
    %834 = vmatprep.subr.mxu0 0.0
    %835 = vmatpush1.xpose.msra.mxu0 0.0
    %836 = vmatprep.subr.mxu0 0.0
    %837 = vmatpush1.xpose.msra.mxu0 0.0
    %838 = vmatprep.subr.mxu0 0.0
    %839 = vmatpush1.xpose.msra.mxu0 0.0
    %840 = vmatprep.subr.mxu0 0.0
    %841 = vmatpush1.xpose.msra.mxu0 0.0
    %842 = vmatprep.subr.mxu0 0.0
    %843 = vmatpush1.xpose.msra.mxu0 0.0
    %844 = vmatprep.subr.mxu0 0.0
    %845 = vmatpush1.xpose.msra.mxu0 0.0
    %846 = vmatprep.subr.mxu0 0.0
    %847 = vmatpush1.xpose.msra.mxu0 0.0
    %848 = vmatprep.subr.mxu0 0.0
    %849 = vmatpush1.xpose.msra.mxu0 0.0
    %850 = vmatprep.subr.mxu0 0.0
    %851 = vmatpush1.xpose.msra.mxu0 0.0
    %852 = vmatprep.subr.mxu0 0.0
    %853 = vmatpush1.xpose.msra.mxu0 0.0
    %854 = vmatprep.subr.mxu0 0.0
    %855 = vmatpush1.xpose.msra.mxu0 0.0
    %856 = vmatprep.subr.mxu0 0.0
    %857 = vmatpush1.xpose.msra.mxu0 0.0
    %858 = vmatprep.subr.mxu0 0.0
    %859 = vmatpush1.xpose.msra.mxu0 0.0
    %860 = vmatprep.subr.mxu0 0.0
    %861 = vmatpush1.xpose.msra.mxu0 0.0
    %862 = vmatprep.subr.mxu0 0.0
    %863 = vmatpush1.xpose.msra.mxu0 0.0
    %864 = vmatprep.subr.mxu0 0.0
    %865 = vmatpush1.xpose.msra.mxu0 %v832
    %866 = vmatprep.subr.mxu0 0.0
    %867 = vmatpush2.xpose.msra.mxu0 0.0
    %868 = vmatprep.subr.mxu0 0.0
    %869 = vmatpush2.xpose.msra.mxu0 0.0
    %870 = vmatprep.subr.mxu0 0.0
    %871 = vmatpush2.xpose.msra.mxu0 0.0
    %872 = vmatprep.subr.mxu0 0.0
    %873 = vmatpush2.xpose.msra.mxu0 0.0
    %874 = vmatprep.subr.mxu0 0.0
    %875 = vmatpush2.xpose.msra.mxu0 0.0
    %876 = vmatprep.subr.mxu0 0.0
    %877 = vmatpush2.xpose.msra.mxu0 0.0
    %878 = vmatprep.subr.mxu0 0.0
    %879 = vmatpush2.xpose.msra.mxu0 0.0
    %880 = vmatprep.subr.mxu0 0.0
    %881 = vmatpush2.xpose.msra.mxu0 0.0
    %882 = vmatprep.subr.mxu0 0.0
    %883 = vmatpush2.xpose.msra.mxu0 0.0
    %884 = vmatprep.subr.mxu0 0.0
    %885 = vmatpush2.xpose.msra.mxu0 0.0
    %886 = vmatprep.subr.mxu0 0.0
    %887 = vmatpush2.xpose.msra.mxu0 0.0
    %888 = vmatprep.subr.mxu0 0.0
    %889 = vmatpush2.xpose.msra.mxu0 0.0
    %890 = vmatprep.subr.mxu0 0.0
    %891 = vmatpush2.xpose.msra.mxu0 0.0
    %892 = vmatprep.subr.mxu0 0.0
    %893 = vmatpush2.xpose.msra.mxu0 0.0
    %894 = vmatprep.subr.mxu0 0.0
    %895 = vmatpush2.xpose.msra.mxu0 0.0
    %896 = vmatprep.subr.mxu0 0.0
    %897 = vmatpush2.xpose.msra.mxu0 0.0
    %898 = vmatprep.mubr.f32.mxu0 0.0
    %899 = vmatmul.mubr.f32.gmra.mxu0 %v830
    %v900 = vpop.f32.mrf.mxu0
    %v901 = vadd.f32 0.0, %v900
    %v902 = vpop.f32.mrf.mxu0
    %903 = vdwg.mxu0
    %v904 = vmul.f32 %v823, 0.25
    %v905 = vmul.f32 %v901, 0.25
    %v906 = vadd.f32 %v904, %v564
    %v907 = vadd.f32 %v905, %v568
    %v908 = vsel %vm573, %v906, -inf
    %909 = vmax.xlane.f32.xlu0 %v908
    %v910 = vpop.xlane.xlu0 %909
    %v911 = vsel %vm573, %v907, -inf
    %912 = vmax.xlane.f32.xlu0 %v911
    %v913 = vpop.xlane.xlu0 %912
    %v914 = vsub.f32 %v906, %v910
    %v915 = vsub.f32 %v907, %v913
    %v916 = vmul.f32 %v914, 1.442695
    %v917 = vpow.pop %v916
    %v918 = vmul.f32 %v915, 1.442695
    %v919 = vpow.pop %v918
    %v920 = vsel %vm573, %v917, 0.0
    %921 = vadd.xlane.f32.xlu0 %v920
    %v922 = vpop.xlane.xlu0 %921
    %v923 = vsel %vm573, %v919, 0.0
    %924 = vadd.xlane.f32.xlu0 %v923
    %v925 = vpop.xlane.xlu0 %924
    %v926 = vrcp.pop %v922
    %v927 = vrcp.pop %v925
    %v928 = vmul.f32 %v917, %v926
    %v929 = vmul.f32 %v919, %v927
    %930 = vrot.lane.b32.xlu0 %v392, 48
    %v931 = vpop.permute.xlu0 %930
    %v934 = vsel %vm573, %v928, 0
    %936 = vmatprep.subr.mxu0 0.0
    %937 = vmatpush1.msra.mxu0 0.0
    %938 = vmatprep.subr.mxu0 0.0
    %939 = vmatpush1.msra.mxu0 0.0
    %940 = vmatprep.subr.mxu0 0.0
    %941 = vmatpush1.msra.mxu0 0.0
    %942 = vmatprep.subr.mxu0 0.0
    %943 = vmatpush1.msra.mxu0 0.0
    %944 = vmatprep.subr.mxu0 0.0
    %945 = vmatpush1.msra.mxu0 0.0
    %946 = vmatprep.subr.mxu0 0.0
    %947 = vmatpush1.msra.mxu0 0.0
    %948 = vmatprep.subr.mxu0 0.0
    %949 = vmatpush1.msra.mxu0 0.0
    %950 = vmatprep.subr.mxu0 0.0
    %951 = vmatpush1.msra.mxu0 0.0
    %952 = vmatprep.subr.mxu0 0.0
    %953 = vmatpush1.msra.mxu0 0.0
    %954 = vmatprep.subr.mxu0 0.0
    %955 = vmatpush1.msra.mxu0 0.0
    %956 = vmatprep.subr.mxu0 0.0
    %957 = vmatpush1.msra.mxu0 0.0
    %958 = vmatprep.subr.mxu0 0.0
    %959 = vmatpush1.msra.mxu0 0.0
    %960 = vmatprep.subr.mxu0 0.0
    %961 = vmatpush1.msra.mxu0 0.0
    %962 = vmatprep.subr.mxu0 0.0
    %963 = vmatpush1.msra.mxu0 0.0
    %964 = vmatprep.subr.mxu0 0.0
    %965 = vmatpush1.msra.mxu0 0.0
    %966 = vmatprep.subr.mxu0 0.0
    %967 = vmatpush1.msra.mxu0 %v931
    %968 = vmatprep.subr.mxu0 0.0
    %969 = vmatpush2.msra.mxu0 0.0
    %970 = vmatprep.subr.mxu0 0.0
    %971 = vmatpush2.msra.mxu0 0.0
    %972 = vmatprep.subr.mxu0 0.0
    %973 = vmatpush2.msra.mxu0 0.0
    %974 = vmatprep.subr.mxu0 0.0
    %975 = vmatpush2.msra.mxu0 0.0
    %976 = vmatprep.subr.mxu0 0.0
    %977 = vmatpush2.msra.mxu0 0.0
    %978 = vmatprep.subr.mxu0 0.0
    %979 = vmatpush2.msra.mxu0 0.0
    %980 = vmatprep.subr.mxu0 0.0
    %981 = vmatpush2.msra.mxu0 0.0
    %982 = vmatprep.subr.mxu0 0.0
    %983 = vmatpush2.msra.mxu0 0.0
    %984 = vmatprep.subr.mxu0 0.0
    %985 = vmatpush2.msra.mxu0 0.0
    %986 = vmatprep.subr.mxu0 0.0
    %987 = vmatpush2.msra.mxu0 0.0
    %988 = vmatprep.subr.mxu0 0.0
    %989 = vmatpush2.msra.mxu0 0.0
    %990 = vmatprep.subr.mxu0 0.0
    %991 = vmatpush2.msra.mxu0 0.0
    %992 = vmatprep.subr.mxu0 0.0
    %993 = vmatpush2.msra.mxu0 0.0
    %994 = vmatprep.subr.mxu0 0.0
    %995 = vmatpush2.msra.mxu0 0.0
    %996 = vmatprep.subr.mxu0 0.0
    %997 = vmatpush2.msra.mxu0 0.0
    %998 = vmatprep.subr.mxu0 0.0
    %999 = vmatpush2.msra.mxu0 0.0
    %1000 = vmatprep.mubr.f32.mxu0 0.0
    %1001 = vmatmul.mubr.f32.gmra.mxu0 %v934
    %v1002 = vpop.f32.mrf.mxu0
    %v1003 = vadd.f32 0.0, %v1002
    %v1004 = vpop.f32.mrf.mxu0
    %1005 = vdwg.mxu0
    %1006 = vrot.lane.b32.xlu0 %v397, 48
    %v1007 = vpop.permute.xlu0 %1006
    %v1010 = vsel %vm573, %v929, 0
    %1012 = vmatprep.subr.mxu0 0.0
    %1013 = vmatpush1.msra.mxu0 0.0
    %1014 = vmatprep.subr.mxu0 0.0
    %1015 = vmatpush1.msra.mxu0 0.0
    %1016 = vmatprep.subr.mxu0 0.0
    %1017 = vmatpush1.msra.mxu0 0.0
    %1018 = vmatprep.subr.mxu0 0.0
    %1019 = vmatpush1.msra.mxu0 0.0
    %1020 = vmatprep.subr.mxu0 0.0
    %1021 = vmatpush1.msra.mxu0 0.0
    %1022 = vmatprep.subr.mxu0 0.0
    %1023 = vmatpush1.msra.mxu0 0.0
    %1024 = vmatprep.subr.mxu0 0.0
    %1025 = vmatpush1.msra.mxu0 0.0
    %1026 = vmatprep.subr.mxu0 0.0
    %1027 = vmatpush1.msra.mxu0 0.0
    %1028 = vmatprep.subr.mxu0 0.0
    %1029 = vmatpush1.msra.mxu0 0.0
    %1030 = vmatprep.subr.mxu0 0.0
    %1031 = vmatpush1.msra.mxu0 0.0
    %1032 = vmatprep.subr.mxu0 0.0
    %1033 = vmatpush1.msra.mxu0 0.0
    %1034 = vmatprep.subr.mxu0 0.0
    %1035 = vmatpush1.msra.mxu0 0.0
    %1036 = vmatprep.subr.mxu0 0.0
    %1037 = vmatpush1.msra.mxu0 0.0
    %1038 = vmatprep.subr.mxu0 0.0
    %1039 = vmatpush1.msra.mxu0 0.0
    %1040 = vmatprep.subr.mxu0 0.0
    %1041 = vmatpush1.msra.mxu0 0.0
    %1042 = vmatprep.subr.mxu0 0.0
    %1043 = vmatpush1.msra.mxu0 %v1007
    %1044 = vmatprep.subr.mxu0 0.0
    %1045 = vmatpush2.msra.mxu0 0.0
    %1046 = vmatprep.subr.mxu0 0.0
    %1047 = vmatpush2.msra.mxu0 0.0
    %1048 = vmatprep.subr.mxu0 0.0
    %1049 = vmatpush2.msra.mxu0 0.0
    %1050 = vmatprep.subr.mxu0 0.0
    %1051 = vmatpush2.msra.mxu0 0.0
    %1052 = vmatprep.subr.mxu0 0.0
    %1053 = vmatpush2.msra.mxu0 0.0
    %1054 = vmatprep.subr.mxu0 0.0
    %1055 = vmatpush2.msra.mxu0 0.0
    %1056 = vmatprep.subr.mxu0 0.0
    %1057 = vmatpush2.msra.mxu0 0.0
    %1058 = vmatprep.subr.mxu0 0.0
    %1059 = vmatpush2.msra.mxu0 0.0
    %1060 = vmatprep.subr.mxu0 0.0
    %1061 = vmatpush2.msra.mxu0 0.0
    %1062 = vmatprep.subr.mxu0 0.0
    %1063 = vmatpush2.msra.mxu0 0.0
    %1064 = vmatprep.subr.mxu0 0.0
    %1065 = vmatpush2.msra.mxu0 0.0
    %1066 = vmatprep.subr.mxu0 0.0
    %1067 = vmatpush2.msra.mxu0 0.0
    %1068 = vmatprep.subr.mxu0 0.0
    %1069 = vmatpush2.msra.mxu0 0.0
    %1070 = vmatprep.subr.mxu0 0.0
    %1071 = vmatpush2.msra.mxu0 0.0
    %1072 = vmatprep.subr.mxu0 0.0
    %1073 = vmatpush2.msra.mxu0 0.0
    %1074 = vmatprep.subr.mxu0 0.0
    %1075 = vmatpush2.msra.mxu0 0.0
    %1076 = vmatprep.mubr.f32.mxu0 0.0
    %1077 = vmatmul.mubr.f32.gmra.mxu0 %v1010
    %v1078 = vpop.f32.mrf.mxu0
    %v1079 = vadd.f32 0.0, %v1078
    %v1080 = vpop.f32.mrf.mxu0
    %1081 = vdwg.mxu0
    %v1083 = vsel %vm407, %v1003, 0
    %v1086 = vsel %vm407, %v1079, 0
    %1088 = vmatprep.subr.mxu0 0.0
    %1089 = vmatpush1.msra.mxu0 0.0
    %1090 = vmatprep.subr.mxu0 0.0
    %1091 = vmatpush1.msra.mxu0 0.0
    %1092 = vmatprep.subr.mxu0 0.0
    %1093 = vmatpush1.msra.mxu0 0.0
    %1094 = vmatprep.subr.mxu0 0.0
    %1095 = vmatpush1.msra.mxu0 0.0
    %1096 = vmatprep.subr.mxu0 0.0
    %1097 = vmatpush1.msra.mxu0 0.0
    %1098 = vmatprep.subr.mxu0 0.0
    %1099 = vmatpush1.msra.mxu0 0.0
    %1100 = vmatprep.subr.mxu0 0.0
    %1101 = vmatpush1.msra.mxu0 0.0
    %1102 = vmatprep.subr.mxu0 0.0
    %1103 = vmatpush1.msra.mxu0 0.0
    %1104 = vmatprep.subr.mxu0 0.0
    %1105 = vmatpush1.msra.mxu0 0.0
    %1106 = vmatprep.subr.mxu0 0.0
    %1107 = vmatpush1.msra.mxu0 0.0
    %1108 = vmatprep.subr.mxu0 0.0
    %1109 = vmatpush1.msra.mxu0 0.0
    %1110 = vmatprep.subr.mxu0 0.0
    %1111 = vmatpush1.msra.mxu0 0.0
    %1112 = vmatprep.subr.mxu0 0.0
    %1113 = vmatpush1.msra.mxu0 0.0
    %1114 = vmatprep.subr.mxu0 0.0
    %1115 = vmatpush1.msra.mxu0 0.0
    %1116 = vmatprep.subr.mxu0 0.0
    %1117 = vmatpush1.msra.mxu0 %v403
    %1118 = vmatprep.subr.mxu0 0.0
    %1119 = vmatpush1.msra.mxu0 %v402
    %1120 = vmatprep.subr.mxu0 0.0
    %1121 = vmatpush2.msra.mxu0 0.0
    %1122 = vmatprep.subr.mxu0 0.0
    %1123 = vmatpush2.msra.mxu0 0.0
    %1124 = vmatprep.subr.mxu0 0.0
    %1125 = vmatpush2.msra.mxu0 0.0
    %1126 = vmatprep.subr.mxu0 0.0
    %1127 = vmatpush2.msra.mxu0 0.0
    %1128 = vmatprep.subr.mxu0 0.0
    %1129 = vmatpush2.msra.mxu0 0.0
    %1130 = vmatprep.subr.mxu0 0.0
    %1131 = vmatpush2.msra.mxu0 0.0
    %1132 = vmatprep.subr.mxu0 0.0
    %1133 = vmatpush2.msra.mxu0 0.0
    %1134 = vmatprep.subr.mxu0 0.0
    %1135 = vmatpush2.msra.mxu0 0.0
    %1136 = vmatprep.subr.mxu0 0.0
    %1137 = vmatpush2.msra.mxu0 0.0
    %1138 = vmatprep.subr.mxu0 0.0
    %1139 = vmatpush2.msra.mxu0 0.0
    %1140 = vmatprep.subr.mxu0 0.0
    %1141 = vmatpush2.msra.mxu0 0.0
    %1142 = vmatprep.subr.mxu0 0.0
    %1143 = vmatpush2.msra.mxu0 0.0
    %1144 = vmatprep.subr.mxu0 0.0
    %1145 = vmatpush2.msra.mxu0 0.0
    %1146 = vmatprep.subr.mxu0 0.0
    %1147 = vmatpush2.msra.mxu0 0.0
    %1148 = vmatprep.subr.mxu0 0.0
    %1149 = vmatpush2.msra.mxu0 0.0
    %1150 = vmatprep.subr.mxu0 0.0
    %1151 = vmatpush2.msra.mxu0 0.0
    %1152 = vmatprep.mubr.f32.mxu0 0.0
    %1153 = vmatmul.mubr.f32.gmra.mxu0 %v1083
    %v1154 = vpop.f32.mrf.mxu0
    %v1155 = vadd.f32 0.0, %v1154
    %v1156 = vpop.f32.mrf.mxu0
    %1157 = vmatprep.mubr.f32.mxu0 0.0
    %1158 = vmatmul.mubr.f32.gmra.mxu0 %v1086
    %v1159 = vpop.f32.mrf.mxu0
    %v1160 = vadd.f32 0.0, %v1159
    %v1161 = vpop.f32.mrf.mxu0
    %1162 = vdwg.mxu0
    %v1164 = vsel %vm407, %v669, 0
    %v1167 = vsel %vm407, %v745, 0
    %1169 = vmatprep.subr.mxu0 0.0
    %1170 = vmatpush1.msra.mxu0 0.0
    %1171 = vmatprep.subr.mxu0 0.0
    %1172 = vmatpush1.msra.mxu0 0.0
    %1173 = vmatprep.subr.mxu0 0.0
    %1174 = vmatpush1.msra.mxu0 0.0
    %1175 = vmatprep.subr.mxu0 0.0
    %1176 = vmatpush1.msra.mxu0 0.0
    %1177 = vmatprep.subr.mxu0 0.0
    %1178 = vmatpush1.msra.mxu0 0.0
    %1179 = vmatprep.subr.mxu0 0.0
    %1180 = vmatpush1.msra.mxu0 0.0
    %1181 = vmatprep.subr.mxu0 0.0
    %1182 = vmatpush1.msra.mxu0 0.0
    %1183 = vmatprep.subr.mxu0 0.0
    %1184 = vmatpush1.msra.mxu0 0.0
    %1185 = vmatprep.subr.mxu0 0.0
    %1186 = vmatpush1.msra.mxu0 0.0
    %1187 = vmatprep.subr.mxu0 0.0
    %1188 = vmatpush1.msra.mxu0 0.0
    %1189 = vmatprep.subr.mxu0 0.0
    %1190 = vmatpush1.msra.mxu0 0.0
    %1191 = vmatprep.subr.mxu0 0.0
    %1192 = vmatpush1.msra.mxu0 0.0
    %1193 = vmatprep.subr.mxu0 0.0
    %1194 = vmatpush1.msra.mxu0 0.0
    %1195 = vmatprep.subr.mxu0 0.0
    %1196 = vmatpush1.msra.mxu0 0.0
    %1197 = vmatprep.subr.mxu0 0.0
    %1198 = vmatpush1.msra.mxu0 %v401
    %1199 = vmatprep.subr.mxu0 0.0
    %1200 = vmatpush1.msra.mxu0 %v400
    %1201 = vmatprep.subr.mxu0 0.0
    %1202 = vmatpush2.msra.mxu0 0.0
    %1203 = vmatprep.subr.mxu0 0.0
    %1204 = vmatpush2.msra.mxu0 0.0
    %1205 = vmatprep.subr.mxu0 0.0
    %1206 = vmatpush2.msra.mxu0 0.0
    %1207 = vmatprep.subr.mxu0 0.0
    %1208 = vmatpush2.msra.mxu0 0.0
    %1209 = vmatprep.subr.mxu0 0.0
    %1210 = vmatpush2.msra.mxu0 0.0
    %1211 = vmatprep.subr.mxu0 0.0
    %1212 = vmatpush2.msra.mxu0 0.0
    %1213 = vmatprep.subr.mxu0 0.0
    %1214 = vmatpush2.msra.mxu0 0.0
    %1215 = vmatprep.subr.mxu0 0.0
    %1216 = vmatpush2.msra.mxu0 0.0
    %1217 = vmatprep.subr.mxu0 0.0
    %1218 = vmatpush2.msra.mxu0 0.0
    %1219 = vmatprep.subr.mxu0 0.0
    %1220 = vmatpush2.msra.mxu0 0.0
    %1221 = vmatprep.subr.mxu0 0.0
    %1222 = vmatpush2.msra.mxu0 0.0
    %1223 = vmatprep.subr.mxu0 0.0
    %1224 = vmatpush2.msra.mxu0 0.0
    %1225 = vmatprep.subr.mxu0 0.0
    %1226 = vmatpush2.msra.mxu0 0.0
    %1227 = vmatprep.subr.mxu0 0.0
    %1228 = vmatpush2.msra.mxu0 0.0
    %1229 = vmatprep.subr.mxu0 0.0
    %1230 = vmatpush2.msra.mxu0 0.0
    %1231 = vmatprep.subr.mxu0 0.0
    %1232 = vmatpush2.msra.mxu0 0.0
    %1233 = vmatprep.mubr.f32.mxu0 0.0
    %1234 = vmatmul.mubr.f32.gmra.mxu0 %v1164
    %v1235 = vpop.f32.mrf.mxu0
    %v1236 = vadd.f32 %v1155, %v1235
    %v1237 = vpop.f32.mrf.mxu0
    %1238 = vmatprep.mubr.f32.mxu0 0.0
    %1239 = vmatmul.mubr.f32.gmra.mxu0 %v1167
    %v1240 = vpop.f32.mrf.mxu0
    %v1241 = vadd.f32 %v1160, %v1240
    %v1242 = vpop.f32.mrf.mxu0
    %1243 = vdwg.mxu0
    %v1244 = vld [vmem:[#allocation8] sm:$0x1]
    %v1246 = vlaneseq
    %v1247 = vshrl.u32 %v1246, 7
    %v1248 = vsub.s32 0, %v1247
    %v1249 = vrot.slane %v1244, %v1248
    %v1251 = vadd.f32 %v1236, %v1249
    %v1252 = vadd.f32 %v1241, %v1249
    %v1253 = vadd.f32 %v1251, %v280
    %v1254 = vadd.f32 %v1252, %v281
    %v1255 = vld [vmem:[#allocation10] sm:$0x1]
    %v1256 = vld [vmem:[#allocation11] sm:$0x1]
    %v1257 = vsel %vm238, %v1253, 0.0
    %1258 = vadd.xlane.f32.xlu0 %v1257
    %v1259 = vpop.xlane.xlu0 %1258
    %v1260 = vsel %vm238, %v1254, 0.0
    %1261 = vadd.xlane.f32.xlu0 %v1260
    %v1262 = vpop.xlane.xlu0 %1261
    %v1263 = vmul.f32 %v1259, %v245
    %v1264 = vmul.f32 %v1262, %v245
    %v1265 = vsub.f32 %v1253, %v1263
    %v1266 = vsub.f32 %v1254, %v1264
    %v1267 = vmul.f32 %v1265, %v1265
    %v1268 = vmul.f32 %v1266, %v1266
    %v1269 = vsel %vm238, %v1267, 0.0
    %1270 = vadd.xlane.f32.xlu0 %v1269
    %v1271 = vpop.xlane.xlu0 %1270
    %v1272 = vsel %vm238, %v1268, 0.0
    %1273 = vadd.xlane.f32.xlu0 %v1272
    %v1274 = vpop.xlane.xlu0 %1273
    %v1275 = vmul.f32 %v1271, %v245
    %v1276 = vmul.f32 %v1274, %v245
    %v1277 = vadd.f32 %v1275, 1e-05
    %v1278 = vadd.f32 %v1276, 1e-05
    %v1279 = vrsqrt.pop %v1277
    %v1280 = vrsqrt.pop %v1278
    %v1281 = vmul.f32 %v1265, %v1279
    %v1282 = vmul.f32 %v1266, %v1280
    %v1284 = vlaneseq
    %v1285 = vshrl.u32 %v1284, 7
    %v1286 = vsub.s32 0, %v1285
    %v1287 = vrot.slane %v1255, %v1286
    %v1289 = vmul.f32 %v1281, %v1287
    %v1290 = vmul.f32 %v1282, %v1287
    %v1292 = vlaneseq
    %v1293 = vshrl.u32 %v1292, 7
    %v1294 = vsub.s32 0, %v1293
    %v1295 = vrot.slane %v1256, %v1294
    %v1297 = vadd.f32 %v1289, %v1295
    %v1298 = vadd.f32 %v1290, %v1295
    %v1299 = vld [vmem:[#allocation13] sm:$0xff]
    %v1300 = vld [vmem:[#allocation13 + $0x8] sm:$0xff]
    %v1301 = vld [vmem:[#allocation13 + $0x10] sm:$0xff]
    %v1302 = vld [vmem:[#allocation13 + $0x18] sm:$0xff]
    %v1303 = vld [vmem:[#allocation14] sm:$0x1]
    %v1305 = vlaneseq
    %v1306 = vshrl.u32 %v1305, 7
    %v1307 = vsub.s32 0, %v1306
    %v1308 = vrot.slane %v1303, %v1307
    %v1311 = vsel %vm238, %v1297, 0
    %v1314 = vsel %vm238, %v1298, 0
    %1316 = vmatprep.subr.mxu0 0.0
    %1317 = vmatpush1.msra.mxu0 0.0
    %1318 = vmatprep.subr.mxu0 0.0
    %1319 = vmatpush1.msra.mxu0 0.0
    %1320 = vmatprep.subr.mxu0 0.0
    %1321 = vmatpush1.msra.mxu0 0.0
    %1322 = vmatprep.subr.mxu0 0.0
    %1323 = vmatpush1.msra.mxu0 0.0
    %1324 = vmatprep.subr.mxu0 0.0
    %1325 = vmatpush1.msra.mxu0 0.0
    %1326 = vmatprep.subr.mxu0 0.0
    %1327 = vmatpush1.msra.mxu0 0.0
    %1328 = vmatprep.subr.mxu0 0.0
    %1329 = vmatpush1.msra.mxu0 0.0
    %1330 = vmatprep.subr.mxu0 0.0
    %1331 = vmatpush1.msra.mxu0 0.0
    %1332 = vmatprep.subr.mxu0 0.0
    %1333 = vmatpush1.msra.mxu0 0.0
    %1334 = vmatprep.subr.mxu0 0.0
    %1335 = vmatpush1.msra.mxu0 0.0
    %1336 = vmatprep.subr.mxu0 0.0
    %1337 = vmatpush1.msra.mxu0 0.0
    %1338 = vmatprep.subr.mxu0 0.0
    %1339 = vmatpush1.msra.mxu0 0.0
    %1340 = vmatprep.subr.mxu0 0.0
    %1341 = vmatpush1.msra.mxu0 %v1302
    %1342 = vmatprep.subr.mxu0 0.0
    %1343 = vmatpush1.msra.mxu0 %v1301
    %1344 = vmatprep.subr.mxu0 0.0
    %1345 = vmatpush1.msra.mxu0 %v1300
    %1346 = vmatprep.subr.mxu0 0.0
    %1347 = vmatpush1.msra.mxu0 %v1299
    %1348 = vmatprep.subr.mxu0 0.0
    %1349 = vmatpush2.msra.mxu0 0.0
    %1350 = vmatprep.subr.mxu0 0.0
    %1351 = vmatpush2.msra.mxu0 0.0
    %1352 = vmatprep.subr.mxu0 0.0
    %1353 = vmatpush2.msra.mxu0 0.0
    %1354 = vmatprep.subr.mxu0 0.0
    %1355 = vmatpush2.msra.mxu0 0.0
    %1356 = vmatprep.subr.mxu0 0.0
    %1357 = vmatpush2.msra.mxu0 0.0
    %1358 = vmatprep.subr.mxu0 0.0
    %1359 = vmatpush2.msra.mxu0 0.0
    %1360 = vmatprep.subr.mxu0 0.0
    %1361 = vmatpush2.msra.mxu0 0.0
    %1362 = vmatprep.subr.mxu0 0.0
    %1363 = vmatpush2.msra.mxu0 0.0
    %1364 = vmatprep.subr.mxu0 0.0
    %1365 = vmatpush2.msra.mxu0 0.0
    %1366 = vmatprep.subr.mxu0 0.0
    %1367 = vmatpush2.msra.mxu0 0.0
    %1368 = vmatprep.subr.mxu0 0.0
    %1369 = vmatpush2.msra.mxu0 0.0
    %1370 = vmatprep.subr.mxu0 0.0
    %1371 = vmatpush2.msra.mxu0 0.0
    %1372 = vmatprep.subr.mxu0 0.0
    %1373 = vmatpush2.msra.mxu0 0.0
    %1374 = vmatprep.subr.mxu0 0.0
    %1375 = vmatpush2.msra.mxu0 0.0
    %1376 = vmatprep.subr.mxu0 0.0
    %1377 = vmatpush2.msra.mxu0 0.0
    %1378 = vmatprep.subr.mxu0 0.0
    %1379 = vmatpush2.msra.mxu0 0.0
    %1380 = vmatprep.mubr.f32.mxu0 0.0
    %1381 = vmatmul.mubr.f32.gmra.mxu0 %v1311
    %v1382 = vpop.f32.mrf.mxu0
    %v1383 = vadd.f32 %v1308, %v1382
    %v1384 = vpop.f32.mrf.mxu0
    %1385 = vmatprep.mubr.f32.mxu0 0.0
    %1386 = vmatmul.mubr.f32.gmra.mxu0 %v1314
    %v1387 = vpop.f32.mrf.mxu0
    %v1388 = vadd.f32 %v1308, %v1387
    %v1389 = vpop.f32.mrf.mxu0
    %1390 = vdwg.mxu0
    %v1391 = vmul.f32 %v1383, %v1383
    %v1392 = vmul.f32 %v1388, %v1388
    %v1393 = vmul.f32 %v1383, %v1391
    %v1394 = vmul.f32 %v1388, %v1392
    %v1395 = vmul.f32 %v1393, 0.044715
    %v1396 = vmul.f32 %v1394, 0.044715
    %v1397 = vadd.f32 %v1383, %v1395
    %v1398 = vadd.f32 %v1388, %v1396
    %v1399 = vmul.f32 %v1397, 0.7978846
    %v1400 = vmul.f32 %v1398, 0.7978846
    %v1401 = vtanh.pop %v1399
    %v1402 = vtanh.pop %v1400
    %v1403 = vadd.f32 %v1401, 1.0
    %v1404 = vadd.f32 %v1402, 1.0
    %v1405 = vmul.f32 %v1403, 0.5
    %v1406 = vmul.f32 %v1404, 0.5
    %v1407 = vmul.f32 %v1383, %v1405
    %v1408 = vmul.f32 %v1388, %v1406
    %v1409 = vld [vmem:[%s12] sm:$0xff]
    %v1410 = vld [vmem:[%s12 + $0x8] sm:$0xff]
    %v1411 = vld [vmem:[%s12 + $0x10] sm:$0xff]
    %v1412 = vld [vmem:[%s12 + $0x18] sm:$0xff]
    %v1413 = vld [vmem:[%s12 + $0x20] sm:$0xff]
    %v1414 = vld [vmem:[%s12 + $0x28] sm:$0xff]
    %v1415 = vld [vmem:[%s12 + $0x30] sm:$0xff]
    %v1416 = vld [vmem:[%s12 + $0x38] sm:$0xff]
    %v1417 = vld [vmem:[#allocation16] sm:$0x1]
    %v1419 = vlaneseq
    %v1420 = vshrl.u32 %v1419, 7
    %v1421 = vsub.s32 0, %v1420
    %v1422 = vrot.slane %v1417, %v1421
    %vm1424 = vcmask 523264
    %v1426 = vsel %vm1424, %v1407, 0
    %v1429 = vsel %vm1424, %v1408, 0
    %1431 = vmatprep.subr.mxu0 0.0
    %1432 = vmatpush1.msra.mxu0 0.0
    %1433 = vmatprep.subr.mxu0 0.0
    %1434 = vmatpush1.msra.mxu0 0.0
    %1435 = vmatprep.subr.mxu0 0.0
    %1436 = vmatpush1.msra.mxu0 0.0
    %1437 = vmatprep.subr.mxu0 0.0
    %1438 = vmatpush1.msra.mxu0 0.0
    %1439 = vmatprep.subr.mxu0 0.0
    %1440 = vmatpush1.msra.mxu0 0.0
    %1441 = vmatprep.subr.mxu0 0.0
    %1442 = vmatpush1.msra.mxu0 0.0
    %1443 = vmatprep.subr.mxu0 0.0
    %1444 = vmatpush1.msra.mxu0 0.0
    %1445 = vmatprep.subr.mxu0 0.0
    %1446 = vmatpush1.msra.mxu0 0.0
    %1447 = vmatprep.subr.mxu0 0.0
    %1448 = vmatpush1.msra.mxu0 %v1416
    %1449 = vmatprep.subr.mxu0 0.0
    %1450 = vmatpush1.msra.mxu0 %v1415
    %1451 = vmatprep.subr.mxu0 0.0
    %1452 = vmatpush1.msra.mxu0 %v1414
    %1453 = vmatprep.subr.mxu0 0.0
    %1454 = vmatpush1.msra.mxu0 %v1413
    %1455 = vmatprep.subr.mxu0 0.0
    %1456 = vmatpush1.msra.mxu0 %v1412
    %1457 = vmatprep.subr.mxu0 0.0
    %1458 = vmatpush1.msra.mxu0 %v1411
    %1459 = vmatprep.subr.mxu0 0.0
    %1460 = vmatpush1.msra.mxu0 %v1410
    %1461 = vmatprep.subr.mxu0 0.0
    %1462 = vmatpush1.msra.mxu0 %v1409
    %1463 = vmatprep.subr.mxu0 0.0
    %1464 = vmatpush2.msra.mxu0 0.0
    %1465 = vmatprep.subr.mxu0 0.0
    %1466 = vmatpush2.msra.mxu0 0.0
    %1467 = vmatprep.subr.mxu0 0.0
    %1468 = vmatpush2.msra.mxu0 0.0
    %1469 = vmatprep.subr.mxu0 0.0
    %1470 = vmatpush2.msra.mxu0 0.0
    %1471 = vmatprep.subr.mxu0 0.0
    %1472 = vmatpush2.msra.mxu0 0.0
    %1473 = vmatprep.subr.mxu0 0.0
    %1474 = vmatpush2.msra.mxu0 0.0
    %1475 = vmatprep.subr.mxu0 0.0
    %1476 = vmatpush2.msra.mxu0 0.0
    %1477 = vmatprep.subr.mxu0 0.0
    %1478 = vmatpush2.msra.mxu0 0.0
    %1479 = vmatprep.subr.mxu0 0.0
    %1480 = vmatpush2.msra.mxu0 0.0
    %1481 = vmatprep.subr.mxu0 0.0
    %1482 = vmatpush2.msra.mxu0 0.0
    %1483 = vmatprep.subr.mxu0 0.0
    %1484 = vmatpush2.msra.mxu0 0.0
    %1485 = vmatprep.subr.mxu0 0.0
    %1486 = vmatpush2.msra.mxu0 0.0
    %1487 = vmatprep.subr.mxu0 0.0
    %1488 = vmatpush2.msra.mxu0 0.0
    %1489 = vmatprep.subr.mxu0 0.0
    %1490 = vmatpush2.msra.mxu0 0.0
    %1491 = vmatprep.subr.mxu0 0.0
    %1492 = vmatpush2.msra.mxu0 0.0
    %1493 = vmatprep.subr.mxu0 0.0
    %1494 = vmatpush2.msra.mxu0 0.0
    %1495 = vmatprep.mubr.f32.mxu0 0.0
    %1496 = vmatmul.mubr.f32.gmra.mxu0 %v1426
    %v1497 = vpop.f32.mrf.mxu0
    %v1498 = vadd.f32 %v1422, %v1497
    %v1499 = vpop.f32.mrf.mxu0
    %1500 = vmatprep.mubr.f32.mxu0 0.0
    %1501 = vmatmul.mubr.f32.gmra.mxu0 %v1429
    %v1502 = vpop.f32.mrf.mxu0
    %v1503 = vadd.f32 %v1422, %v1502
    %v1504 = vpop.f32.mrf.mxu0
    %1505 = vdwg.mxu0
    %v1506 = vadd.f32 %v1498, %v1297
    %v1507 = vadd.f32 %v1503, %v1298
    %v1508 = vld [vmem:[#allocation17] sm:$0x1]
    %v1509 = vld [vmem:[#allocation19] sm:$0x1]
    %v1510 = vsel %vm238, %v1506, 0.0
    %1511 = vadd.xlane.f32.xlu0 %v1510
    %v1512 = vpop.xlane.xlu0 %1511
    %v1513 = vsel %vm238, %v1507, 0.0
    %1514 = vadd.xlane.f32.xlu0 %v1513
    %v1515 = vpop.xlane.xlu0 %1514
    %v1516 = vmul.f32 %v1512, %v245
    %v1517 = vmul.f32 %v1515, %v245
    %v1518 = vsub.f32 %v1506, %v1516
    %v1519 = vsub.f32 %v1507, %v1517
    %v1520 = vmul.f32 %v1518, %v1518
    %v1521 = vmul.f32 %v1519, %v1519
    %v1522 = vsel %vm238, %v1520, 0.0
    %1523 = vadd.xlane.f32.xlu0 %v1522
    %v1524 = vpop.xlane.xlu0 %1523
    %v1525 = vsel %vm238, %v1521, 0.0
    %1526 = vadd.xlane.f32.xlu0 %v1525
    %v1527 = vpop.xlane.xlu0 %1526
    %v1528 = vmul.f32 %v1524, %v245
    %v1529 = vmul.f32 %v1527, %v245
    %v1530 = vadd.f32 %v1528, 1e-05
    %v1531 = vadd.f32 %v1529, 1e-05
    %v1532 = vrsqrt.pop %v1530
    %v1533 = vrsqrt.pop %v1531
    %v1534 = vmul.f32 %v1518, %v1532
    %v1535 = vmul.f32 %v1519, %v1533
    %v1537 = vlaneseq
    %v1538 = vshrl.u32 %v1537, 7
    %v1539 = vsub.s32 0, %v1538
    %v1540 = vrot.slane %v1508, %v1539
    %v1542 = vmul.f32 %v1534, %v1540
    %v1543 = vmul.f32 %v1535, %v1540
    %v1545 = vlaneseq
    %v1546 = vshrl.u32 %v1545, 7
    %v1547 = vsub.s32 0, %v1546
    %v1548 = vrot.slane %v1509, %v1547
    %v1550 = vadd.f32 %v1542, %v1548
    %v1551 = vadd.f32 %v1543, %v1548
    %s1552 = scalar_lea.vmem %s4, 32
    %v1553 = vld [vmem:[%s1552] sm:$0xff]
    %v1554 = vld [vmem:[%s1552 + $0x8] sm:$0xff]
    %v1555 = vld [vmem:[%s1552 + $0x10] sm:$0xff]
    %v1556 = vld [vmem:[%s1552 + $0x18] sm:$0xff]
    %s1557 = scalar_lea.vmem %s5, 1
    %v1558 = vld [vmem:[%s1557] sm:$0x1]
    %v1560 = vlaneseq
    %v1561 = vshrl.u32 %v1560, 7
    %v1562 = vsub.s32 0, %v1561
    %v1563 = vrot.slane %v1558, %v1562
    %v1566 = vsel %vm238, %v1550, 0
    %v1569 = vsel %vm238, %v1551, 0
    %1571 = vmatprep.subr.mxu0 0.0
    %1572 = vmatpush1.msra.mxu0 0.0
    %1573 = vmatprep.subr.mxu0 0.0
    %1574 = vmatpush1.msra.mxu0 0.0
    %1575 = vmatprep.subr.mxu0 0.0
    %1576 = vmatpush1.msra.mxu0 0.0
    %1577 = vmatprep.subr.mxu0 0.0
    %1578 = vmatpush1.msra.mxu0 0.0
    %1579 = vmatprep.subr.mxu0 0.0
    %1580 = vmatpush1.msra.mxu0 0.0
    %1581 = vmatprep.subr.mxu0 0.0
    %1582 = vmatpush1.msra.mxu0 0.0
    %1583 = vmatprep.subr.mxu0 0.0
    %1584 = vmatpush1.msra.mxu0 0.0
    %1585 = vmatprep.subr.mxu0 0.0
    %1586 = vmatpush1.msra.mxu0 0.0
    %1587 = vmatprep.subr.mxu0 0.0
    %1588 = vmatpush1.msra.mxu0 0.0
    %1589 = vmatprep.subr.mxu0 0.0
    %1590 = vmatpush1.msra.mxu0 0.0
    %1591 = vmatprep.subr.mxu0 0.0
    %1592 = vmatpush1.msra.mxu0 0.0
    %1593 = vmatprep.subr.mxu0 0.0
    %1594 = vmatpush1.msra.mxu0 0.0
    %1595 = vmatprep.subr.mxu0 0.0
    %1596 = vmatpush1.msra.mxu0 %v1556
    %1597 = vmatprep.subr.mxu0 0.0
    %1598 = vmatpush1.msra.mxu0 %v1555
    %1599 = vmatprep.subr.mxu0 0.0
    %1600 = vmatpush1.msra.mxu0 %v1554
    %1601 = vmatprep.subr.mxu0 0.0
    %1602 = vmatpush1.msra.mxu0 %v1553
    %1603 = vmatprep.subr.mxu0 0.0
    %1604 = vmatpush2.msra.mxu0 0.0
    %1605 = vmatprep.subr.mxu0 0.0
    %1606 = vmatpush2.msra.mxu0 0.0
    %1607 = vmatprep.subr.mxu0 0.0
    %1608 = vmatpush2.msra.mxu0 0.0
    %1609 = vmatprep.subr.mxu0 0.0
    %1610 = vmatpush2.msra.mxu0 0.0
    %1611 = vmatprep.subr.mxu0 0.0
    %1612 = vmatpush2.msra.mxu0 0.0
    %1613 = vmatprep.subr.mxu0 0.0
    %1614 = vmatpush2.msra.mxu0 0.0
    %1615 = vmatprep.subr.mxu0 0.0
    %1616 = vmatpush2.msra.mxu0 0.0
    %1617 = vmatprep.subr.mxu0 0.0
    %1618 = vmatpush2.msra.mxu0 0.0
    %1619 = vmatprep.subr.mxu0 0.0
    %1620 = vmatpush2.msra.mxu0 0.0
    %1621 = vmatprep.subr.mxu0 0.0
    %1622 = vmatpush2.msra.mxu0 0.0
    %1623 = vmatprep.subr.mxu0 0.0
    %1624 = vmatpush2.msra.mxu0 0.0
    %1625 = vmatprep.subr.mxu0 0.0
    %1626 = vmatpush2.msra.mxu0 0.0
    %1627 = vmatprep.subr.mxu0 0.0
    %1628 = vmatpush2.msra.mxu0 0.0
    %1629 = vmatprep.subr.mxu0 0.0
    %1630 = vmatpush2.msra.mxu0 0.0
    %1631 = vmatprep.subr.mxu0 0.0
    %1632 = vmatpush2.msra.mxu0 0.0
    %1633 = vmatprep.subr.mxu0 0.0
    %1634 = vmatpush2.msra.mxu0 0.0
    %1635 = vmatprep.mubr.f32.mxu0 0.0
    %1636 = vmatmul.mubr.f32.gmra.mxu0 %v1566
    %v1637 = vpop.f32.mrf.mxu0
    %v1638 = vadd.f32 %v1563, %v1637
    %v1639 = vpop.f32.mrf.mxu0
    %1640 = vmatprep.mubr.f32.mxu0 0.0
    %1641 = vmatmul.mubr.f32.gmra.mxu0 %v1569
    %v1642 = vpop.f32.mrf.mxu0
    %v1643 = vadd.f32 %v1563, %v1642
    %v1644 = vpop.f32.mrf.mxu0
    %1645 = vdwg.mxu0
    %s1646 = scalar_lea.vmem [#allocation7], 32
    %v1647 = vld [vmem:[%s1646] sm:$0xff]
    %v1648 = vld [vmem:[%s1646 + $0x8] sm:$0xff]
    %v1649 = vld [vmem:[%s1646 + $0x10] sm:$0xff]
    %v1650 = vld [vmem:[%s1646 + $0x18] sm:$0xff]
    %1652 = vrot.lane.b32.xlu0 %v1638, 96
    %v1653 = vpop.permute.xlu0 %1652
    %v1654 = vsel %vm407, %v1638, 0
    %v1656 = vsel %vm407, %v1653, 0
    %1658 = vmatprep.subr.mxu0 0.0
    %1659 = vmatpush1.xpose.msra.mxu0 0.0
    %1660 = vmatprep.subr.mxu0 0.0
    %1661 = vmatpush1.xpose.msra.mxu0 0.0
    %1662 = vmatprep.subr.mxu0 0.0
    %1663 = vmatpush1.xpose.msra.mxu0 0.0
    %1664 = vmatprep.subr.mxu0 0.0
    %1665 = vmatpush1.xpose.msra.mxu0 0.0
    %1666 = vmatprep.subr.mxu0 0.0
    %1667 = vmatpush1.xpose.msra.mxu0 0.0
    %1668 = vmatprep.subr.mxu0 0.0
    %1669 = vmatpush1.xpose.msra.mxu0 0.0
    %1670 = vmatprep.subr.mxu0 0.0
    %1671 = vmatpush1.xpose.msra.mxu0 0.0
    %1672 = vmatprep.subr.mxu0 0.0
    %1673 = vmatpush1.xpose.msra.mxu0 0.0
    %1674 = vmatprep.subr.mxu0 0.0
    %1675 = vmatpush1.xpose.msra.mxu0 0.0
    %1676 = vmatprep.subr.mxu0 0.0
    %1677 = vmatpush1.xpose.msra.mxu0 0.0
    %1678 = vmatprep.subr.mxu0 0.0
    %1679 = vmatpush1.xpose.msra.mxu0 0.0
    %1680 = vmatprep.subr.mxu0 0.0
    %1681 = vmatpush1.xpose.msra.mxu0 0.0
    %1682 = vmatprep.subr.mxu0 0.0
    %1683 = vmatpush1.xpose.msra.mxu0 0.0
    %1684 = vmatprep.subr.mxu0 0.0
    %1685 = vmatpush1.xpose.msra.mxu0 0.0
    %1686 = vmatprep.subr.mxu0 0.0
    %1687 = vmatpush1.xpose.msra.mxu0 0.0
    %1688 = vmatprep.subr.mxu0 0.0
    %1689 = vmatpush1.xpose.msra.mxu0 %v1656
    %1690 = vmatprep.subr.mxu0 0.0
    %1691 = vmatpush2.xpose.msra.mxu0 0.0
    %1692 = vmatprep.subr.mxu0 0.0
    %1693 = vmatpush2.xpose.msra.mxu0 0.0
    %1694 = vmatprep.subr.mxu0 0.0
    %1695 = vmatpush2.xpose.msra.mxu0 0.0
    %1696 = vmatprep.subr.mxu0 0.0
    %1697 = vmatpush2.xpose.msra.mxu0 0.0
    %1698 = vmatprep.subr.mxu0 0.0
    %1699 = vmatpush2.xpose.msra.mxu0 0.0
    %1700 = vmatprep.subr.mxu0 0.0
    %1701 = vmatpush2.xpose.msra.mxu0 0.0
    %1702 = vmatprep.subr.mxu0 0.0
    %1703 = vmatpush2.xpose.msra.mxu0 0.0
    %1704 = vmatprep.subr.mxu0 0.0
    %1705 = vmatpush2.xpose.msra.mxu0 0.0
    %1706 = vmatprep.subr.mxu0 0.0
    %1707 = vmatpush2.xpose.msra.mxu0 0.0
    %1708 = vmatprep.subr.mxu0 0.0
    %1709 = vmatpush2.xpose.msra.mxu0 0.0
    %1710 = vmatprep.subr.mxu0 0.0
    %1711 = vmatpush2.xpose.msra.mxu0 0.0
    %1712 = vmatprep.subr.mxu0 0.0
    %1713 = vmatpush2.xpose.msra.mxu0 0.0
    %1714 = vmatprep.subr.mxu0 0.0
    %1715 = vmatpush2.xpose.msra.mxu0 0.0
    %1716 = vmatprep.subr.mxu0 0.0
    %1717 = vmatpush2.xpose.msra.mxu0 0.0
    %1718 = vmatprep.subr.mxu0 0.0
    %1719 = vmatpush2.xpose.msra.mxu0 0.0
    %1720 = vmatprep.subr.mxu0 0.0
    %1721 = vmatpush2.xpose.msra.mxu0 0.0
    %1722 = vmatprep.mubr.f32.mxu0 0.0
    %1723 = vmatmul.mubr.f32.gmra.mxu0 %v1654
    %v1724 = vpop.f32.mrf.mxu0
    %v1725 = vadd.f32 0.0, %v1724
    %v1726 = vpop.f32.mrf.mxu0
    %1727 = vdwg.mxu0
    %1729 = vrot.lane.b32.xlu0 %v1643, 96
    %v1730 = vpop.permute.xlu0 %1729
    %v1731 = vsel %vm407, %v1643, 0
    %v1733 = vsel %vm407, %v1730, 0
    %1735 = vmatprep.subr.mxu0 0.0
    %1736 = vmatpush1.xpose.msra.mxu0 0.0
    %1737 = vmatprep.subr.mxu0 0.0
    %1738 = vmatpush1.xpose.msra.mxu0 0.0
    %1739 = vmatprep.subr.mxu0 0.0
    %1740 = vmatpush1.xpose.msra.mxu0 0.0
    %1741 = vmatprep.subr.mxu0 0.0
    %1742 = vmatpush1.xpose.msra.mxu0 0.0
    %1743 = vmatprep.subr.mxu0 0.0
    %1744 = vmatpush1.xpose.msra.mxu0 0.0
    %1745 = vmatprep.subr.mxu0 0.0
    %1746 = vmatpush1.xpose.msra.mxu0 0.0
    %1747 = vmatprep.subr.mxu0 0.0
    %1748 = vmatpush1.xpose.msra.mxu0 0.0
    %1749 = vmatprep.subr.mxu0 0.0
    %1750 = vmatpush1.xpose.msra.mxu0 0.0
    %1751 = vmatprep.subr.mxu0 0.0
    %1752 = vmatpush1.xpose.msra.mxu0 0.0
    %1753 = vmatprep.subr.mxu0 0.0
    %1754 = vmatpush1.xpose.msra.mxu0 0.0
    %1755 = vmatprep.subr.mxu0 0.0
    %1756 = vmatpush1.xpose.msra.mxu0 0.0
    %1757 = vmatprep.subr.mxu0 0.0
    %1758 = vmatpush1.xpose.msra.mxu0 0.0
    %1759 = vmatprep.subr.mxu0 0.0
    %1760 = vmatpush1.xpose.msra.mxu0 0.0
    %1761 = vmatprep.subr.mxu0 0.0
    %1762 = vmatpush1.xpose.msra.mxu0 0.0
    %1763 = vmatprep.subr.mxu0 0.0
    %1764 = vmatpush1.xpose.msra.mxu0 0.0
    %1765 = vmatprep.subr.mxu0 0.0
    %1766 = vmatpush1.xpose.msra.mxu0 %v1733
    %1767 = vmatprep.subr.mxu0 0.0
    %1768 = vmatpush2.xpose.msra.mxu0 0.0
    %1769 = vmatprep.subr.mxu0 0.0
    %1770 = vmatpush2.xpose.msra.mxu0 0.0
    %1771 = vmatprep.subr.mxu0 0.0
    %1772 = vmatpush2.xpose.msra.mxu0 0.0
    %1773 = vmatprep.subr.mxu0 0.0
    %1774 = vmatpush2.xpose.msra.mxu0 0.0
    %1775 = vmatprep.subr.mxu0 0.0
    %1776 = vmatpush2.xpose.msra.mxu0 0.0
    %1777 = vmatprep.subr.mxu0 0.0
    %1778 = vmatpush2.xpose.msra.mxu0 0.0
    %1779 = vmatprep.subr.mxu0 0.0
    %1780 = vmatpush2.xpose.msra.mxu0 0.0
    %1781 = vmatprep.subr.mxu0 0.0
    %1782 = vmatpush2.xpose.msra.mxu0 0.0
    %1783 = vmatprep.subr.mxu0 0.0
    %1784 = vmatpush2.xpose.msra.mxu0 0.0
    %1785 = vmatprep.subr.mxu0 0.0
    %1786 = vmatpush2.xpose.msra.mxu0 0.0
    %1787 = vmatprep.subr.mxu0 0.0
    %1788 = vmatpush2.xpose.msra.mxu0 0.0
    %1789 = vmatprep.subr.mxu0 0.0
    %1790 = vmatpush2.xpose.msra.mxu0 0.0
    %1791 = vmatprep.subr.mxu0 0.0
    %1792 = vmatpush2.xpose.msra.mxu0 0.0
    %1793 = vmatprep.subr.mxu0 0.0
    %1794 = vmatpush2.xpose.msra.mxu0 0.0
    %1795 = vmatprep.subr.mxu0 0.0
    %1796 = vmatpush2.xpose.msra.mxu0 0.0
    %1797 = vmatprep.subr.mxu0 0.0
    %1798 = vmatpush2.xpose.msra.mxu0 0.0
    %1799 = vmatprep.mubr.f32.mxu0 0.0
    %1800 = vmatmul.mubr.f32.gmra.mxu0 %v1731
    %v1801 = vpop.f32.mrf.mxu0
    %v1802 = vadd.f32 0.0, %v1801
    %v1803 = vpop.f32.mrf.mxu0
    %1804 = vdwg.mxu0
    %v1805 = vmul.f32 %v1725, 0.25
    %v1806 = vmul.f32 %v1802, 0.25
    %v1807 = vadd.f32 %v1805, %v564
    %v1808 = vadd.f32 %v1806, %v568
    %v1809 = vsel %vm573, %v1807, -inf
    %1810 = vmax.xlane.f32.xlu0 %v1809
    %v1811 = vpop.xlane.xlu0 %1810
    %v1812 = vsel %vm573, %v1808, -inf
    %1813 = vmax.xlane.f32.xlu0 %v1812
    %v1814 = vpop.xlane.xlu0 %1813
    %v1815 = vsub.f32 %v1807, %v1811
    %v1816 = vsub.f32 %v1808, %v1814
    %v1817 = vmul.f32 %v1815, 1.442695
    %v1818 = vpow.pop %v1817
    %v1819 = vmul.f32 %v1816, 1.442695
    %v1820 = vpow.pop %v1819
    %v1821 = vsel %vm573, %v1818, 0.0
    %1822 = vadd.xlane.f32.xlu0 %v1821
    %v1823 = vpop.xlane.xlu0 %1822
    %v1824 = vsel %vm573, %v1820, 0.0
    %1825 = vadd.xlane.f32.xlu0 %v1824
    %v1826 = vpop.xlane.xlu0 %1825
    %v1827 = vrcp.pop %v1823
    %v1828 = vrcp.pop %v1826
    %v1829 = vmul.f32 %v1818, %v1827
    %v1830 = vmul.f32 %v1820, %v1828
    %1831 = vrot.lane.b32.xlu0 %v1638, 64
    %v1832 = vpop.permute.xlu0 %1831
    %v1835 = vsel %vm573, %v1829, 0
    %1837 = vmatprep.subr.mxu0 0.0
    %1838 = vmatpush1.msra.mxu0 0.0
    %1839 = vmatprep.subr.mxu0 0.0
    %1840 = vmatpush1.msra.mxu0 0.0
    %1841 = vmatprep.subr.mxu0 0.0
    %1842 = vmatpush1.msra.mxu0 0.0
    %1843 = vmatprep.subr.mxu0 0.0
    %1844 = vmatpush1.msra.mxu0 0.0
    %1845 = vmatprep.subr.mxu0 0.0
    %1846 = vmatpush1.msra.mxu0 0.0
    %1847 = vmatprep.subr.mxu0 0.0
    %1848 = vmatpush1.msra.mxu0 0.0
    %1849 = vmatprep.subr.mxu0 0.0
    %1850 = vmatpush1.msra.mxu0 0.0
    %1851 = vmatprep.subr.mxu0 0.0
    %1852 = vmatpush1.msra.mxu0 0.0
    %1853 = vmatprep.subr.mxu0 0.0
    %1854 = vmatpush1.msra.mxu0 0.0
    %1855 = vmatprep.subr.mxu0 0.0
    %1856 = vmatpush1.msra.mxu0 0.0
    %1857 = vmatprep.subr.mxu0 0.0
    %1858 = vmatpush1.msra.mxu0 0.0
    %1859 = vmatprep.subr.mxu0 0.0
    %1860 = vmatpush1.msra.mxu0 0.0
    %1861 = vmatprep.subr.mxu0 0.0
    %1862 = vmatpush1.msra.mxu0 0.0
    %1863 = vmatprep.subr.mxu0 0.0
    %1864 = vmatpush1.msra.mxu0 0.0
    %1865 = vmatprep.subr.mxu0 0.0
    %1866 = vmatpush1.msra.mxu0 0.0
    %1867 = vmatprep.subr.mxu0 0.0
    %1868 = vmatpush1.msra.mxu0 %v1832
    %1869 = vmatprep.subr.mxu0 0.0
    %1870 = vmatpush2.msra.mxu0 0.0
    %1871 = vmatprep.subr.mxu0 0.0
    %1872 = vmatpush2.msra.mxu0 0.0
    %1873 = vmatprep.subr.mxu0 0.0
    %1874 = vmatpush2.msra.mxu0 0.0
    %1875 = vmatprep.subr.mxu0 0.0
    %1876 = vmatpush2.msra.mxu0 0.0
    %1877 = vmatprep.subr.mxu0 0.0
    %1878 = vmatpush2.msra.mxu0 0.0
    %1879 = vmatprep.subr.mxu0 0.0
    %1880 = vmatpush2.msra.mxu0 0.0
    %1881 = vmatprep.subr.mxu0 0.0
    %1882 = vmatpush2.msra.mxu0 0.0
    %1883 = vmatprep.subr.mxu0 0.0
    %1884 = vmatpush2.msra.mxu0 0.0
    %1885 = vmatprep.subr.mxu0 0.0
    %1886 = vmatpush2.msra.mxu0 0.0
    %1887 = vmatprep.subr.mxu0 0.0
    %1888 = vmatpush2.msra.mxu0 0.0
    %1889 = vmatprep.subr.mxu0 0.0
    %1890 = vmatpush2.msra.mxu0 0.0
    %1891 = vmatprep.subr.mxu0 0.0
    %1892 = vmatpush2.msra.mxu0 0.0
    %1893 = vmatprep.subr.mxu0 0.0
    %1894 = vmatpush2.msra.mxu0 0.0
    %1895 = vmatprep.subr.mxu0 0.0
    %1896 = vmatpush2.msra.mxu0 0.0
    %1897 = vmatprep.subr.mxu0 0.0
    %1898 = vmatpush2.msra.mxu0 0.0
    %1899 = vmatprep.subr.mxu0 0.0
    %1900 = vmatpush2.msra.mxu0 0.0
    %1901 = vmatprep.mubr.f32.mxu0 0.0
    %1902 = vmatmul.mubr.f32.gmra.mxu0 %v1835
    %v1903 = vpop.f32.mrf.mxu0
    %v1904 = vadd.f32 0.0, %v1903
    %v1905 = vpop.f32.mrf.mxu0
    %1906 = vdwg.mxu0
    %1907 = vrot.lane.b32.xlu0 %v1643, 64
    %v1908 = vpop.permute.xlu0 %1907
    %v1911 = vsel %vm573, %v1830, 0
    %1913 = vmatprep.subr.mxu0 0.0
    %1914 = vmatpush1.msra.mxu0 0.0
    %1915 = vmatprep.subr.mxu0 0.0
    %1916 = vmatpush1.msra.mxu0 0.0
    %1917 = vmatprep.subr.mxu0 0.0
    %1918 = vmatpush1.msra.mxu0 0.0
    %1919 = vmatprep.subr.mxu0 0.0
    %1920 = vmatpush1.msra.mxu0 0.0
    %1921 = vmatprep.subr.mxu0 0.0
    %1922 = vmatpush1.msra.mxu0 0.0
    %1923 = vmatprep.subr.mxu0 0.0
    %1924 = vmatpush1.msra.mxu0 0.0
    %1925 = vmatprep.subr.mxu0 0.0
    %1926 = vmatpush1.msra.mxu0 0.0
    %1927 = vmatprep.subr.mxu0 0.0
    %1928 = vmatpush1.msra.mxu0 0.0
    %1929 = vmatprep.subr.mxu0 0.0
    %1930 = vmatpush1.msra.mxu0 0.0
    %1931 = vmatprep.subr.mxu0 0.0
    %1932 = vmatpush1.msra.mxu0 0.0
    %1933 = vmatprep.subr.mxu0 0.0
    %1934 = vmatpush1.msra.mxu0 0.0
    %1935 = vmatprep.subr.mxu0 0.0
    %1936 = vmatpush1.msra.mxu0 0.0
    %1937 = vmatprep.subr.mxu0 0.0
    %1938 = vmatpush1.msra.mxu0 0.0
    %1939 = vmatprep.subr.mxu0 0.0
    %1940 = vmatpush1.msra.mxu0 0.0
    %1941 = vmatprep.subr.mxu0 0.0
    %1942 = vmatpush1.msra.mxu0 0.0
    %1943 = vmatprep.subr.mxu0 0.0
    %1944 = vmatpush1.msra.mxu0 %v1908
    %1945 = vmatprep.subr.mxu0 0.0
    %1946 = vmatpush2.msra.mxu0 0.0
    %1947 = vmatprep.subr.mxu0 0.0
    %1948 = vmatpush2.msra.mxu0 0.0
    %1949 = vmatprep.subr.mxu0 0.0
    %1950 = vmatpush2.msra.mxu0 0.0
    %1951 = vmatprep.subr.mxu0 0.0
    %1952 = vmatpush2.msra.mxu0 0.0
    %1953 = vmatprep.subr.mxu0 0.0
    %1954 = vmatpush2.msra.mxu0 0.0
    %1955 = vmatprep.subr.mxu0 0.0
    %1956 = vmatpush2.msra.mxu0 0.0
    %1957 = vmatprep.subr.mxu0 0.0
    %1958 = vmatpush2.msra.mxu0 0.0
    %1959 = vmatprep.subr.mxu0 0.0
    %1960 = vmatpush2.msra.mxu0 0.0
    %1961 = vmatprep.subr.mxu0 0.0
    %1962 = vmatpush2.msra.mxu0 0.0
    %1963 = vmatprep.subr.mxu0 0.0
    %1964 = vmatpush2.msra.mxu0 0.0
    %1965 = vmatprep.subr.mxu0 0.0
    %1966 = vmatpush2.msra.mxu0 0.0
    %1967 = vmatprep.subr.mxu0 0.0
    %1968 = vmatpush2.msra.mxu0 0.0
    %1969 = vmatprep.subr.mxu0 0.0
    %1970 = vmatpush2.msra.mxu0 0.0
    %1971 = vmatprep.subr.mxu0 0.0
    %1972 = vmatpush2.msra.mxu0 0.0
    %1973 = vmatprep.subr.mxu0 0.0
    %1974 = vmatpush2.msra.mxu0 0.0
    %1975 = vmatprep.subr.mxu0 0.0
    %1976 = vmatpush2.msra.mxu0 0.0
    %1977 = vmatprep.mubr.f32.mxu0 0.0
    %1978 = vmatmul.mubr.f32.gmra.mxu0 %v1911
    %v1979 = vpop.f32.mrf.mxu0
    %v1980 = vadd.f32 0.0, %v1979
    %v1981 = vpop.f32.mrf.mxu0
    %1982 = vdwg.mxu0
    %1983 = vrot.lane.b32.xlu0 %v1638, 112
    %v1984 = vpop.permute.xlu0 %1983
    %1985 = vrot.lane.b32.xlu0 %v1638, 80
    %v1986 = vpop.permute.xlu0 %1985
    %v1987 = vsel %vm407, %v1984, 0
    %v1989 = vsel %vm407, %v1986, 0
    %1991 = vmatprep.subr.mxu0 0.0
    %1992 = vmatpush1.xpose.msra.mxu0 0.0
    %1993 = vmatprep.subr.mxu0 0.0
    %1994 = vmatpush1.xpose.msra.mxu0 0.0
    %1995 = vmatprep.subr.mxu0 0.0
    %1996 = vmatpush1.xpose.msra.mxu0 0.0
    %1997 = vmatprep.subr.mxu0 0.0
    %1998 = vmatpush1.xpose.msra.mxu0 0.0
    %1999 = vmatprep.subr.mxu0 0.0
    %2000 = vmatpush1.xpose.msra.mxu0 0.0
    %2001 = vmatprep.subr.mxu0 0.0
    %2002 = vmatpush1.xpose.msra.mxu0 0.0
    %2003 = vmatprep.subr.mxu0 0.0
    %2004 = vmatpush1.xpose.msra.mxu0 0.0
    %2005 = vmatprep.subr.mxu0 0.0
    %2006 = vmatpush1.xpose.msra.mxu0 0.0
    %2007 = vmatprep.subr.mxu0 0.0
    %2008 = vmatpush1.xpose.msra.mxu0 0.0
    %2009 = vmatprep.subr.mxu0 0.0
    %2010 = vmatpush1.xpose.msra.mxu0 0.0
    %2011 = vmatprep.subr.mxu0 0.0
    %2012 = vmatpush1.xpose.msra.mxu0 0.0
    %2013 = vmatprep.subr.mxu0 0.0
    %2014 = vmatpush1.xpose.msra.mxu0 0.0
    %2015 = vmatprep.subr.mxu0 0.0
    %2016 = vmatpush1.xpose.msra.mxu0 0.0
    %2017 = vmatprep.subr.mxu0 0.0
    %2018 = vmatpush1.xpose.msra.mxu0 0.0
    %2019 = vmatprep.subr.mxu0 0.0
    %2020 = vmatpush1.xpose.msra.mxu0 0.0
    %2021 = vmatprep.subr.mxu0 0.0
    %2022 = vmatpush1.xpose.msra.mxu0 %v1989
    %2023 = vmatprep.subr.mxu0 0.0
    %2024 = vmatpush2.xpose.msra.mxu0 0.0
    %2025 = vmatprep.subr.mxu0 0.0
    %2026 = vmatpush2.xpose.msra.mxu0 0.0
    %2027 = vmatprep.subr.mxu0 0.0
    %2028 = vmatpush2.xpose.msra.mxu0 0.0
    %2029 = vmatprep.subr.mxu0 0.0
    %2030 = vmatpush2.xpose.msra.mxu0 0.0
    %2031 = vmatprep.subr.mxu0 0.0
    %2032 = vmatpush2.xpose.msra.mxu0 0.0
    %2033 = vmatprep.subr.mxu0 0.0
    %2034 = vmatpush2.xpose.msra.mxu0 0.0
    %2035 = vmatprep.subr.mxu0 0.0
    %2036 = vmatpush2.xpose.msra.mxu0 0.0
    %2037 = vmatprep.subr.mxu0 0.0
    %2038 = vmatpush2.xpose.msra.mxu0 0.0
    %2039 = vmatprep.subr.mxu0 0.0
    %2040 = vmatpush2.xpose.msra.mxu0 0.0
    %2041 = vmatprep.subr.mxu0 0.0
    %2042 = vmatpush2.xpose.msra.mxu0 0.0
    %2043 = vmatprep.subr.mxu0 0.0
    %2044 = vmatpush2.xpose.msra.mxu0 0.0
    %2045 = vmatprep.subr.mxu0 0.0
    %2046 = vmatpush2.xpose.msra.mxu0 0.0
    %2047 = vmatprep.subr.mxu0 0.0
    %2048 = vmatpush2.xpose.msra.mxu0 0.0
    %2049 = vmatprep.subr.mxu0 0.0
    %2050 = vmatpush2.xpose.msra.mxu0 0.0
    %2051 = vmatprep.subr.mxu0 0.0
    %2052 = vmatpush2.xpose.msra.mxu0 0.0
    %2053 = vmatprep.subr.mxu0 0.0
    %2054 = vmatpush2.xpose.msra.mxu0 0.0
    %2055 = vmatprep.mubr.f32.mxu0 0.0
    %2056 = vmatmul.mubr.f32.gmra.mxu0 %v1987
    %v2057 = vpop.f32.mrf.mxu0
    %v2058 = vadd.f32 0.0, %v2057
    %v2059 = vpop.f32.mrf.mxu0
    %2060 = vdwg.mxu0
    %2061 = vrot.lane.b32.xlu0 %v1643, 112
    %v2062 = vpop.permute.xlu0 %2061
    %2063 = vrot.lane.b32.xlu0 %v1643, 80
    %v2064 = vpop.permute.xlu0 %2063
    %v2065 = vsel %vm407, %v2062, 0
    %v2067 = vsel %vm407, %v2064, 0
    %2069 = vmatprep.subr.mxu0 0.0
    %2070 = vmatpush1.xpose.msra.mxu0 0.0
    %2071 = vmatprep.subr.mxu0 0.0
    %2072 = vmatpush1.xpose.msra.mxu0 0.0
    %2073 = vmatprep.subr.mxu0 0.0
    %2074 = vmatpush1.xpose.msra.mxu0 0.0
    %2075 = vmatprep.subr.mxu0 0.0
    %2076 = vmatpush1.xpose.msra.mxu0 0.0
    %2077 = vmatprep.subr.mxu0 0.0
    %2078 = vmatpush1.xpose.msra.mxu0 0.0
    %2079 = vmatprep.subr.mxu0 0.0
    %2080 = vmatpush1.xpose.msra.mxu0 0.0
    %2081 = vmatprep.subr.mxu0 0.0
    %2082 = vmatpush1.xpose.msra.mxu0 0.0
    %2083 = vmatprep.subr.mxu0 0.0
    %2084 = vmatpush1.xpose.msra.mxu0 0.0
    %2085 = vmatprep.subr.mxu0 0.0
    %2086 = vmatpush1.xpose.msra.mxu0 0.0
    %2087 = vmatprep.subr.mxu0 0.0
    %2088 = vmatpush1.xpose.msra.mxu0 0.0
    %2089 = vmatprep.subr.mxu0 0.0
    %2090 = vmatpush1.xpose.msra.mxu0 0.0
    %2091 = vmatprep.subr.mxu0 0.0
    %2092 = vmatpush1.xpose.msra.mxu0 0.0
    %2093 = vmatprep.subr.mxu0 0.0
    %2094 = vmatpush1.xpose.msra.mxu0 0.0
    %2095 = vmatprep.subr.mxu0 0.0
    %2096 = vmatpush1.xpose.msra.mxu0 0.0
    %2097 = vmatprep.subr.mxu0 0.0
    %2098 = vmatpush1.xpose.msra.mxu0 0.0
    %2099 = vmatprep.subr.mxu0 0.0
    %2100 = vmatpush1.xpose.msra.mxu0 %v2067
    %2101 = vmatprep.subr.mxu0 0.0
    %2102 = vmatpush2.xpose.msra.mxu0 0.0
    %2103 = vmatprep.subr.mxu0 0.0
    %2104 = vmatpush2.xpose.msra.mxu0 0.0
    %2105 = vmatprep.subr.mxu0 0.0
    %2106 = vmatpush2.xpose.msra.mxu0 0.0
    %2107 = vmatprep.subr.mxu0 0.0
    %2108 = vmatpush2.xpose.msra.mxu0 0.0
    %2109 = vmatprep.subr.mxu0 0.0
    %2110 = vmatpush2.xpose.msra.mxu0 0.0
    %2111 = vmatprep.subr.mxu0 0.0
    %2112 = vmatpush2.xpose.msra.mxu0 0.0
    %2113 = vmatprep.subr.mxu0 0.0
    %2114 = vmatpush2.xpose.msra.mxu0 0.0
    %2115 = vmatprep.subr.mxu0 0.0
    %2116 = vmatpush2.xpose.msra.mxu0 0.0
    %2117 = vmatprep.subr.mxu0 0.0
    %2118 = vmatpush2.xpose.msra.mxu0 0.0
    %2119 = vmatprep.subr.mxu0 0.0
    %2120 = vmatpush2.xpose.msra.mxu0 0.0
    %2121 = vmatprep.subr.mxu0 0.0
    %2122 = vmatpush2.xpose.msra.mxu0 0.0
    %2123 = vmatprep.subr.mxu0 0.0
    %2124 = vmatpush2.xpose.msra.mxu0 0.0
    %2125 = vmatprep.subr.mxu0 0.0
    %2126 = vmatpush2.xpose.msra.mxu0 0.0
    %2127 = vmatprep.subr.mxu0 0.0
    %2128 = vmatpush2.xpose.msra.mxu0 0.0
    %2129 = vmatprep.subr.mxu0 0.0
    %2130 = vmatpush2.xpose.msra.mxu0 0.0
    %2131 = vmatprep.subr.mxu0 0.0
    %2132 = vmatpush2.xpose.msra.mxu0 0.0
    %2133 = vmatprep.mubr.f32.mxu0 0.0
    %2134 = vmatmul.mubr.f32.gmra.mxu0 %v2065
    %v2135 = vpop.f32.mrf.mxu0
    %v2136 = vadd.f32 0.0, %v2135
    %v2137 = vpop.f32.mrf.mxu0
    %2138 = vdwg.mxu0
    %v2139 = vmul.f32 %v2058, 0.25
    %v2140 = vmul.f32 %v2136, 0.25
    %v2141 = vadd.f32 %v2139, %v564
    %v2142 = vadd.f32 %v2140, %v568
    %v2143 = vsel %vm573, %v2141, -inf
    %2144 = vmax.xlane.f32.xlu0 %v2143
    %v2145 = vpop.xlane.xlu0 %2144
    %v2146 = vsel %vm573, %v2142, -inf
    %2147 = vmax.xlane.f32.xlu0 %v2146
    %v2148 = vpop.xlane.xlu0 %2147
    %v2149 = vsub.f32 %v2141, %v2145
    %v2150 = vsub.f32 %v2142, %v2148
    %v2151 = vmul.f32 %v2149, 1.442695
    %v2152 = vpow.pop %v2151
    %v2153 = vmul.f32 %v2150, 1.442695
    %v2154 = vpow.pop %v2153
    %v2155 = vsel %vm573, %v2152, 0.0
    %2156 = vadd.xlane.f32.xlu0 %v2155
    %v2157 = vpop.xlane.xlu0 %2156
    %v2158 = vsel %vm573, %v2154, 0.0
    %2159 = vadd.xlane.f32.xlu0 %v2158
    %v2160 = vpop.xlane.xlu0 %2159
    %v2161 = vrcp.pop %v2157
    %v2162 = vrcp.pop %v2160
    %v2163 = vmul.f32 %v2152, %v2161
    %v2164 = vmul.f32 %v2154, %v2162
    %2165 = vrot.lane.b32.xlu0 %v1638, 48
    %v2166 = vpop.permute.xlu0 %2165
    %v2169 = vsel %vm573, %v2163, 0
    %2171 = vmatprep.subr.mxu0 0.0
    %2172 = vmatpush1.msra.mxu0 0.0
    %2173 = vmatprep.subr.mxu0 0.0
    %2174 = vmatpush1.msra.mxu0 0.0
    %2175 = vmatprep.subr.mxu0 0.0
    %2176 = vmatpush1.msra.mxu0 0.0
    %2177 = vmatprep.subr.mxu0 0.0
    %2178 = vmatpush1.msra.mxu0 0.0
    %2179 = vmatprep.subr.mxu0 0.0
    %2180 = vmatpush1.msra.mxu0 0.0
    %2181 = vmatprep.subr.mxu0 0.0
    %2182 = vmatpush1.msra.mxu0 0.0
    %2183 = vmatprep.subr.mxu0 0.0
    %2184 = vmatpush1.msra.mxu0 0.0
    %2185 = vmatprep.subr.mxu0 0.0
    %2186 = vmatpush1.msra.mxu0 0.0
    %2187 = vmatprep.subr.mxu0 0.0
    %2188 = vmatpush1.msra.mxu0 0.0
    %2189 = vmatprep.subr.mxu0 0.0
    %2190 = vmatpush1.msra.mxu0 0.0
    %2191 = vmatprep.subr.mxu0 0.0
    %2192 = vmatpush1.msra.mxu0 0.0
    %2193 = vmatprep.subr.mxu0 0.0
    %2194 = vmatpush1.msra.mxu0 0.0
    %2195 = vmatprep.subr.mxu0 0.0
    %2196 = vmatpush1.msra.mxu0 0.0
    %2197 = vmatprep.subr.mxu0 0.0
    %2198 = vmatpush1.msra.mxu0 0.0
    %2199 = vmatprep.subr.mxu0 0.0
    %2200 = vmatpush1.msra.mxu0 0.0
    %2201 = vmatprep.subr.mxu0 0.0
    %2202 = vmatpush1.msra.mxu0 %v2166
    %2203 = vmatprep.subr.mxu0 0.0
    %2204 = vmatpush2.msra.mxu0 0.0
    %2205 = vmatprep.subr.mxu0 0.0
    %2206 = vmatpush2.msra.mxu0 0.0
    %2207 = vmatprep.subr.mxu0 0.0
    %2208 = vmatpush2.msra.mxu0 0.0
    %2209 = vmatprep.subr.mxu0 0.0
    %2210 = vmatpush2.msra.mxu0 0.0
    %2211 = vmatprep.subr.mxu0 0.0
    %2212 = vmatpush2.msra.mxu0 0.0
    %2213 = vmatprep.subr.mxu0 0.0
    %2214 = vmatpush2.msra.mxu0 0.0
    %2215 = vmatprep.subr.mxu0 0.0
    %2216 = vmatpush2.msra.mxu0 0.0
    %2217 = vmatprep.subr.mxu0 0.0
    %2218 = vmatpush2.msra.mxu0 0.0
    %2219 = vmatprep.subr.mxu0 0.0
    %2220 = vmatpush2.msra.mxu0 0.0
    %2221 = vmatprep.subr.mxu0 0.0
    %2222 = vmatpush2.msra.mxu0 0.0
    %2223 = vmatprep.subr.mxu0 0.0
    %2224 = vmatpush2.msra.mxu0 0.0
    %2225 = vmatprep.subr.mxu0 0.0
    %2226 = vmatpush2.msra.mxu0 0.0
    %2227 = vmatprep.subr.mxu0 0.0
    %2228 = vmatpush2.msra.mxu0 0.0
    %2229 = vmatprep.subr.mxu0 0.0
    %2230 = vmatpush2.msra.mxu0 0.0
    %2231 = vmatprep.subr.mxu0 0.0
    %2232 = vmatpush2.msra.mxu0 0.0
    %2233 = vmatprep.subr.mxu0 0.0
    %2234 = vmatpush2.msra.mxu0 0.0
    %2235 = vmatprep.mubr.f32.mxu0 0.0
    %2236 = vmatmul.mubr.f32.gmra.mxu0 %v2169
    %v2237 = vpop.f32.mrf.mxu0
    %v2238 = vadd.f32 0.0, %v2237
    %v2239 = vpop.f32.mrf.mxu0
    %2240 = vdwg.mxu0
    %2241 = vrot.lane.b32.xlu0 %v1643, 48
    %v2242 = vpop.permute.xlu0 %2241
    %v2245 = vsel %vm573, %v2164, 0
    %2247 = vmatprep.subr.mxu0 0.0
    %2248 = vmatpush1.msra.mxu0 0.0
    %2249 = vmatprep.subr.mxu0 0.0
    %2250 = vmatpush1.msra.mxu0 0.0
    %2251 = vmatprep.subr.mxu0 0.0
    %2252 = vmatpush1.msra.mxu0 0.0
    %2253 = vmatprep.subr.mxu0 0.0
    %2254 = vmatpush1.msra.mxu0 0.0
    %2255 = vmatprep.subr.mxu0 0.0
    %2256 = vmatpush1.msra.mxu0 0.0
    %2257 = vmatprep.subr.mxu0 0.0
    %2258 = vmatpush1.msra.mxu0 0.0
    %2259 = vmatprep.subr.mxu0 0.0
    %2260 = vmatpush1.msra.mxu0 0.0
    %2261 = vmatprep.subr.mxu0 0.0
    %2262 = vmatpush1.msra.mxu0 0.0
    %2263 = vmatprep.subr.mxu0 0.0
    %2264 = vmatpush1.msra.mxu0 0.0
    %2265 = vmatprep.subr.mxu0 0.0
    %2266 = vmatpush1.msra.mxu0 0.0
    %2267 = vmatprep.subr.mxu0 0.0
    %2268 = vmatpush1.msra.mxu0 0.0
    %2269 = vmatprep.subr.mxu0 0.0
    %2270 = vmatpush1.msra.mxu0 0.0
    %2271 = vmatprep.subr.mxu0 0.0
    %2272 = vmatpush1.msra.mxu0 0.0
    %2273 = vmatprep.subr.mxu0 0.0
    %2274 = vmatpush1.msra.mxu0 0.0
    %2275 = vmatprep.subr.mxu0 0.0
    %2276 = vmatpush1.msra.mxu0 0.0
    %2277 = vmatprep.subr.mxu0 0.0
    %2278 = vmatpush1.msra.mxu0 %v2242
    %2279 = vmatprep.subr.mxu0 0.0
    %2280 = vmatpush2.msra.mxu0 0.0
    %2281 = vmatprep.subr.mxu0 0.0
    %2282 = vmatpush2.msra.mxu0 0.0
    %2283 = vmatprep.subr.mxu0 0.0
    %2284 = vmatpush2.msra.mxu0 0.0
    %2285 = vmatprep.subr.mxu0 0.0
    %2286 = vmatpush2.msra.mxu0 0.0
    %2287 = vmatprep.subr.mxu0 0.0
    %2288 = vmatpush2.msra.mxu0 0.0
    %2289 = vmatprep.subr.mxu0 0.0
    %2290 = vmatpush2.msra.mxu0 0.0
    %2291 = vmatprep.subr.mxu0 0.0
    %2292 = vmatpush2.msra.mxu0 0.0
    %2293 = vmatprep.subr.mxu0 0.0
    %2294 = vmatpush2.msra.mxu0 0.0
    %2295 = vmatprep.subr.mxu0 0.0
    %2296 = vmatpush2.msra.mxu0 0.0
    %2297 = vmatprep.subr.mxu0 0.0
    %2298 = vmatpush2.msra.mxu0 0.0
    %2299 = vmatprep.subr.mxu0 0.0
    %2300 = vmatpush2.msra.mxu0 0.0
    %2301 = vmatprep.subr.mxu0 0.0
    %2302 = vmatpush2.msra.mxu0 0.0
    %2303 = vmatprep.subr.mxu0 0.0
    %2304 = vmatpush2.msra.mxu0 0.0
    %2305 = vmatprep.subr.mxu0 0.0
    %2306 = vmatpush2.msra.mxu0 0.0
    %2307 = vmatprep.subr.mxu0 0.0
    %2308 = vmatpush2.msra.mxu0 0.0
    %2309 = vmatprep.subr.mxu0 0.0
    %2310 = vmatpush2.msra.mxu0 0.0
    %2311 = vmatprep.mubr.f32.mxu0 0.0
    %2312 = vmatmul.mubr.f32.gmra.mxu0 %v2245
    %v2313 = vpop.f32.mrf.mxu0
    %v2314 = vadd.f32 0.0, %v2313
    %v2315 = vpop.f32.mrf.mxu0
    %2316 = vdwg.mxu0
    %v2318 = vsel %vm407, %v2238, 0
    %v2321 = vsel %vm407, %v2314, 0
    %2323 = vmatprep.subr.mxu0 0.0
    %2324 = vmatpush1.msra.mxu0 0.0
    %2325 = vmatprep.subr.mxu0 0.0
    %2326 = vmatpush1.msra.mxu0 0.0
    %2327 = vmatprep.subr.mxu0 0.0
    %2328 = vmatpush1.msra.mxu0 0.0
    %2329 = vmatprep.subr.mxu0 0.0
    %2330 = vmatpush1.msra.mxu0 0.0
    %2331 = vmatprep.subr.mxu0 0.0
    %2332 = vmatpush1.msra.mxu0 0.0
    %2333 = vmatprep.subr.mxu0 0.0
    %2334 = vmatpush1.msra.mxu0 0.0
    %2335 = vmatprep.subr.mxu0 0.0
    %2336 = vmatpush1.msra.mxu0 0.0
    %2337 = vmatprep.subr.mxu0 0.0
    %2338 = vmatpush1.msra.mxu0 0.0
    %2339 = vmatprep.subr.mxu0 0.0
    %2340 = vmatpush1.msra.mxu0 0.0
    %2341 = vmatprep.subr.mxu0 0.0
    %2342 = vmatpush1.msra.mxu0 0.0
    %2343 = vmatprep.subr.mxu0 0.0
    %2344 = vmatpush1.msra.mxu0 0.0
    %2345 = vmatprep.subr.mxu0 0.0
    %2346 = vmatpush1.msra.mxu0 0.0
    %2347 = vmatprep.subr.mxu0 0.0
    %2348 = vmatpush1.msra.mxu0 0.0
    %2349 = vmatprep.subr.mxu0 0.0
    %2350 = vmatpush1.msra.mxu0 0.0
    %2351 = vmatprep.subr.mxu0 0.0
    %2352 = vmatpush1.msra.mxu0 %v1650
    %2353 = vmatprep.subr.mxu0 0.0
    %2354 = vmatpush1.msra.mxu0 %v1649
    %2355 = vmatprep.subr.mxu0 0.0
    %2356 = vmatpush2.msra.mxu0 0.0
    %2357 = vmatprep.subr.mxu0 0.0
    %2358 = vmatpush2.msra.mxu0 0.0
    %2359 = vmatprep.subr.mxu0 0.0
    %2360 = vmatpush2.msra.mxu0 0.0
    %2361 = vmatprep.subr.mxu0 0.0
    %2362 = vmatpush2.msra.mxu0 0.0
    %2363 = vmatprep.subr.mxu0 0.0
    %2364 = vmatpush2.msra.mxu0 0.0
    %2365 = vmatprep.subr.mxu0 0.0
    %2366 = vmatpush2.msra.mxu0 0.0
    %2367 = vmatprep.subr.mxu0 0.0
    %2368 = vmatpush2.msra.mxu0 0.0
    %2369 = vmatprep.subr.mxu0 0.0
    %2370 = vmatpush2.msra.mxu0 0.0
    %2371 = vmatprep.subr.mxu0 0.0
    %2372 = vmatpush2.msra.mxu0 0.0
    %2373 = vmatprep.subr.mxu0 0.0
    %2374 = vmatpush2.msra.mxu0 0.0
    %2375 = vmatprep.subr.mxu0 0.0
    %2376 = vmatpush2.msra.mxu0 0.0
    %2377 = vmatprep.subr.mxu0 0.0
    %2378 = vmatpush2.msra.mxu0 0.0
    %2379 = vmatprep.subr.mxu0 0.0
    %2380 = vmatpush2.msra.mxu0 0.0
    %2381 = vmatprep.subr.mxu0 0.0
    %2382 = vmatpush2.msra.mxu0 0.0
    %2383 = vmatprep.subr.mxu0 0.0
    %2384 = vmatpush2.msra.mxu0 0.0
    %2385 = vmatprep.subr.mxu0 0.0
    %2386 = vmatpush2.msra.mxu0 0.0
    %2387 = vmatprep.mubr.f32.mxu0 0.0
    %2388 = vmatmul.mubr.f32.gmra.mxu0 %v2318
    %v2389 = vpop.f32.mrf.mxu0
    %v2390 = vadd.f32 0.0, %v2389
    %v2391 = vpop.f32.mrf.mxu0
    %2392 = vmatprep.mubr.f32.mxu0 0.0
    %2393 = vmatmul.mubr.f32.gmra.mxu0 %v2321
    %v2394 = vpop.f32.mrf.mxu0
    %v2395 = vadd.f32 0.0, %v2394
    %v2396 = vpop.f32.mrf.mxu0
    %2397 = vdwg.mxu0
    %v2399 = vsel %vm407, %v1904, 0
    %v2402 = vsel %vm407, %v1980, 0
    %2404 = vmatprep.subr.mxu0 0.0
    %2405 = vmatpush1.msra.mxu0 0.0
    %2406 = vmatprep.subr.mxu0 0.0
    %2407 = vmatpush1.msra.mxu0 0.0
    %2408 = vmatprep.subr.mxu0 0.0
    %2409 = vmatpush1.msra.mxu0 0.0
    %2410 = vmatprep.subr.mxu0 0.0
    %2411 = vmatpush1.msra.mxu0 0.0
    %2412 = vmatprep.subr.mxu0 0.0
    %2413 = vmatpush1.msra.mxu0 0.0
    %2414 = vmatprep.subr.mxu0 0.0
    %2415 = vmatpush1.msra.mxu0 0.0
    %2416 = vmatprep.subr.mxu0 0.0
    %2417 = vmatpush1.msra.mxu0 0.0
    %2418 = vmatprep.subr.mxu0 0.0
    %2419 = vmatpush1.msra.mxu0 0.0
    %2420 = vmatprep.subr.mxu0 0.0
    %2421 = vmatpush1.msra.mxu0 0.0
    %2422 = vmatprep.subr.mxu0 0.0
    %2423 = vmatpush1.msra.mxu0 0.0
    %2424 = vmatprep.subr.mxu0 0.0
    %2425 = vmatpush1.msra.mxu0 0.0
    %2426 = vmatprep.subr.mxu0 0.0
    %2427 = vmatpush1.msra.mxu0 0.0
    %2428 = vmatprep.subr.mxu0 0.0
    %2429 = vmatpush1.msra.mxu0 0.0
    %2430 = vmatprep.subr.mxu0 0.0
    %2431 = vmatpush1.msra.mxu0 0.0
    %2432 = vmatprep.subr.mxu0 0.0
    %2433 = vmatpush1.msra.mxu0 %v1648
    %2434 = vmatprep.subr.mxu0 0.0
    %2435 = vmatpush1.msra.mxu0 %v1647
    %2436 = vmatprep.subr.mxu0 0.0
    %2437 = vmatpush2.msra.mxu0 0.0
    %2438 = vmatprep.subr.mxu0 0.0
    %2439 = vmatpush2.msra.mxu0 0.0
    %2440 = vmatprep.subr.mxu0 0.0
    %2441 = vmatpush2.msra.mxu0 0.0
    %2442 = vmatprep.subr.mxu0 0.0
    %2443 = vmatpush2.msra.mxu0 0.0
    %2444 = vmatprep.subr.mxu0 0.0
    %2445 = vmatpush2.msra.mxu0 0.0
    %2446 = vmatprep.subr.mxu0 0.0
    %2447 = vmatpush2.msra.mxu0 0.0
    %2448 = vmatprep.subr.mxu0 0.0
    %2449 = vmatpush2.msra.mxu0 0.0
    %2450 = vmatprep.subr.mxu0 0.0
    %2451 = vmatpush2.msra.mxu0 0.0
    %2452 = vmatprep.subr.mxu0 0.0
    %2453 = vmatpush2.msra.mxu0 0.0
    %2454 = vmatprep.subr.mxu0 0.0
    %2455 = vmatpush2.msra.mxu0 0.0
    %2456 = vmatprep.subr.mxu0 0.0
    %2457 = vmatpush2.msra.mxu0 0.0
    %2458 = vmatprep.subr.mxu0 0.0
    %2459 = vmatpush2.msra.mxu0 0.0
    %2460 = vmatprep.subr.mxu0 0.0
    %2461 = vmatpush2.msra.mxu0 0.0
    %2462 = vmatprep.subr.mxu0 0.0
    %2463 = vmatpush2.msra.mxu0 0.0
    %2464 = vmatprep.subr.mxu0 0.0
    %2465 = vmatpush2.msra.mxu0 0.0
    %2466 = vmatprep.subr.mxu0 0.0
    %2467 = vmatpush2.msra.mxu0 0.0
    %2468 = vmatprep.mubr.f32.mxu0 0.0
    %2469 = vmatmul.mubr.f32.gmra.mxu0 %v2399
    %v2470 = vpop.f32.mrf.mxu0
    %v2471 = vadd.f32 %v2390, %v2470
    %v2472 = vpop.f32.mrf.mxu0
    %2473 = vmatprep.mubr.f32.mxu0 0.0
    %2474 = vmatmul.mubr.f32.gmra.mxu0 %v2402
    %v2475 = vpop.f32.mrf.mxu0
    %v2476 = vadd.f32 %v2395, %v2475
    %v2477 = vpop.f32.mrf.mxu0
    %2478 = vdwg.mxu0
    %s2479 = scalar_lea.vmem [#allocation8], 1
    %v2480 = vld [vmem:[%s2479] sm:$0x1]
    %v2482 = vlaneseq
    %v2483 = vshrl.u32 %v2482, 7
    %v2484 = vsub.s32 0, %v2483
    %v2485 = vrot.slane %v2480, %v2484
    %v2487 = vadd.f32 %v2471, %v2485
    %v2488 = vadd.f32 %v2476, %v2485
    %v2489 = vadd.f32 %v2487, %v1550
    %v2490 = vadd.f32 %v2488, %v1551
    %s2491 = scalar_lea.vmem [#allocation10], 1
    %v2492 = vld [vmem:[%s2491] sm:$0x1]
    %s2493 = scalar_lea.vmem [#allocation11], 1
    %v2494 = vld [vmem:[%s2493] sm:$0x1]
    %v2495 = vsel %vm238, %v2489, 0.0
    %2496 = vadd.xlane.f32.xlu0 %v2495
    %v2497 = vpop.xlane.xlu0 %2496
    %v2498 = vsel %vm238, %v2490, 0.0
    %2499 = vadd.xlane.f32.xlu0 %v2498
    %v2500 = vpop.xlane.xlu0 %2499
    %v2501 = vmul.f32 %v2497, %v245
    %v2502 = vmul.f32 %v2500, %v245
    %v2503 = vsub.f32 %v2489, %v2501
    %v2504 = vsub.f32 %v2490, %v2502
    %v2505 = vmul.f32 %v2503, %v2503
    %v2506 = vmul.f32 %v2504, %v2504
    %v2507 = vsel %vm238, %v2505, 0.0
    %2508 = vadd.xlane.f32.xlu0 %v2507
    %v2509 = vpop.xlane.xlu0 %2508
    %v2510 = vsel %vm238, %v2506, 0.0
    %2511 = vadd.xlane.f32.xlu0 %v2510
    %v2512 = vpop.xlane.xlu0 %2511
    %v2513 = vmul.f32 %v2509, %v245
    %v2514 = vmul.f32 %v2512, %v245
    %v2515 = vadd.f32 %v2513, 1e-05
    %v2516 = vadd.f32 %v2514, 1e-05
    %v2517 = vrsqrt.pop %v2515
    %v2518 = vrsqrt.pop %v2516
    %v2519 = vmul.f32 %v2503, %v2517
    %v2520 = vmul.f32 %v2504, %v2518
    %v2522 = vlaneseq
    %v2523 = vshrl.u32 %v2522, 7
    %v2524 = vsub.s32 0, %v2523
    %v2525 = vrot.slane %v2492, %v2524
    %v2527 = vmul.f32 %v2519, %v2525
    %v2528 = vmul.f32 %v2520, %v2525
    %v2530 = vlaneseq
    %v2531 = vshrl.u32 %v2530, 7
    %v2532 = vsub.s32 0, %v2531
    %v2533 = vrot.slane %v2494, %v2532
    %v2535 = vadd.f32 %v2527, %v2533
    %v2536 = vadd.f32 %v2528, %v2533
    %s2537 = scalar_lea.vmem [#allocation13], 32
    %v2538 = vld [vmem:[%s2537] sm:$0xff]
    %v2539 = vld [vmem:[%s2537 + $0x8] sm:$0xff]
    %v2540 = vld [vmem:[%s2537 + $0x10] sm:$0xff]
    %v2541 = vld [vmem:[%s2537 + $0x18] sm:$0xff]
    %s2542 = scalar_lea.vmem [#allocation14], 1
    %v2543 = vld [vmem:[%s2542] sm:$0x1]
    %v2545 = vlaneseq
    %v2546 = vshrl.u32 %v2545, 7
    %v2547 = vsub.s32 0, %v2546
    %v2548 = vrot.slane %v2543, %v2547
    %v2551 = vsel %vm238, %v2535, 0
    %v2554 = vsel %vm238, %v2536, 0
    %2556 = vmatprep.subr.mxu0 0.0
    %2557 = vmatpush1.msra.mxu0 0.0
    %2558 = vmatprep.subr.mxu0 0.0
    %2559 = vmatpush1.msra.mxu0 0.0
    %2560 = vmatprep.subr.mxu0 0.0
    %2561 = vmatpush1.msra.mxu0 0.0
    %2562 = vmatprep.subr.mxu0 0.0
    %2563 = vmatpush1.msra.mxu0 0.0
    %2564 = vmatprep.subr.mxu0 0.0
    %2565 = vmatpush1.msra.mxu0 0.0
    %2566 = vmatprep.subr.mxu0 0.0
    %2567 = vmatpush1.msra.mxu0 0.0
    %2568 = vmatprep.subr.mxu0 0.0
    %2569 = vmatpush1.msra.mxu0 0.0
    %2570 = vmatprep.subr.mxu0 0.0
    %2571 = vmatpush1.msra.mxu0 0.0
    %2572 = vmatprep.subr.mxu0 0.0
    %2573 = vmatpush1.msra.mxu0 0.0
    %2574 = vmatprep.subr.mxu0 0.0
    %2575 = vmatpush1.msra.mxu0 0.0
    %2576 = vmatprep.subr.mxu0 0.0
    %2577 = vmatpush1.msra.mxu0 0.0
    %2578 = vmatprep.subr.mxu0 0.0
    %2579 = vmatpush1.msra.mxu0 0.0
    %2580 = vmatprep.subr.mxu0 0.0
    %2581 = vmatpush1.msra.mxu0 %v2541
    %2582 = vmatprep.subr.mxu0 0.0
    %2583 = vmatpush1.msra.mxu0 %v2540
    %2584 = vmatprep.subr.mxu0 0.0
    %2585 = vmatpush1.msra.mxu0 %v2539
    %2586 = vmatprep.subr.mxu0 0.0
    %2587 = vmatpush1.msra.mxu0 %v2538
    %2588 = vmatprep.subr.mxu0 0.0
    %2589 = vmatpush2.msra.mxu0 0.0
    %2590 = vmatprep.subr.mxu0 0.0
    %2591 = vmatpush2.msra.mxu0 0.0
    %2592 = vmatprep.subr.mxu0 0.0
    %2593 = vmatpush2.msra.mxu0 0.0
    %2594 = vmatprep.subr.mxu0 0.0
    %2595 = vmatpush2.msra.mxu0 0.0
    %2596 = vmatprep.subr.mxu0 0.0
    %2597 = vmatpush2.msra.mxu0 0.0
    %2598 = vmatprep.subr.mxu0 0.0
    %2599 = vmatpush2.msra.mxu0 0.0
    %2600 = vmatprep.subr.mxu0 0.0
    %2601 = vmatpush2.msra.mxu0 0.0
    %2602 = vmatprep.subr.mxu0 0.0
    %2603 = vmatpush2.msra.mxu0 0.0
    %2604 = vmatprep.subr.mxu0 0.0
    %2605 = vmatpush2.msra.mxu0 0.0
    %2606 = vmatprep.subr.mxu0 0.0
    %2607 = vmatpush2.msra.mxu0 0.0
    %2608 = vmatprep.subr.mxu0 0.0
    %2609 = vmatpush2.msra.mxu0 0.0
    %2610 = vmatprep.subr.mxu0 0.0
    %2611 = vmatpush2.msra.mxu0 0.0
    %2612 = vmatprep.subr.mxu0 0.0
    %2613 = vmatpush2.msra.mxu0 0.0
    %2614 = vmatprep.subr.mxu0 0.0
    %2615 = vmatpush2.msra.mxu0 0.0
    %2616 = vmatprep.subr.mxu0 0.0
    %2617 = vmatpush2.msra.mxu0 0.0
    %2618 = vmatprep.subr.mxu0 0.0
    %2619 = vmatpush2.msra.mxu0 0.0
    %2620 = vmatprep.mubr.f32.mxu0 0.0
    %2621 = vmatmul.mubr.f32.gmra.mxu0 %v2551
    %v2622 = vpop.f32.mrf.mxu0
    %v2623 = vadd.f32 %v2548, %v2622
    %v2624 = vpop.f32.mrf.mxu0
    %2625 = vmatprep.mubr.f32.mxu0 0.0
    %2626 = vmatmul.mubr.f32.gmra.mxu0 %v2554
    %v2627 = vpop.f32.mrf.mxu0
    %v2628 = vadd.f32 %v2548, %v2627
    %v2629 = vpop.f32.mrf.mxu0
    %2630 = vdwg.mxu0
    %v2631 = vmul.f32 %v2623, %v2623
    %v2632 = vmul.f32 %v2628, %v2628
    %v2633 = vmul.f32 %v2623, %v2631
    %v2634 = vmul.f32 %v2628, %v2632
    %v2635 = vmul.f32 %v2633, 0.044715
    %v2636 = vmul.f32 %v2634, 0.044715
    %v2637 = vadd.f32 %v2623, %v2635
    %v2638 = vadd.f32 %v2628, %v2636
    %v2639 = vmul.f32 %v2637, 0.7978846
    %v2640 = vmul.f32 %v2638, 0.7978846
    %v2641 = vtanh.pop %v2639
    %v2642 = vtanh.pop %v2640
    %v2643 = vadd.f32 %v2641, 1.0
    %v2644 = vadd.f32 %v2642, 1.0
    %v2645 = vmul.f32 %v2643, 0.5
    %v2646 = vmul.f32 %v2644, 0.5
    %v2647 = vmul.f32 %v2623, %v2645
    %v2648 = vmul.f32 %v2628, %v2646
    %s2649 = scalar_lea.vmem %s12, 64
    %v2650 = vld [vmem:[%s2649] sm:$0xff]
    %v2651 = vld [vmem:[%s2649 + $0x8] sm:$0xff]
    %v2652 = vld [vmem:[%s2649 + $0x10] sm:$0xff]
    %v2653 = vld [vmem:[%s2649 + $0x18] sm:$0xff]
    %v2654 = vld [vmem:[%s2649 + $0x20] sm:$0xff]
    %v2655 = vld [vmem:[%s2649 + $0x28] sm:$0xff]
    %v2656 = vld [vmem:[%s2649 + $0x30] sm:$0xff]
    %v2657 = vld [vmem:[%s2649 + $0x38] sm:$0xff]
    %s2658 = scalar_lea.vmem [#allocation16], 1
    %v2659 = vld [vmem:[%s2658] sm:$0x1]
    %v2661 = vlaneseq
    %v2662 = vshrl.u32 %v2661, 7
    %v2663 = vsub.s32 0, %v2662
    %v2664 = vrot.slane %v2659, %v2663
    %v2667 = vsel %vm1424, %v2647, 0
    %v2670 = vsel %vm1424, %v2648, 0
    %2672 = vmatprep.subr.mxu0 0.0
    %2673 = vmatpush1.msra.mxu0 0.0
    %2674 = vmatprep.subr.mxu0 0.0
    %2675 = vmatpush1.msra.mxu0 0.0
    %2676 = vmatprep.subr.mxu0 0.0
    %2677 = vmatpush1.msra.mxu0 0.0
    %2678 = vmatprep.subr.mxu0 0.0
    %2679 = vmatpush1.msra.mxu0 0.0
    %2680 = vmatprep.subr.mxu0 0.0
    %2681 = vmatpush1.msra.mxu0 0.0
    %2682 = vmatprep.subr.mxu0 0.0
    %2683 = vmatpush1.msra.mxu0 0.0
    %2684 = vmatprep.subr.mxu0 0.0
    %2685 = vmatpush1.msra.mxu0 0.0
    %2686 = vmatprep.subr.mxu0 0.0
    %2687 = vmatpush1.msra.mxu0 0.0
    %2688 = vmatprep.subr.mxu0 0.0
    %2689 = vmatpush1.msra.mxu0 %v2657
    %2690 = vmatprep.subr.mxu0 0.0
    %2691 = vmatpush1.msra.mxu0 %v2656
    %2692 = vmatprep.subr.mxu0 0.0
    %2693 = vmatpush1.msra.mxu0 %v2655
    %2694 = vmatprep.subr.mxu0 0.0
    %2695 = vmatpush1.msra.mxu0 %v2654
    %2696 = vmatprep.subr.mxu0 0.0
    %2697 = vmatpush1.msra.mxu0 %v2653
    %2698 = vmatprep.subr.mxu0 0.0
    %2699 = vmatpush1.msra.mxu0 %v2652
    %2700 = vmatprep.subr.mxu0 0.0
    %2701 = vmatpush1.msra.mxu0 %v2651
    %2702 = vmatprep.subr.mxu0 0.0
    %2703 = vmatpush1.msra.mxu0 %v2650
    %2704 = vmatprep.subr.mxu0 0.0
    %2705 = vmatpush2.msra.mxu0 0.0
    %2706 = vmatprep.subr.mxu0 0.0
    %2707 = vmatpush2.msra.mxu0 0.0
    %2708 = vmatprep.subr.mxu0 0.0
    %2709 = vmatpush2.msra.mxu0 0.0
    %2710 = vmatprep.subr.mxu0 0.0
    %2711 = vmatpush2.msra.mxu0 0.0
    %2712 = vmatprep.subr.mxu0 0.0
    %2713 = vmatpush2.msra.mxu0 0.0
    %2714 = vmatprep.subr.mxu0 0.0
    %2715 = vmatpush2.msra.mxu0 0.0
    %2716 = vmatprep.subr.mxu0 0.0
    %2717 = vmatpush2.msra.mxu0 0.0
    %2718 = vmatprep.subr.mxu0 0.0
    %2719 = vmatpush2.msra.mxu0 0.0
    %2720 = vmatprep.subr.mxu0 0.0
    %2721 = vmatpush2.msra.mxu0 0.0
    %2722 = vmatprep.subr.mxu0 0.0
    %2723 = vmatpush2.msra.mxu0 0.0
    %2724 = vmatprep.subr.mxu0 0.0
    %2725 = vmatpush2.msra.mxu0 0.0
    %2726 = vmatprep.subr.mxu0 0.0
    %2727 = vmatpush2.msra.mxu0 0.0
    %2728 = vmatprep.subr.mxu0 0.0
    %2729 = vmatpush2.msra.mxu0 0.0
    %2730 = vmatprep.subr.mxu0 0.0
    %2731 = vmatpush2.msra.mxu0 0.0
    %2732 = vmatprep.subr.mxu0 0.0
    %2733 = vmatpush2.msra.mxu0 0.0
    %2734 = vmatprep.subr.mxu0 0.0
    %2735 = vmatpush2.msra.mxu0 0.0
    %2736 = vmatprep.mubr.f32.mxu0 0.0
    %2737 = vmatmul.mubr.f32.gmra.mxu0 %v2667
    %v2738 = vpop.f32.mrf.mxu0
    %v2739 = vadd.f32 %v2664, %v2738
    %v2740 = vpop.f32.mrf.mxu0
    %2741 = vmatprep.mubr.f32.mxu0 0.0
    %2742 = vmatmul.mubr.f32.gmra.mxu0 %v2670
    %v2743 = vpop.f32.mrf.mxu0
    %v2744 = vadd.f32 %v2664, %v2743
    %v2745 = vpop.f32.mrf.mxu0
    %2746 = vdwg.mxu0
    %v2747 = vadd.f32 %v2739, %v2535
    %v2748 = vadd.f32 %v2744, %v2536
    %s2749 = scalar_lea.vmem [#allocation17], 1
    %v2750 = vld [vmem:[%s2749] sm:$0x1]
    %s2751 = scalar_lea.vmem [#allocation19], 1
    %v2752 = vld [vmem:[%s2751] sm:$0x1]
    %v2753 = vsel %vm238, %v2747, 0.0
    %2754 = vadd.xlane.f32.xlu0 %v2753
    %v2755 = vpop.xlane.xlu0 %2754
    %v2756 = vsel %vm238, %v2748, 0.0
    %2757 = vadd.xlane.f32.xlu0 %v2756
    %v2758 = vpop.xlane.xlu0 %2757
    %v2759 = vmul.f32 %v2755, %v245
    %v2760 = vmul.f32 %v2758, %v245
    %v2761 = vsub.f32 %v2747, %v2759
    %v2762 = vsub.f32 %v2748, %v2760
    %v2763 = vmul.f32 %v2761, %v2761
    %v2764 = vmul.f32 %v2762, %v2762
    %v2765 = vsel %vm238, %v2763, 0.0
    %2766 = vadd.xlane.f32.xlu0 %v2765
    %v2767 = vpop.xlane.xlu0 %2766
    %v2768 = vsel %vm238, %v2764, 0.0
    %2769 = vadd.xlane.f32.xlu0 %v2768
    %v2770 = vpop.xlane.xlu0 %2769
    %v2771 = vmul.f32 %v2767, %v245
    %v2772 = vmul.f32 %v2770, %v245
    %v2773 = vadd.f32 %v2771, 1e-05
    %v2774 = vadd.f32 %v2772, 1e-05
    %v2775 = vrsqrt.pop %v2773
    %v2776 = vrsqrt.pop %v2774
    %v2777 = vmul.f32 %v2761, %v2775
    %v2778 = vmul.f32 %v2762, %v2776
    %v2780 = vlaneseq
    %v2781 = vshrl.u32 %v2780, 7
    %v2782 = vsub.s32 0, %v2781
    %v2783 = vrot.slane %v2750, %v2782
    %v2785 = vmul.f32 %v2777, %v2783
    %v2786 = vmul.f32 %v2778, %v2783
    %v2788 = vlaneseq
    %v2789 = vshrl.u32 %v2788, 7
    %v2790 = vsub.s32 0, %v2789
    %v2791 = vrot.slane %v2752, %v2790
    %v2793 = vadd.f32 %v2785, %v2791
    %v2794 = vadd.f32 %v2786, %v2791
    %v2795 = vlaneseq
    %v2796 = vand.u32 %v2795, 127
    %v2797 = vlaneseq
    %v2798 = vshrl.u32 %v2797, 7
    %v2799 = vmul.u32 %v2798, 8
    %vm2800 = vcmp.eq.s32.totalorder %v2796, %v2799
    %v2801 = vsel %vm2800, 1, 0
    %v2802 = vcvt.s32.f32 %v2801
    %v2804 = vsel %vm407, %v2802, 0
    %2806 = vmatprep.subr.mxu0 0.0
    %2807 = vmatpush1.msra.mxu0 0.0
    %2808 = vmatprep.subr.mxu0 0.0
    %2809 = vmatpush1.msra.mxu0 0.0
    %2810 = vmatprep.subr.mxu0 0.0
    %2811 = vmatpush1.msra.mxu0 0.0
    %2812 = vmatprep.subr.mxu0 0.0
    %2813 = vmatpush1.msra.mxu0 0.0
    %2814 = vmatprep.subr.mxu0 0.0
    %2815 = vmatpush1.msra.mxu0 0.0
    %2816 = vmatprep.subr.mxu0 0.0
    %2817 = vmatpush1.msra.mxu0 0.0
    %2818 = vmatprep.subr.mxu0 0.0
    %2819 = vmatpush1.msra.mxu0 0.0
    %2820 = vmatprep.subr.mxu0 0.0
    %2821 = vmatpush1.msra.mxu0 0.0
    %2822 = vmatprep.subr.mxu0 0.0
    %2823 = vmatpush1.msra.mxu0 0.0
    %2824 = vmatprep.subr.mxu0 0.0
    %2825 = vmatpush1.msra.mxu0 0.0
    %2826 = vmatprep.subr.mxu0 0.0
    %2827 = vmatpush1.msra.mxu0 0.0
    %2828 = vmatprep.subr.mxu0 0.0
    %2829 = vmatpush1.msra.mxu0 0.0
    %2830 = vmatprep.subr.mxu0 0.0
    %2831 = vmatpush1.msra.mxu0 0.0
    %2832 = vmatprep.subr.mxu0 0.0
    %2833 = vmatpush1.msra.mxu0 0.0
    %2834 = vmatprep.subr.mxu0 0.0
    %2835 = vmatpush1.msra.mxu0 %v2794
    %2836 = vmatprep.subr.mxu0 0.0
    %2837 = vmatpush1.msra.mxu0 %v2793
    %2838 = vmatprep.subr.mxu0 0.0
    %2839 = vmatpush2.msra.mxu0 0.0
    %2840 = vmatprep.subr.mxu0 0.0
    %2841 = vmatpush2.msra.mxu0 0.0
    %2842 = vmatprep.subr.mxu0 0.0
    %2843 = vmatpush2.msra.mxu0 0.0
    %2844 = vmatprep.subr.mxu0 0.0
    %2845 = vmatpush2.msra.mxu0 0.0
    %2846 = vmatprep.subr.mxu0 0.0
    %2847 = vmatpush2.msra.mxu0 0.0
    %2848 = vmatprep.subr.mxu0 0.0
    %2849 = vmatpush2.msra.mxu0 0.0
    %2850 = vmatprep.subr.mxu0 0.0
    %2851 = vmatpush2.msra.mxu0 0.0
    %2852 = vmatprep.subr.mxu0 0.0
    %2853 = vmatpush2.msra.mxu0 0.0
    %2854 = vmatprep.subr.mxu0 0.0
    %2855 = vmatpush2.msra.mxu0 0.0
    %2856 = vmatprep.subr.mxu0 0.0
    %2857 = vmatpush2.msra.mxu0 0.0
    %2858 = vmatprep.subr.mxu0 0.0
    %2859 = vmatpush2.msra.mxu0 0.0
    %2860 = vmatprep.subr.mxu0 0.0
    %2861 = vmatpush2.msra.mxu0 0.0
    %2862 = vmatprep.subr.mxu0 0.0
    %2863 = vmatpush2.msra.mxu0 0.0
    %2864 = vmatprep.subr.mxu0 0.0
    %2865 = vmatpush2.msra.mxu0 0.0
    %2866 = vmatprep.subr.mxu0 0.0
    %2867 = vmatpush2.msra.mxu0 0.0
    %2868 = vmatprep.subr.mxu0 0.0
    %2869 = vmatpush2.msra.mxu0 0.0
    %2870 = vmatprep.mubr.f32.mxu0 0.0
    %2871 = vmatmul.mubr.f32.gmra.mxu0 %v2804
    %v2872 = vpop.f32.mrf.mxu0
    %v2873 = vadd.f32 0.0, %v2872
    %v2874 = vpop.f32.mrf.mxu0
    %2875 = vdwg.mxu0
    %v2876 = vld [vmem:[%s16] sm:$0xff]
    %v2877 = vld [vmem:[%s16 + $0x8] sm:$0xff]
    %v2878 = vld [vmem:[%s16 + $0x10] sm:$0xff]
    %v2879 = vld [vmem:[%s16 + $0x18] sm:$0xff]
    %v2880 = vld [vmem:[%s16 + $0x20] sm:$0xff]
    %v2881 = vld [vmem:[%s16 + $0x28] sm:$0xff]
    %v2882 = vld [vmem:[%s16 + $0x30] sm:$0xff]
    %v2883 = vld [vmem:[%s16 + $0x38] sm:$0xff]
    %v2884 = vld [vmem:[%s16 + $0x40] sm:$0xff]
    %v2885 = vld [vmem:[%s16 + $0x48] sm:$0xff]
    %v2886 = vld [vmem:[%s16 + $0x50] sm:$0xff]
    %v2887 = vld [vmem:[%s16 + $0x58] sm:$0xff]
    %v2888 = vld [vmem:[%s16 + $0x60] sm:$0xff]
    %v2889 = vld [vmem:[%s16 + $0x68] sm:$0xff]
    %v2890 = vld [vmem:[%s16 + $0x70] sm:$0xff]
    %v2891 = vld [vmem:[%s16 + $0x78] sm:$0xff]
    %v2892 = vld [vmem:[#allocation20] sm:$0xf]
    %v2894 = vlaneseq
    %v2895 = vshrl.u32 %v2894, 7
    %v2896 = vsub.s32 0, %v2895
    %v2897 = vrot.slane %v2892, %v2896
    %v2898 = vlaneseq
    %v2899 = vshrl.u32 %v2898, 7
    %v2900 = vsub.s32 1, %v2899
    %v2901 = vrot.slane %v2892, %v2900
    %v2902 = vlaneseq
    %v2903 = vshrl.u32 %v2902, 7
    %v2904 = vsub.s32 2, %v2903
    %v2905 = vrot.slane %v2892, %v2904
    %v2906 = vlaneseq
    %v2907 = vshrl.u32 %v2906, 7
    %v2908 = vsub.s32 3, %v2907
    %v2909 = vrot.slane %v2892, %v2908
    %v2915 = vsel %vm238, %v2873, 0
    %2917 = vmatprep.subr.mxu0 0.0
    %2918 = vmatpush1.msra.mxu0 0.0
    %2919 = vmatprep.subr.mxu0 0.0
    %2920 = vmatpush1.msra.mxu0 0.0
    %2921 = vmatprep.subr.mxu0 0.0
    %2922 = vmatpush1.msra.mxu0 0.0
    %2923 = vmatprep.subr.mxu0 0.0
    %2924 = vmatpush1.msra.mxu0 0.0
    %2925 = vmatprep.subr.mxu0 0.0
    %2926 = vmatpush1.msra.mxu0 0.0
    %2927 = vmatprep.subr.mxu0 0.0
    %2928 = vmatpush1.msra.mxu0 0.0
    %2929 = vmatprep.subr.mxu0 0.0
    %2930 = vmatpush1.msra.mxu0 0.0
    %2931 = vmatprep.subr.mxu0 0.0
    %2932 = vmatpush1.msra.mxu0 0.0
    %2933 = vmatprep.subr.mxu0 0.0
    %2934 = vmatpush1.msra.mxu0 0.0
    %2935 = vmatprep.subr.mxu0 0.0
    %2936 = vmatpush1.msra.mxu0 0.0
    %2937 = vmatprep.subr.mxu0 0.0
    %2938 = vmatpush1.msra.mxu0 0.0
    %2939 = vmatprep.subr.mxu0 0.0
    %2940 = vmatpush1.msra.mxu0 0.0
    %2941 = vmatprep.subr.mxu0 %v2889
    %2942 = vmatpush1.msra.mxu0 %v2888
    %2943 = vmatprep.subr.mxu0 %v2885
    %2944 = vmatpush1.msra.mxu0 %v2884
    %2945 = vmatprep.subr.mxu0 %v2881
    %2946 = vmatpush1.msra.mxu0 %v2880
    %2947 = vmatprep.subr.mxu0 %v2877
    %2948 = vmatpush1.msra.mxu0 %v2876
    %2949 = vmatprep.subr.mxu0 0.0
    %2950 = vmatpush2.msra.mxu0 0.0
    %2951 = vmatprep.subr.mxu0 0.0
    %2952 = vmatpush2.msra.mxu0 0.0
    %2953 = vmatprep.subr.mxu0 0.0
    %2954 = vmatpush2.msra.mxu0 0.0
    %2955 = vmatprep.subr.mxu0 0.0
    %2956 = vmatpush2.msra.mxu0 0.0
    %2957 = vmatprep.subr.mxu0 0.0
    %2958 = vmatpush2.msra.mxu0 0.0
    %2959 = vmatprep.subr.mxu0 0.0
    %2960 = vmatpush2.msra.mxu0 0.0
    %2961 = vmatprep.subr.mxu0 0.0
    %2962 = vmatpush2.msra.mxu0 0.0
    %2963 = vmatprep.subr.mxu0 0.0
    %2964 = vmatpush2.msra.mxu0 0.0
    %2965 = vmatprep.subr.mxu0 0.0
    %2966 = vmatpush2.msra.mxu0 0.0
    %2967 = vmatprep.subr.mxu0 0.0
    %2968 = vmatpush2.msra.mxu0 0.0
    %2969 = vmatprep.subr.mxu0 0.0
    %2970 = vmatpush2.msra.mxu0 0.0
    %2971 = vmatprep.subr.mxu0 0.0
    %2972 = vmatpush2.msra.mxu0 0.0
    %2973 = vmatprep.subr.mxu0 0.0
    %2974 = vmatpush2.msra.mxu0 0.0
    %2975 = vmatprep.subr.mxu0 0.0
    %2976 = vmatpush2.msra.mxu0 0.0
    %2977 = vmatprep.subr.mxu0 0.0
    %2978 = vmatpush2.msra.mxu0 0.0
    %2979 = vmatprep.subr.mxu0 0.0
    %2980 = vmatpush2.msra.mxu0 0.0
    %2981 = vmatprep.mubr.f32.mxu0 0.0
    %2982 = vmatmul.mubr.f32.gmra.mxu0 %v2915
    %v2983 = vpop.f32.mrf.mxu0
    %v2984 = vadd.f32 %v2897, %v2983
    %v2985 = vpop.f32.mrf.mxu0
    %v2986 = vadd.f32 %v2901, %v2985
    %2987 = vdwg.mxu0
    %2988 = vmatprep.subr.mxu0 0.0
    %2989 = vmatpush1.msra.mxu0 0.0
    %2990 = vmatprep.subr.mxu0 0.0
    %2991 = vmatpush1.msra.mxu0 0.0
    %2992 = vmatprep.subr.mxu0 0.0
    %2993 = vmatpush1.msra.mxu0 0.0
    %2994 = vmatprep.subr.mxu0 0.0
    %2995 = vmatpush1.msra.mxu0 0.0
    %2996 = vmatprep.subr.mxu0 0.0
    %2997 = vmatpush1.msra.mxu0 0.0
    %2998 = vmatprep.subr.mxu0 0.0
    %2999 = vmatpush1.msra.mxu0 0.0
    %3000 = vmatprep.subr.mxu0 0.0
    %3001 = vmatpush1.msra.mxu0 0.0
    %3002 = vmatprep.subr.mxu0 0.0
    %3003 = vmatpush1.msra.mxu0 0.0
    %3004 = vmatprep.subr.mxu0 0.0
    %3005 = vmatpush1.msra.mxu0 0.0
    %3006 = vmatprep.subr.mxu0 0.0
    %3007 = vmatpush1.msra.mxu0 0.0
    %3008 = vmatprep.subr.mxu0 0.0
    %3009 = vmatpush1.msra.mxu0 0.0
    %3010 = vmatprep.subr.mxu0 0.0
    %3011 = vmatpush1.msra.mxu0 0.0
    %3012 = vmatprep.subr.mxu0 %v2891
    %3013 = vmatpush1.msra.mxu0 %v2890
    %3014 = vmatprep.subr.mxu0 %v2887
    %3015 = vmatpush1.msra.mxu0 %v2886
    %3016 = vmatprep.subr.mxu0 %v2883
    %3017 = vmatpush1.msra.mxu0 %v2882
    %3018 = vmatprep.subr.mxu0 %v2879
    %3019 = vmatpush1.msra.mxu0 %v2878
    %3020 = vmatprep.subr.mxu0 0.0
    %3021 = vmatpush2.msra.mxu0 0.0
    %3022 = vmatprep.subr.mxu0 0.0
    %3023 = vmatpush2.msra.mxu0 0.0
    %3024 = vmatprep.subr.mxu0 0.0
    %3025 = vmatpush2.msra.mxu0 0.0
    %3026 = vmatprep.subr.mxu0 0.0
    %3027 = vmatpush2.msra.mxu0 0.0
    %3028 = vmatprep.subr.mxu0 0.0
    %3029 = vmatpush2.msra.mxu0 0.0
    %3030 = vmatprep.subr.mxu0 0.0
    %3031 = vmatpush2.msra.mxu0 0.0
    %3032 = vmatprep.subr.mxu0 0.0
    %3033 = vmatpush2.msra.mxu0 0.0
    %3034 = vmatprep.subr.mxu0 0.0
    %3035 = vmatpush2.msra.mxu0 0.0
    %3036 = vmatprep.subr.mxu0 0.0
    %3037 = vmatpush2.msra.mxu0 0.0
    %3038 = vmatprep.subr.mxu0 0.0
    %3039 = vmatpush2.msra.mxu0 0.0
    %3040 = vmatprep.subr.mxu0 0.0
    %3041 = vmatpush2.msra.mxu0 0.0
    %3042 = vmatprep.subr.mxu0 0.0
    %3043 = vmatpush2.msra.mxu0 0.0
    %3044 = vmatprep.subr.mxu0 0.0
    %3045 = vmatpush2.msra.mxu0 0.0
    %3046 = vmatprep.subr.mxu0 0.0
    %3047 = vmatpush2.msra.mxu0 0.0
    %3048 = vmatprep.subr.mxu0 0.0
    %3049 = vmatpush2.msra.mxu0 0.0
    %3050 = vmatprep.subr.mxu0 0.0
    %3051 = vmatpush2.msra.mxu0 0.0
    %3052 = vmatprep.mubr.f32.mxu0 0.0
    %3053 = vmatmul.mubr.f32.gmra.mxu0 %v2915
    %v3054 = vpop.f32.mrf.mxu0
    %v3055 = vadd.f32 %v2905, %v3054
    %v3056 = vpop.f32.mrf.mxu0
    %v3057 = vadd.f32 %v2909, %v3056
    %3058 = vdwg.mxu0
    %v3059 = vmax.f32 %v2984, 0.0
    %v3060 = vmax.f32 %v2986, 0.0
    %v3061 = vmax.f32 %v3055, 0.0
    %v3062 = vmax.f32 %v3057, 0.0
    %v3063 = vld [vmem:[%s18] sm:$0xff]
    %v3064 = vld [vmem:[%s18 + $0x8] sm:$0xff]
    %v3065 = vld [vmem:[%s18 + $0x10] sm:$0xff]
    %v3066 = vld [vmem:[%s18 + $0x18] sm:$0xff]
    %v3067 = vld [vmem:[%s18 + $0x20] sm:$0xff]
    %v3068 = vld [vmem:[%s18 + $0x28] sm:$0xff]
    %v3069 = vld [vmem:[%s18 + $0x30] sm:$0xff]
    %v3070 = vld [vmem:[%s18 + $0x38] sm:$0xff]
    %v3071 = vld [vmem:[%s18 + $0x40] sm:$0xff]
    %v3072 = vld [vmem:[%s18 + $0x48] sm:$0xff]
    %v3073 = vld [vmem:[%s18 + $0x50] sm:$0xff]
    %v3074 = vld [vmem:[%s18 + $0x58] sm:$0xff]
    %v3075 = vld [vmem:[%s18 + $0x60] sm:$0xff]
    %v3076 = vld [vmem:[%s18 + $0x68] sm:$0xff]
    %v3077 = vld [vmem:[%s18 + $0x70] sm:$0xff]
    %v3078 = vld [vmem:[%s18 + $0x78] sm:$0xff]
    %v3079 = vld [vmem:[%s18 + $0x80] sm:$0xff]
    %v3080 = vld [vmem:[%s18 + $0x88] sm:$0xff]
    %v3081 = vld [vmem:[%s18 + $0x90] sm:$0xff]
    %v3082 = vld [vmem:[%s18 + $0x98] sm:$0xff]
    %v3083 = vld [vmem:[%s18 + $0xa0] sm:$0xff]
    %v3084 = vld [vmem:[%s18 + $0xa8] sm:$0xff]
    %v3085 = vld [vmem:[%s18 + $0xb0] sm:$0xff]
    %v3086 = vld [vmem:[%s18 + $0xb8] sm:$0xff]
    %v3087 = vld [vmem:[%s18 + $0xc0] sm:$0xff]
    %v3088 = vld [vmem:[%s18 + $0xc8] sm:$0xff]
    %v3089 = vld [vmem:[%s18 + $0xd0] sm:$0xff]
    %v3090 = vld [vmem:[%s18 + $0xd8] sm:$0xff]
    %v3091 = vld [vmem:[%s18 + $0xe0] sm:$0xff]
    %v3092 = vld [vmem:[%s18 + $0xe8] sm:$0xff]
    %v3093 = vld [vmem:[%s18 + $0xf0] sm:$0xff]
    %v3094 = vld [vmem:[%s18 + $0xf8] sm:$0xff]
    %v3095 = vld [vmem:[%s18 + $0x100] sm:$0xff]
    %v3096 = vld [vmem:[%s18 + $0x108] sm:$0xff]
    %v3097 = vld [vmem:[%s18 + $0x110] sm:$0xff]
    %v3098 = vld [vmem:[%s18 + $0x118] sm:$0xff]
    %v3099 = vld [vmem:[%s18 + $0x120] sm:$0xff]
    %v3100 = vld [vmem:[%s18 + $0x128] sm:$0xff]
    %v3101 = vld [vmem:[%s18 + $0x130] sm:$0xff]
    %v3102 = vld [vmem:[%s18 + $0x138] sm:$0xff]
    %v3103 = vld [vmem:[%s18 + $0x140] sm:$0xff]
    %v3104 = vld [vmem:[%s18 + $0x148] sm:$0xff]
    %v3105 = vld [vmem:[%s18 + $0x150] sm:$0xff]
    %v3106 = vld [vmem:[%s18 + $0x158] sm:$0xff]
    %v3107 = vld [vmem:[%s18 + $0x160] sm:$0xff]
    %v3108 = vld [vmem:[%s18 + $0x168] sm:$0xff]
    %v3109 = vld [vmem:[%s18 + $0x170] sm:$0xff]
    %v3110 = vld [vmem:[%s18 + $0x178] sm:$0xff]
    %v3111 = vld [vmem:[%s18 + $0x180] sm:$0xff]
    %v3112 = vld [vmem:[%s18 + $0x188] sm:$0xff]
    %v3113 = vld [vmem:[%s18 + $0x190] sm:$0xff]
    %v3114 = vld [vmem:[%s18 + $0x198] sm:$0xff]
    %v3115 = vld [vmem:[%s18 + $0x1a0] sm:$0xff]
    %v3116 = vld [vmem:[%s18 + $0x1a8] sm:$0xff]
    %v3117 = vld [vmem:[%s18 + $0x1b0] sm:$0xff]
    %v3118 = vld [vmem:[%s18 + $0x1b8] sm:$0xff]
    %v3119 = vld [vmem:[%s18 + $0x1c0] sm:$0xff]
    %v3120 = vld [vmem:[%s18 + $0x1c8] sm:$0xff]
    %v3121 = vld [vmem:[%s18 + $0x1d0] sm:$0xff]
    %v3122 = vld [vmem:[%s18 + $0x1d8] sm:$0xff]
    %v3123 = vld [vmem:[%s18 + $0x1e0] sm:$0xff]
    %v3124 = vld [vmem:[%s18 + $0x1e8] sm:$0xff]
    %v3125 = vld [vmem:[%s18 + $0x1f0] sm:$0xff]
    %v3126 = vld [vmem:[%s18 + $0x1f8] sm:$0xff]
    %v3127 = vld [vmem:[#allocation22] sm:$0x1]
    %v3129 = vlaneseq
    %v3130 = vshrl.u32 %v3129, 7
    %v3131 = vsub.s32 0, %v3130
    %v3132 = vrot.slane %v3127, %v3131
    %3134 = vmatprep.subr.mxu0 0.0
    %3135 = vmatpush1.msra.mxu0 %v3078
    %3136 = vmatprep.subr.mxu0 0.0
    %3137 = vmatpush1.msra.mxu0 %v3077
    %3138 = vmatprep.subr.mxu0 0.0
    %3139 = vmatpush1.msra.mxu0 %v3076
    %3140 = vmatprep.subr.mxu0 0.0
    %3141 = vmatpush1.msra.mxu0 %v3075
    %3142 = vmatprep.subr.mxu0 0.0
    %3143 = vmatpush1.msra.mxu0 %v3074
    %3144 = vmatprep.subr.mxu0 0.0
    %3145 = vmatpush1.msra.mxu0 %v3073
    %3146 = vmatprep.subr.mxu0 0.0
    %3147 = vmatpush1.msra.mxu0 %v3072
    %3148 = vmatprep.subr.mxu0 0.0
    %3149 = vmatpush1.msra.mxu0 %v3071
    %3150 = vmatprep.subr.mxu0 0.0
    %3151 = vmatpush1.msra.mxu0 %v3070
    %3152 = vmatprep.subr.mxu0 0.0
    %3153 = vmatpush1.msra.mxu0 %v3069
    %3154 = vmatprep.subr.mxu0 0.0
    %3155 = vmatpush1.msra.mxu0 %v3068
    %3156 = vmatprep.subr.mxu0 0.0
    %3157 = vmatpush1.msra.mxu0 %v3067
    %3158 = vmatprep.subr.mxu0 0.0
    %3159 = vmatpush1.msra.mxu0 %v3066
    %3160 = vmatprep.subr.mxu0 0.0
    %3161 = vmatpush1.msra.mxu0 %v3065
    %3162 = vmatprep.subr.mxu0 0.0
    %3163 = vmatpush1.msra.mxu0 %v3064
    %3164 = vmatprep.subr.mxu0 0.0
    %3165 = vmatpush1.msra.mxu0 %v3063
    %3166 = vmatprep.subr.mxu0 0.0
    %3167 = vmatpush2.msra.mxu0 %v3094
    %3168 = vmatprep.subr.mxu0 0.0
    %3169 = vmatpush2.msra.mxu0 %v3093
    %3170 = vmatprep.subr.mxu0 0.0
    %3171 = vmatpush2.msra.mxu0 %v3092
    %3172 = vmatprep.subr.mxu0 0.0
    %3173 = vmatpush2.msra.mxu0 %v3091
    %3174 = vmatprep.subr.mxu0 0.0
    %3175 = vmatpush2.msra.mxu0 %v3090
    %3176 = vmatprep.subr.mxu0 0.0
    %3177 = vmatpush2.msra.mxu0 %v3089
    %3178 = vmatprep.subr.mxu0 0.0
    %3179 = vmatpush2.msra.mxu0 %v3088
    %3180 = vmatprep.subr.mxu0 0.0
    %3181 = vmatpush2.msra.mxu0 %v3087
    %3182 = vmatprep.subr.mxu0 0.0
    %3183 = vmatpush2.msra.mxu0 %v3086
    %3184 = vmatprep.subr.mxu0 0.0
    %3185 = vmatpush2.msra.mxu0 %v3085
    %3186 = vmatprep.subr.mxu0 0.0
    %3187 = vmatpush2.msra.mxu0 %v3084
    %3188 = vmatprep.subr.mxu0 0.0
    %3189 = vmatpush2.msra.mxu0 %v3083
    %3190 = vmatprep.subr.mxu0 0.0
    %3191 = vmatpush2.msra.mxu0 %v3082
    %3192 = vmatprep.subr.mxu0 0.0
    %3193 = vmatpush2.msra.mxu0 %v3081
    %3194 = vmatprep.subr.mxu0 0.0
    %3195 = vmatpush2.msra.mxu0 %v3080
    %3196 = vmatprep.subr.mxu0 0.0
    %3197 = vmatpush2.msra.mxu0 %v3079
    %3198 = vmatprep.mubr.f32.mxu0 %v3060
    %3199 = vmatmul.mubr.f32.gmra.mxu0 %v3059
    %v3200 = vpop.f32.mrf.mxu0
    %v3201 = vadd.f32 %v3132, %v3200
    %v3202 = vpop.f32.mrf.mxu0
    %3203 = vdwg.mxu0
    %3204 = vmatprep.subr.mxu0 0.0
    %3205 = vmatpush1.msra.mxu0 %v3110
    %3206 = vmatprep.subr.mxu0 0.0
    %3207 = vmatpush1.msra.mxu0 %v3109
    %3208 = vmatprep.subr.mxu0 0.0
    %3209 = vmatpush1.msra.mxu0 %v3108
    %3210 = vmatprep.subr.mxu0 0.0
    %3211 = vmatpush1.msra.mxu0 %v3107
    %3212 = vmatprep.subr.mxu0 0.0
    %3213 = vmatpush1.msra.mxu0 %v3106
    %3214 = vmatprep.subr.mxu0 0.0
    %3215 = vmatpush1.msra.mxu0 %v3105
    %3216 = vmatprep.subr.mxu0 0.0
    %3217 = vmatpush1.msra.mxu0 %v3104
    %3218 = vmatprep.subr.mxu0 0.0
    %3219 = vmatpush1.msra.mxu0 %v3103
    %3220 = vmatprep.subr.mxu0 0.0
    %3221 = vmatpush1.msra.mxu0 %v3102
    %3222 = vmatprep.subr.mxu0 0.0
    %3223 = vmatpush1.msra.mxu0 %v3101
    %3224 = vmatprep.subr.mxu0 0.0
    %3225 = vmatpush1.msra.mxu0 %v3100
    %3226 = vmatprep.subr.mxu0 0.0
    %3227 = vmatpush1.msra.mxu0 %v3099
    %3228 = vmatprep.subr.mxu0 0.0
    %3229 = vmatpush1.msra.mxu0 %v3098
    %3230 = vmatprep.subr.mxu0 0.0
    %3231 = vmatpush1.msra.mxu0 %v3097
    %3232 = vmatprep.subr.mxu0 0.0
    %3233 = vmatpush1.msra.mxu0 %v3096
    %3234 = vmatprep.subr.mxu0 0.0
    %3235 = vmatpush1.msra.mxu0 %v3095
    %3236 = vmatprep.subr.mxu0 0.0
    %3237 = vmatpush2.msra.mxu0 %v3126
    %3238 = vmatprep.subr.mxu0 0.0
    %3239 = vmatpush2.msra.mxu0 %v3125
    %3240 = vmatprep.subr.mxu0 0.0
    %3241 = vmatpush2.msra.mxu0 %v3124
    %3242 = vmatprep.subr.mxu0 0.0
    %3243 = vmatpush2.msra.mxu0 %v3123
    %3244 = vmatprep.subr.mxu0 0.0
    %3245 = vmatpush2.msra.mxu0 %v3122
    %3246 = vmatprep.subr.mxu0 0.0
    %3247 = vmatpush2.msra.mxu0 %v3121
    %3248 = vmatprep.subr.mxu0 0.0
    %3249 = vmatpush2.msra.mxu0 %v3120
    %3250 = vmatprep.subr.mxu0 0.0
    %3251 = vmatpush2.msra.mxu0 %v3119
    %3252 = vmatprep.subr.mxu0 0.0
    %3253 = vmatpush2.msra.mxu0 %v3118
    %3254 = vmatprep.subr.mxu0 0.0
    %3255 = vmatpush2.msra.mxu0 %v3117
    %3256 = vmatprep.subr.mxu0 0.0
    %3257 = vmatpush2.msra.mxu0 %v3116
    %3258 = vmatprep.subr.mxu0 0.0
    %3259 = vmatpush2.msra.mxu0 %v3115
    %3260 = vmatprep.subr.mxu0 0.0
    %3261 = vmatpush2.msra.mxu0 %v3114
    %3262 = vmatprep.subr.mxu0 0.0
    %3263 = vmatpush2.msra.mxu0 %v3113
    %3264 = vmatprep.subr.mxu0 0.0
    %3265 = vmatpush2.msra.mxu0 %v3112
    %3266 = vmatprep.subr.mxu0 0.0
    %3267 = vmatpush2.msra.mxu0 %v3111
    %3268 = vmatprep.mubr.f32.mxu0 %v3062
    %3269 = vmatmul.mubr.f32.gmra.mxu0 %v3061
    %v3270 = vpop.f32.mrf.mxu0
    %v3271 = vadd.f32 %v3201, %v3270
    %v3272 = vpop.f32.mrf.mxu0
    %3273 = vdwg.mxu0
    %3274 = vst [vmem:[#allocation23] sm:$0x3] %v3271
    // Predicated region
    $region134: #{roberta_classifier_forward.1} parent=1 // pred_check
      _
    $region135: #{roberta_classifier_forward.1} parent=1 // pred_check_branch
      %3276 = sbr.rel (0) target = $region137
    $region136: #{roberta_classifier_forward.1} parent=1 // pred_region
      %s3278 = ssub.s32 32, 32
      %3279 = vsyncadd [#allocation4], %s3278
      %s3281 = sshll.u32 [#allocation23], 4
      %s3282 = int_to_ptr.vmem [resolvable:$true] %s3281
      %3284 = dma.vmem_to_hbm [thread:$0]  %s3282, 32, %s20, [#allocation4]
    $region137: #{roberta_classifier_forward.1} parent=1 // pred_fallthru
      _
    // Predicated region
    $region138: #{roberta_classifier_forward.1} parent=1 // pred_check
      _
    $region139: #{roberta_classifier_forward.1} parent=1 // pred_check_branch
      %3286 = sbr.rel (0) target = $region141
    $region140: #{roberta_classifier_forward.1} parent=1 // pred_region
      %3287 = dma.done [#allocation4], 32
    $region141: #{roberta_classifier_forward.1} parent=1 // pred_fallthru
      _
    %3288 = vsyncpa [#allocation3], 1
    %3289 = vsyncpa [#allocation6], 1
    %3290 = vsyncpa [#allocation9], 1
    %3291 = vsyncpa [#allocation12], 1
    %3292 = vsyncpa [#allocation15], 1
    %3293 = vsyncpa [#allocation18], 1
    %3294 = vsyncpa [#allocation21], 1
    %3295 = vsyncpa [#allocation4], 1

</llo_original>
